<compile_context>
chip_gen: v6e
topology: v6e:2x2x1
jax: 0.10.0
libtpu: 0.0.40
codegen_flags: <defaults>
</compile_context>

<pallas_src>
import functools
import math

import jax
import jax.numpy as jnp
from jax.experimental import pallas as pl
from jax.experimental.pallas import tpu as pltpu


# ----------------------------------------------------------------------------
# Pallas kernel
# ----------------------------------------------------------------------------
def _pinned(shape):
    """Whole-array BlockSpec whose block never moves (weights resident in VMEM)."""
    zeros = (0,) * len(shape)
    return pl.BlockSpec(shape, lambda b: zeros)


def _bottleneck_kernel(H, W, Cin, P, stride, has_sc, fuse_sc, *refs):
    """Fully fused Bottleneck block for ONE batch image per grid step."""
    if has_sc and fuse_sc:
        (x_ref, wcat_ref, s1_ref, b1_ref, w2_ref, s2_ref, b2_ref,
         w3_ref, s3_ref, b3_ref, ssc_ref, bsc_ref,
         o_ref, hpad_ref, col_ref) = refs
    elif has_sc:
        (x_ref, w1_ref, s1_ref, b1_ref, w2_ref, s2_ref, b2_ref,
         w3_ref, s3_ref, b3_ref, wsc_ref, ssc_ref, bsc_ref,
         o_ref, hpad_ref, col_ref) = refs
    else:
        (x_ref, w1_ref, s1_ref, b1_ref, w2_ref, s2_ref, b2_ref,
         w3_ref, s3_ref, b3_ref,
         o_ref, hpad_ref, col_ref) = refs

    OH = (H - 1) // stride + 1
    OW = (W - 1) // stride + 1
    M1 = H * W
    M2 = OH * OW
    Cout = 4 * P

    x_val = x_ref[...].reshape(M1, Cin)          # (M1, Cin); bf16 (or f32 if identity)
    x_bf = x_val.astype(jnp.bfloat16)

    # ---- conv1 (1x1) + bn1 + relu; stride-1 projection shortcut fused in
    #      (shared LHS -> one wider MXU pass, shortcut slab lane-aligned) -----
    sc = None
    if has_sc and fuse_sc:
        h = jnp.dot(x_bf, wcat_ref[...], preferred_element_type=jnp.float32)
        sc = h[:, :Cout] * ssc_ref[...] + bsc_ref[...]     # projection shortcut
        h1 = h[:, Cout:]                                   # conv1 pre-BN
    else:
        h1 = jnp.dot(x_bf, w1_ref[...], preferred_element_type=jnp.float32)
    h1 = jnp.maximum(h1 * s1_ref[...] + b1_ref[...], 0.0)  # (M1, P) f32

    # ---- zero-pad h1 into a bf16 scratch; only the border frame is zeroed ---
    zrow = jnp.zeros((1, W + 2, P), jnp.bfloat16)
    zcol = jnp.zeros((H + 2, 1, P), jnp.bfloat16)
    hpad_ref[0:1, :, :] = zrow
    hpad_ref[H + 1:H + 2, :, :] = zrow
    hpad_ref[:, 0:1, :] = zcol
    hpad_ref[:, W + 1:W + 2, :] = zcol
    hpad_ref[1:H + 1, 1:W + 1, :] = h1.astype(jnp.bfloat16).reshape(H, W, P)

    # ---- conv2 (3x3, stride, pad=1): im2col into a lane-dense bf16 scratch,
    #      then a SINGLE K = 9*P matmul on the MXU ----------------------------
    for t in range(9):
        di, dj = t // 3, t % 3
        if stride == 1:
            win = hpad_ref[di:di + OH, dj:dj + OW, :]
        else:
            win = hpad_ref[pl.ds(di, OH, stride), pl.ds(dj, OW, stride), :]
        col_ref[:, t * P:(t + 1) * P] = win.reshape(M2, P)
    acc = jnp.dot(col_ref[...], w2_ref[...], preferred_element_type=jnp.float32)
    h2 = jnp.maximum(acc * s2_ref[...] + b2_ref[...], 0.0)        # (M2, P) f32

    # ---- conv3 (1x1) + bn3 (no relu yet) ------------------------------------
    out = jnp.dot(h2.astype(jnp.bfloat16), w3_ref[...],
                  preferred_element_type=jnp.float32)
    out = out * s3_ref[...] + b3_ref[...]                          # (M2, 4P)

    # ---- shortcut ------------------------------------------------------------
    if has_sc and not fuse_sc:
        # strided projection shortcut: slice the ref (strided loads, no value
        # reshape / relayout), then one MXU pass.
        xs = x_ref[:, pl.ds(0, OH, stride), pl.ds(0, OW, stride), :]
        xs = xs.reshape(M2, Cin).astype(jnp.bfloat16)
        sc = jnp.dot(xs, wsc_ref[...], preferred_element_type=jnp.float32)
        sc = sc * ssc_ref[...] + bsc_ref[...]
    elif not has_sc:
        sc = x_val.astype(jnp.float32)                             # identity

    o_ref[...] = jnp.maximum(out + sc, 0.0).reshape(1, OH, OW, Cout)


# ----------------------------------------------------------------------------
# Wrappers
# ----------------------------------------------------------------------------
def bottleneck_forward_nhwc(params, x_nhwc, stride=1):
    """NHWC-native forward (preferred: no layout transposes around the kernel)."""
    B, H, W, Cin = x_nhwc.shape
    P = params["s1"].shape[1]
    Cout = 4 * P
    has_sc = "ssc" in params
    fuse_sc = has_sc and stride == 1
    OH = (H - 1) // stride + 1
    OW = (W - 1) // stride + 1

    # bf16 input halves HBM traffic for projection-shortcut blocks; identity
    # blocks keep f32 so the residual add is exact.
    x = x_nhwc.astype(jnp.bfloat16 if has_sc else jnp.float32)

    if fuse_sc:
        inputs = [x, params["wcat"], params["s1"], params["b1"],
                  params["w2"], params["s2"], params["b2"],
                  params["w3"], params["s3"], params["b3"],
                  params["ssc"], params["bsc"]]
    elif has_sc:
        inputs = [x, params["w1"], params["s1"], params["b1"],
                  params["w2"], params["s2"], params["b2"],
                  params["w3"], params["s3"], params["b3"],
                  params["wsc"], params["ssc"], params["bsc"]]
    else:
        inputs = [x, params["w1"], params["s1"], params["b1"],
                  params["w2"], params["s2"], params["b2"],
                  params["w3"], params["s3"], params["b3"]]

    # Advisory cost estimate for XLA's scheduler.
    n1 = (Cout + P) if fuse_sc else P
    flops = 2 * B * H * W * Cin * n1
    flops += 2 * B * OH * OW * (9 * P) * P
    flops += 2 * B * OH * OW * P * Cout
    if has_sc and not fuse_sc:
        flops += 2 * B * OH * OW * Cin * Cout
    bytes_accessed = int(x.size) * x.dtype.itemsize
    bytes_accessed += sum(int(a.size) * a.dtype.itemsize for a in inputs[1:])
    bytes_accessed += B * OH * OW * Cout * 4

    kernel = functools.partial(_bottleneck_kernel, H, W, Cin, P, stride,
                               has_sc, fuse_sc)

    out = pl.pallas_call(
        kernel,
        out_shape=jax.ShapeDtypeStruct((B, OH, OW, Cout), jnp.float32),
        grid=(B,),
        in_specs=[pl.BlockSpec((1, H, W, Cin), lambda b: (b, 0, 0, 0))]
                 + [_pinned(a.shape) for a in inputs[1:]],
        out_specs=pl.BlockSpec((1, OH, OW, Cout), lambda b: (b, 0, 0, 0)),
        scratch_shapes=[
            pltpu.VMEM((H + 2, W + 2, P), jnp.bfloat16),     # padded h1
            pltpu.VMEM((OH * OW, 9 * P), jnp.bfloat16),      # im2col (lane-dense)
        ],
        compiler_params=pltpu.CompilerParams(
            dimension_semantics=("parallel",),
            vmem_limit_bytes=32 * 1024 * 1024),
        cost_estimate=pl.CostEstimate(flops=flops, transcendentals=0,
                                      bytes_accessed=bytes_accessed),
    )(*inputs)
    return out


def bottleneck_forward(params, x_nchw, stride=1):
    """NCHW wrapper mirroring the PyTorch module interface. In an NHWC-native
    model, call bottleneck_forward_nhwc directly and skip both transposes."""
    x_nhwc = jnp.transpose(x_nchw, (0, 2, 3, 1))
    out = bottleneck_forward_nhwc(params, x_nhwc, stride)
    return jnp.transpose(out, (0, 3, 1, 2))


# ----------------------------------------------------------------------------
# Parameters (kaiming conv weights, folded eval-mode BN), bf16 weights
# ----------------------------------------------------------------------------
def init_bottleneck_params(key, in_planes, planes, stride=1, eps=1e-5):
    expansion = 4
    out_planes = expansion * planes
    ks = jax.random.split(key, 8)

    def kaiming(k, shape, fan_out):
        return jax.random.normal(k, shape, jnp.float32) * math.sqrt(2.0 / fan_out)

    def bn_fold(k, c):
        kg, kb, km, kv = jax.random.split(k, 4)
        gamma = 1.0 + 0.1 * jax.random.normal(kg, (c,), jnp.float32)
        beta = 0.1 * jax.random.normal(kb, (c,), jnp.float32)
        mean = 0.1 * jax.random.normal(km, (c,), jnp.float32)
        var = 1.0 + 0.1 * jax.random.uniform(kv, (c,), jnp.float32)
        scale = gamma / jnp.sqrt(var + eps)
        shift = beta - mean * scale
        return scale.reshape(1, c), shift.reshape(1, c)

    p = {}
    # conv1: 1x1, in_planes -> planes   (weight stored as (Cin, Cout), bf16)
    p["w1"] = kaiming(ks[0], (in_planes, planes), planes).astype(jnp.bfloat16)
    p["s1"], p["b1"] = bn_fold(ks[1], planes)
    # conv2: 3x3 -> im2col weight layout (9*planes, planes); row block
    # t = di*3 + dj holds the (planes, planes) tap weight.
    w2 = kaiming(ks[2], (3, 3, planes, planes), 9 * planes)
    p["w2"] = w2.reshape(9 * planes, planes).astype(jnp.bfloat16)
    p["s2"], p["b2"] = bn_fold(ks[3], planes)
    # conv3: 1x1, planes -> 4*planes
    p["w3"] = kaiming(ks[4], (planes, out_planes), out_planes).astype(jnp.bfloat16)
    p["s3"], p["b3"] = bn_fold(ks[5], out_planes)
    # shortcut (1x1 stride conv + BN) iff shapes mismatch, as in the module
    if stride != 1 or in_planes != out_planes:
        p["wsc"] = kaiming(ks[6], (in_planes, out_planes), out_planes).astype(jnp.bfloat16)
        p["ssc"], p["bsc"] = bn_fold(ks[7], out_planes)
        if stride == 1:
            # Fused conv1 + projection-shortcut weight (shared LHS): ordering
            # [wsc | w1] keeps the Cout-wide shortcut slab lane-aligned.
            p["wcat"] = jnp.concatenate([p["wsc"], p["w1"]], axis=1)
    return p


# ----------------------------------------------------------------------------
# Plain-JAX reference (same bf16 rounding points) for correctness checking
# ----------------------------------------------------------------------------
def bottleneck_reference(params, x_nchw, stride=1):
    f32 = jnp.float32
    rd = lambda a: a.astype(jnp.bfloat16).astype(f32)   # mimic kernel rounding
    P = params["s1"].shape[1]

    x = jnp.transpose(x_nchw, (0, 2, 3, 1)).astype(f32)     # NHWC
    w1 = params["w1"].astype(f32)
    w2 = params["w2"].astype(f32).reshape(3, 3, P, P)
    w3 = params["w3"].astype(f32)

    h1 = jnp.einsum("bhwc,cp->bhwp", rd(x), w1)
    h1 = jnp.maximum(h1 * params["s1"][0] + params["b1"][0], 0.0)

    h2 = jax.lax.conv_general_dilated(
        rd(h1), w2, window_strides=(stride, stride),
        padding=((1, 1), (1, 1)),
        dimension_numbers=("NHWC", "HWIO", "NHWC"))
    h2 = jnp.maximum(h2 * params["s2"][0] + params["b2"][0], 0.0)

    out = jnp.einsum("bhwc,cp->bhwp", rd(h2), w3)
    out = out * params["s3"][0] + params["b3"][0]

    if "wsc" in params:
        xs = x[:, ::stride, ::stride, :]
        sc = jnp.einsum("bhwc,cp->bhwp", rd(xs), params["wsc"].astype(f32))
        sc = sc * params["ssc"][0] + params["bsc"][0]
    else:
        sc = x

    out = jnp.maximum(out + sc, 0.0)
    return jnp.transpose(out, (0, 3, 1, 2))                 # NCHW


if __name__ == "__main__":
    key = jax.random.PRNGKey(0)
    pkey, xkey = jax.random.split(key)

    in_planes, planes, stride = 64, 32, 1      # out channels = 4*planes = 128
    B, H, W = 2, 16, 16

    params = init_bottleneck_params(pkey, in_planes, planes, stride=stride)
    x = jax.random.normal(xkey, (B, in_planes, H, W), jnp.float32)   # NCHW

    fwd = jax.jit(bottleneck_forward, static_argnames=("stride",))
    y = jax.block_until_ready(fwd(params, x, stride=stride))

    OH = (H - 1) // stride + 1
    OW = (W - 1) // stride + 1
    assert y.shape == (B, 4 * planes, OH, OW), y.shape
    assert bool(jnp.all(jnp.isfinite(y)))

    y_ref = bottleneck_reference(params, x, stride)
    assert bool(jnp.allclose(y, y_ref, atol=1e-2, rtol=1e-2)), \
        float(jnp.max(jnp.abs(y - y_ref)))

    print("KERNEL_OK")
</pallas_src>

<mosaic_0001>
module attributes {stable_mosaic.version = 11 : i64} {
  func.func @_bottleneck_kernel(%arg0: i32, %arg1: memref<1x16x16x64xbf16, #tpu.memory_space<vmem>>, %arg2: memref<64x160xbf16, #tpu.memory_space<vmem>>, %arg3: memref<1x32xf32, #tpu.memory_space<vmem>>, %arg4: memref<1x32xf32, #tpu.memory_space<vmem>>, %arg5: memref<288x32xbf16, #tpu.memory_space<vmem>>, %arg6: memref<1x32xf32, #tpu.memory_space<vmem>>, %arg7: memref<1x32xf32, #tpu.memory_space<vmem>>, %arg8: memref<32x128xbf16, #tpu.memory_space<vmem>>, %arg9: memref<1x128xf32, #tpu.memory_space<vmem>>, %arg10: memref<1x128xf32, #tpu.memory_space<vmem>>, %arg11: memref<1x128xf32, #tpu.memory_space<vmem>>, %arg12: memref<1x128xf32, #tpu.memory_space<vmem>>, %arg13: memref<1x16x16x128xf32, #tpu.memory_space<vmem>>, %arg14: memref<18x18x32xbf16, #tpu.memory_space<vmem>>, %arg15: memref<256x288xbf16, #tpu.memory_space<vmem>>) attributes {dimension_semantics = [#tpu.dimension_semantics<parallel>], iteration_bounds = array<i64: 2>, scalar_prefetch = 0 : i64, scratch_operands = 2 : i64, tpu.core_type = #tpu.core_type<tc>, window_params = [{transform_indices = @transform_0, window_bounds = array<i64: 1, 16, 16, 64>}, {pipeline_mode = #tpu.pipeline_mode<synchronous>, transform_indices = @transform_1, window_bounds = array<i64: 64, 160>}, {pipeline_mode = #tpu.pipeline_mode<synchronous>, transform_indices = @transform_2, window_bounds = array<i64: 1, 32>}, {pipeline_mode = #tpu.pipeline_mode<synchronous>, transform_indices = @transform_3, window_bounds = array<i64: 1, 32>}, {pipeline_mode = #tpu.pipeline_mode<synchronous>, transform_indices = @transform_4, window_bounds = array<i64: 288, 32>}, {pipeline_mode = #tpu.pipeline_mode<synchronous>, transform_indices = @transform_5, window_bounds = array<i64: 1, 32>}, {pipeline_mode = #tpu.pipeline_mode<synchronous>, transform_indices = @transform_6, window_bounds = array<i64: 1, 32>}, {pipeline_mode = #tpu.pipeline_mode<synchronous>, transform_indices = @transform_7, window_bounds = array<i64: 32, 128>}, {pipeline_mode = #tpu.pipeline_mode<synchronous>, transform_indices = @transform_8, window_bounds = array<i64: 1, 128>}, {pipeline_mode = #tpu.pipeline_mode<synchronous>, transform_indices = @transform_9, window_bounds = array<i64: 1, 128>}, {pipeline_mode = #tpu.pipeline_mode<synchronous>, transform_indices = @transform_10, window_bounds = array<i64: 1, 128>}, {pipeline_mode = #tpu.pipeline_mode<synchronous>, transform_indices = @transform_11, window_bounds = array<i64: 1, 128>}, {transform_indices = @transform_12, window_bounds = array<i64: 1, 16, 16, 128>}]} {
    %c0 = arith.constant 0 : index
    %c0_0 = arith.constant 0 : index
    %c0_1 = arith.constant 0 : index
    %c0_2 = arith.constant 0 : index
    %0 = vector.load %arg1[%c0, %c0_0, %c0_1, %c0_2] : memref<1x16x16x64xbf16, #tpu.memory_space<vmem>>, vector<1x16x16x64xbf16>
    %1 = vector.shape_cast %0 : vector<1x16x16x64xbf16> to vector<256x64xbf16>
    %c0_3 = arith.constant 0 : index
    %c0_4 = arith.constant 0 : index
    %2 = vector.load %arg2[%c0_3, %c0_4] : memref<64x160xbf16, #tpu.memory_space<vmem>>, vector<64x160xbf16>
    %cst = arith.constant dense<0.000000e+00> : vector<256x160xf32>
    %3 = tpu.matmul %1, %2, %cst {dimension_numbers = #tpu.dot_dimension_numbers<[1], [0], [0], [1], [0, 0, 1, 1], [], []>} : vector<256x64xbf16>, vector<64x160xbf16>, vector<256x160xf32> -> vector<256x160xf32>
    %4 = vector.extract_strided_slice %3 {offsets = [0, 0], sizes = [256, 128], strides = [1, 1]} : vector<256x160xf32> to vector<256x128xf32>
    %c0_5 = arith.constant 0 : index
    %c0_6 = arith.constant 0 : index
    %5 = vector.load %arg11[%c0_5, %c0_6] : memref<1x128xf32, #tpu.memory_space<vmem>>, vector<1x128xf32>
    %6 = vector.broadcast %5 : vector<1x128xf32> to vector<256x128xf32>
    %7 = arith.mulf %4, %6 : vector<256x128xf32>
    %c0_7 = arith.constant 0 : index
    %c0_8 = arith.constant 0 : index
    %8 = vector.load %arg12[%c0_7, %c0_8] : memref<1x128xf32, #tpu.memory_space<vmem>>, vector<1x128xf32>
    %9 = vector.broadcast %8 : vector<1x128xf32> to vector<256x128xf32>
    %10 = arith.addf %7, %9 : vector<256x128xf32>
    %11 = vector.extract_strided_slice %3 {offsets = [0, 128], sizes = [256, 32], strides = [1, 1]} : vector<256x160xf32> to vector<256x32xf32>
    %c0_9 = arith.constant 0 : index
    %c0_10 = arith.constant 0 : index
    %12 = vector.load %arg3[%c0_9, %c0_10] : memref<1x32xf32, #tpu.memory_space<vmem>>, vector<1x32xf32>
    %13 = vector.broadcast %12 : vector<1x32xf32> to vector<256x32xf32>
    %14 = arith.mulf %11, %13 : vector<256x32xf32>
    %c0_11 = arith.constant 0 : index
    %c0_12 = arith.constant 0 : index
    %15 = vector.load %arg4[%c0_11, %c0_12] : memref<1x32xf32, #tpu.memory_space<vmem>>, vector<1x32xf32>
    %16 = vector.broadcast %15 : vector<1x32xf32> to vector<256x32xf32>
    %17 = arith.addf %14, %16 : vector<256x32xf32>
    %cst_13 = arith.constant 0.000000e+00 : f32
    %18 = vector.broadcast %cst_13 : f32 to vector<256x32xf32>
    %19 = arith.maximumf %17, %18 : vector<256x32xf32>
    %cst_14 = arith.constant 0.000000e+00 : bf16
    %20 = vector.broadcast %cst_14 : bf16 to vector<1x18x32xbf16>
    %cst_15 = arith.constant 0.000000e+00 : bf16
    %21 = vector.broadcast %cst_15 : bf16 to vector<18x1x32xbf16>
    %c0_16 = arith.constant 0 : index
    %c0_17 = arith.constant 0 : index
    %c0_18 = arith.constant 0 : index
    %22 = vector.load %arg14[%c0_16, %c0_17, %c0_18] : memref<18x18x32xbf16, #tpu.memory_space<vmem>>, vector<1x18x32xbf16>
    tpu.vector_store %arg14[%c0_16, %c0_17, %c0_18], %20 {strides = array<i32>} : memref<18x18x32xbf16, #tpu.memory_space<vmem>>, vector<1x18x32xbf16>,
    %c17 = arith.constant 17 : index
    %c0_19 = arith.constant 0 : index
    %c0_20 = arith.constant 0 : index
    %23 = vector.load %arg14[%c17, %c0_19, %c0_20] : memref<18x18x32xbf16, #tpu.memory_space<vmem>>, vector<1x18x32xbf16>
    tpu.vector_store %arg14[%c17, %c0_19, %c0_20], %20 {strides = array<i32>} : memref<18x18x32xbf16, #tpu.memory_space<vmem>>, vector<1x18x32xbf16>,
    %c0_21 = arith.constant 0 : index
    %c0_22 = arith.constant 0 : index
    %c0_23 = arith.constant 0 : index
    %24 = vector.load %arg14[%c0_21, %c0_22, %c0_23] : memref<18x18x32xbf16, #tpu.memory_space<vmem>>, vector<18x1x32xbf16>
    tpu.vector_store %arg14[%c0_21, %c0_22, %c0_23], %21 {strides = array<i32>} : memref<18x18x32xbf16, #tpu.memory_space<vmem>>, vector<18x1x32xbf16>,
    %c0_24 = arith.constant 0 : index
    %c17_25 = arith.constant 17 : index
    %c0_26 = arith.constant 0 : index
    %25 = vector.load %arg14[%c0_24, %c17_25, %c0_26] : memref<18x18x32xbf16, #tpu.memory_space<vmem>>, vector<18x1x32xbf16>
    tpu.vector_store %arg14[%c0_24, %c17_25, %c0_26], %21 {strides = array<i32>} : memref<18x18x32xbf16, #tpu.memory_space<vmem>>, vector<18x1x32xbf16>,
    %26 = arith.truncf %19 : vector<256x32xf32> to vector<256x32xbf16>
    %27 = vector.shape_cast %26 : vector<256x32xbf16> to vector<16x16x32xbf16>
    %c1 = arith.constant 1 : index
    %c1_27 = arith.constant 1 : index
    %c0_28 = arith.constant 0 : index
    %28 = vector.load %arg14[%c1, %c1_27, %c0_28] : memref<18x18x32xbf16, #tpu.memory_space<vmem>>, vector<16x16x32xbf16>
    tpu.vector_store %arg14[%c1, %c1_27, %c0_28], %27 {strides = array<i32>} : memref<18x18x32xbf16, #tpu.memory_space<vmem>>, vector<16x16x32xbf16>,
    %c0_29 = arith.constant 0 : index
    %c0_30 = arith.constant 0 : index
    %c0_31 = arith.constant 0 : index
    %29 = vector.load %arg14[%c0_29, %c0_30, %c0_31] : memref<18x18x32xbf16, #tpu.memory_space<vmem>>, vector<16x16x32xbf16>
    %30 = vector.shape_cast %29 : vector<16x16x32xbf16> to vector<256x32xbf16>
    %c0_32 = arith.constant 0 : index
    %c0_33 = arith.constant 0 : index
    %31 = vector.load %arg15[%c0_32, %c0_33] : memref<256x288xbf16, #tpu.memory_space<vmem>>, vector<256x32xbf16>
    tpu.vector_store %arg15[%c0_32, %c0_33], %30 {strides = array<i32>} : memref<256x288xbf16, #tpu.memory_space<vmem>>, vector<256x32xbf16>,
    %c0_34 = arith.constant 0 : index
    %c1_35 = arith.constant 1 : index
    %c0_36 = arith.constant 0 : index
    %32 = vector.load %arg14[%c0_34, %c1_35, %c0_36] : memref<18x18x32xbf16, #tpu.memory_space<vmem>>, vector<16x16x32xbf16>
    %33 = vector.shape_cast %32 : vector<16x16x32xbf16> to vector<256x32xbf16>
    %c0_37 = arith.constant 0 : index
    %c32 = arith.constant 32 : index
    %34 = vector.load %arg15[%c0_37, %c32] : memref<256x288xbf16, #tpu.memory_space<vmem>>, vector<256x32xbf16>
    tpu.vector_store %arg15[%c0_37, %c32], %33 {strides = array<i32>} : memref<256x288xbf16, #tpu.memory_space<vmem>>, vector<256x32xbf16>,
    %c0_38 = arith.constant 0 : index
    %c2 = arith.constant 2 : index
    %c0_39 = arith.constant 0 : index
    %35 = vector.load %arg14[%c0_38, %c2, %c0_39] : memref<18x18x32xbf16, #tpu.memory_space<vmem>>, vector<16x16x32xbf16>
    %36 = vector.shape_cast %35 : vector<16x16x32xbf16> to vector<256x32xbf16>
    %c0_40 = arith.constant 0 : index
    %c64 = arith.constant 64 : index
    %37 = vector.load %arg15[%c0_40, %c64] : memref<256x288xbf16, #tpu.memory_space<vmem>>, vector<256x32xbf16>
    tpu.vector_store %arg15[%c0_40, %c64], %36 {strides = array<i32>} : memref<256x288xbf16, #tpu.memory_space<vmem>>, vector<256x32xbf16>,
    %c1_41 = arith.constant 1 : index
    %c0_42 = arith.constant 0 : index
    %c0_43 = arith.constant 0 : index
    %38 = vector.load %arg14[%c1_41, %c0_42, %c0_43] : memref<18x18x32xbf16, #tpu.memory_space<vmem>>, vector<16x16x32xbf16>
    %39 = vector.shape_cast %38 : vector<16x16x32xbf16> to vector<256x32xbf16>
    %c0_44 = arith.constant 0 : index
    %c96 = arith.constant 96 : index
    %40 = vector.load %arg15[%c0_44, %c96] : memref<256x288xbf16, #tpu.memory_space<vmem>>, vector<256x32xbf16>
    tpu.vector_store %arg15[%c0_44, %c96], %39 {strides = array<i32>} : memref<256x288xbf16, #tpu.memory_space<vmem>>, vector<256x32xbf16>,
    %c1_45 = arith.constant 1 : index
    %c1_46 = arith.constant 1 : index
    %c0_47 = arith.constant 0 : index
    %41 = vector.load %arg14[%c1_45, %c1_46, %c0_47] : memref<18x18x32xbf16, #tpu.memory_space<vmem>>, vector<16x16x32xbf16>
    %42 = vector.shape_cast %41 : vector<16x16x32xbf16> to vector<256x32xbf16>
    %c0_48 = arith.constant 0 : index
    %c128 = arith.constant 128 : index
    %43 = vector.load %arg15[%c0_48, %c128] : memref<256x288xbf16, #tpu.memory_space<vmem>>, vector<256x32xbf16>
    tpu.vector_store %arg15[%c0_48, %c128], %42 {strides = array<i32>} : memref<256x288xbf16, #tpu.memory_space<vmem>>, vector<256x32xbf16>,
    %c1_49 = arith.constant 1 : index
    %c2_50 = arith.constant 2 : index
    %c0_51 = arith.constant 0 : index
    %44 = vector.load %arg14[%c1_49, %c2_50, %c0_51] : memref<18x18x32xbf16, #tpu.memory_space<vmem>>, vector<16x16x32xbf16>
    %45 = vector.shape_cast %44 : vector<16x16x32xbf16> to vector<256x32xbf16>
    %c0_52 = arith.constant 0 : index
    %c160 = arith.constant 160 : index
    %46 = vector.load %arg15[%c0_52, %c160] : memref<256x288xbf16, #tpu.memory_space<vmem>>, vector<256x32xbf16>
    tpu.vector_store %arg15[%c0_52, %c160], %45 {strides = array<i32>} : memref<256x288xbf16, #tpu.memory_space<vmem>>, vector<256x32xbf16>,
    %c2_53 = arith.constant 2 : index
    %c0_54 = arith.constant 0 : index
    %c0_55 = arith.constant 0 : index
    %47 = vector.load %arg14[%c2_53, %c0_54, %c0_55] : memref<18x18x32xbf16, #tpu.memory_space<vmem>>, vector<16x16x32xbf16>
    %48 = vector.shape_cast %47 : vector<16x16x32xbf16> to vector<256x32xbf16>
    %c0_56 = arith.constant 0 : index
    %c192 = arith.constant 192 : index
    %49 = vector.load %arg15[%c0_56, %c192] : memref<256x288xbf16, #tpu.memory_space<vmem>>, vector<256x32xbf16>
    tpu.vector_store %arg15[%c0_56, %c192], %48 {strides = array<i32>} : memref<256x288xbf16, #tpu.memory_space<vmem>>, vector<256x32xbf16>,
    %c2_57 = arith.constant 2 : index
    %c1_58 = arith.constant 1 : index
    %c0_59 = arith.constant 0 : index
    %50 = vector.load %arg14[%c2_57, %c1_58, %c0_59] : memref<18x18x32xbf16, #tpu.memory_space<vmem>>, vector<16x16x32xbf16>
    %51 = vector.shape_cast %50 : vector<16x16x32xbf16> to vector<256x32xbf16>
    %c0_60 = arith.constant 0 : index
    %c224 = arith.constant 224 : index
    %52 = vector.load %arg15[%c0_60, %c224] : memref<256x288xbf16, #tpu.memory_space<vmem>>, vector<256x32xbf16>
    tpu.vector_store %arg15[%c0_60, %c224], %51 {strides = array<i32>} : memref<256x288xbf16, #tpu.memory_space<vmem>>, vector<256x32xbf16>,
    %c2_61 = arith.constant 2 : index
    %c2_62 = arith.constant 2 : index
    %c0_63 = arith.constant 0 : index
    %53 = vector.load %arg14[%c2_61, %c2_62, %c0_63] : memref<18x18x32xbf16, #tpu.memory_space<vmem>>, vector<16x16x32xbf16>
    %54 = vector.shape_cast %53 : vector<16x16x32xbf16> to vector<256x32xbf16>
    %c0_64 = arith.constant 0 : index
    %c256 = arith.constant 256 : index
    %55 = vector.load %arg15[%c0_64, %c256] : memref<256x288xbf16, #tpu.memory_space<vmem>>, vector<256x32xbf16>
    tpu.vector_store %arg15[%c0_64, %c256], %54 {strides = array<i32>} : memref<256x288xbf16, #tpu.memory_space<vmem>>, vector<256x32xbf16>,
    %c0_65 = arith.constant 0 : index
    %c0_66 = arith.constant 0 : index
    %56 = vector.load %arg15[%c0_65, %c0_66] : memref<256x288xbf16, #tpu.memory_space<vmem>>, vector<256x288xbf16>
    %c0_67 = arith.constant 0 : index
    %c0_68 = arith.constant 0 : index
    %57 = vector.load %arg5[%c0_67, %c0_68] : memref<288x32xbf16, #tpu.memory_space<vmem>>, vector<288x32xbf16>
    %cst_69 = arith.constant dense<0.000000e+00> : vector<256x32xf32>
    %58 = tpu.matmul %56, %57, %cst_69 {dimension_numbers = #tpu.dot_dimension_numbers<[1], [0], [0], [1], [0, 0, 1, 1], [], []>} : vector<256x288xbf16>, vector<288x32xbf16>, vector<256x32xf32> -> vector<256x32xf32>
    %c0_70 = arith.constant 0 : index
    %c0_71 = arith.constant 0 : index
    %59 = vector.load %arg6[%c0_70, %c0_71] : memref<1x32xf32, #tpu.memory_space<vmem>>, vector<1x32xf32>
    %60 = vector.broadcast %59 : vector<1x32xf32> to vector<256x32xf32>
    %61 = arith.mulf %58, %60 : vector<256x32xf32>
    %c0_72 = arith.constant 0 : index
    %c0_73 = arith.constant 0 : index
    %62 = vector.load %arg7[%c0_72, %c0_73] : memref<1x32xf32, #tpu.memory_space<vmem>>, vector<1x32xf32>
    %63 = vector.broadcast %62 : vector<1x32xf32> to vector<256x32xf32>
    %64 = arith.addf %61, %63 : vector<256x32xf32>
    %cst_74 = arith.constant 0.000000e+00 : f32
    %65 = vector.broadcast %cst_74 : f32 to vector<256x32xf32>
    %66 = arith.maximumf %64, %65 : vector<256x32xf32>
    %67 = arith.truncf %66 : vector<256x32xf32> to vector<256x32xbf16>
    %c0_75 = arith.constant 0 : index
    %c0_76 = arith.constant 0 : index
    %68 = vector.load %arg8[%c0_75, %c0_76] : memref<32x128xbf16, #tpu.memory_space<vmem>>, vector<32x128xbf16>
    %cst_77 = arith.constant dense<0.000000e+00> : vector<256x128xf32>
    %69 = tpu.matmul %67, %68, %cst_77 {dimension_numbers = #tpu.dot_dimension_numbers<[1], [0], [0], [1], [0, 0, 1, 1], [], []>} : vector<256x32xbf16>, vector<32x128xbf16>, vector<256x128xf32> -> vector<256x128xf32>
    %c0_78 = arith.constant 0 : index
    %c0_79 = arith.constant 0 : index
    %70 = vector.load %arg9[%c0_78, %c0_79] : memref<1x128xf32, #tpu.memory_space<vmem>>, vector<1x128xf32>
    %71 = vector.broadcast %70 : vector<1x128xf32> to vector<256x128xf32>
    %72 = arith.mulf %69, %71 : vector<256x128xf32>
    %c0_80 = arith.constant 0 : index
    %c0_81 = arith.constant 0 : index
    %73 = vector.load %arg10[%c0_80, %c0_81] : memref<1x128xf32, #tpu.memory_space<vmem>>, vector<1x128xf32>
    %74 = vector.broadcast %73 : vector<1x128xf32> to vector<256x128xf32>
    %75 = arith.addf %72, %74 : vector<256x128xf32>
    %76 = arith.addf %75, %10 : vector<256x128xf32>
    %cst_82 = arith.constant 0.000000e+00 : f32
    %77 = vector.broadcast %cst_82 : f32 to vector<256x128xf32>
    %78 = arith.maximumf %76, %77 : vector<256x128xf32>
    %79 = vector.shape_cast %78 : vector<256x128xf32> to vector<1x16x16x128xf32>
    %c0_83 = arith.constant 0 : index
    %c0_84 = arith.constant 0 : index
    %c0_85 = arith.constant 0 : index
    %c0_86 = arith.constant 0 : index
    %80 = vector.load %arg13[%c0_83, %c0_84, %c0_85, %c0_86] : memref<1x16x16x128xf32, #tpu.memory_space<vmem>>, vector<1x16x16x128xf32>
    tpu.vector_store %arg13[%c0_83, %c0_84, %c0_85, %c0_86], %79 {strides = array<i32>} : memref<1x16x16x128xf32, #tpu.memory_space<vmem>>, vector<1x16x16x128xf32>,
    return
  }
  func.func @transform_0(%arg0: i32) -> (i32, i32, i32, i32) {
    %c0_i32 = arith.constant 0 : i32
    %c0_i32_0 = arith.constant 0 : i32
    %c0_i32_1 = arith.constant 0 : i32
    %c0_i32_2 = arith.constant 0 : i32
    return %arg0, %c0_i32, %c0_i32_0, %c0_i32_1 : i32, i32, i32, i32
  }
  func.func @transform_1(%arg0: i32) -> (i32, i32) {
    %c0_i32 = arith.constant 0 : i32
    %c0_i32_0 = arith.constant 0 : i32
    %c0_i32_1 = arith.constant 0 : i32
    return %c0_i32, %c0_i32_0 : i32, i32
  }
  func.func @transform_2(%arg0: i32) -> (i32, i32) {
    %c0_i32 = arith.constant 0 : i32
    %c0_i32_0 = arith.constant 0 : i32
    %c0_i32_1 = arith.constant 0 : i32
    return %c0_i32, %c0_i32_0 : i32, i32
  }
  func.func @transform_3(%arg0: i32) -> (i32, i32) {
    %c0_i32 = arith.constant 0 : i32
    %c0_i32_0 = arith.constant 0 : i32
    %c0_i32_1 = arith.constant 0 : i32
    return %c0_i32, %c0_i32_0 : i32, i32
  }
  func.func @transform_4(%arg0: i32) -> (i32, i32) {
    %c0_i32 = arith.constant 0 : i32
    %c0_i32_0 = arith.constant 0 : i32
    %c0_i32_1 = arith.constant 0 : i32
    return %c0_i32, %c0_i32_0 : i32, i32
  }
  func.func @transform_5(%arg0: i32) -> (i32, i32) {
    %c0_i32 = arith.constant 0 : i32
    %c0_i32_0 = arith.constant 0 : i32
    %c0_i32_1 = arith.constant 0 : i32
    return %c0_i32, %c0_i32_0 : i32, i32
  }
  func.func @transform_6(%arg0: i32) -> (i32, i32) {
    %c0_i32 = arith.constant 0 : i32
    %c0_i32_0 = arith.constant 0 : i32
    %c0_i32_1 = arith.constant 0 : i32
    return %c0_i32, %c0_i32_0 : i32, i32
  }
  func.func @transform_7(%arg0: i32) -> (i32, i32) {
    %c0_i32 = arith.constant 0 : i32
    %c0_i32_0 = arith.constant 0 : i32
    %c0_i32_1 = arith.constant 0 : i32
    return %c0_i32, %c0_i32_0 : i32, i32
  }
  func.func @transform_8(%arg0: i32) -> (i32, i32) {
    %c0_i32 = arith.constant 0 : i32
    %c0_i32_0 = arith.constant 0 : i32
    %c0_i32_1 = arith.constant 0 : i32
    return %c0_i32, %c0_i32_0 : i32, i32
  }
  func.func @transform_9(%arg0: i32) -> (i32, i32) {
    %c0_i32 = arith.constant 0 : i32
    %c0_i32_0 = arith.constant 0 : i32
    %c0_i32_1 = arith.constant 0 : i32
    return %c0_i32, %c0_i32_0 : i32, i32
  }
  func.func @transform_10(%arg0: i32) -> (i32, i32) {
    %c0_i32 = arith.constant 0 : i32
    %c0_i32_0 = arith.constant 0 : i32
    %c0_i32_1 = arith.constant 0 : i32
    return %c0_i32, %c0_i32_0 : i32, i32
  }
  func.func @transform_11(%arg0: i32) -> (i32, i32) {
    %c0_i32 = arith.constant 0 : i32
    %c0_i32_0 = arith.constant 0 : i32
    %c0_i32_1 = arith.constant 0 : i32
    return %c0_i32, %c0_i32_0 : i32, i32
  }
  func.func @transform_12(%arg0: i32) -> (i32, i32, i32, i32) {
    %c0_i32 = arith.constant 0 : i32
    %c0_i32_0 = arith.constant 0 : i32
    %c0_i32_1 = arith.constant 0 : i32
    %c0_i32_2 = arith.constant 0 : i32
    return %arg0, %c0_i32, %c0_i32_0, %c0_i32_1 : i32, i32, i32, i32
  }
}

</mosaic_0001>

<llo_original>
// kernel: bottleneck_forward.1
$region0: #{bottleneck_forward.1}
  #allocation0 [shape = 'u32[]', space=smem, size = 0x4, offset = 0x4, fixed_abs, tag = 'smem constant byte address 0x4 - core index']
  #allocation1 [shape = 'u32[144,128]{1,0:T(1,128)}', space=vmem, size = 0x12000, scoped, tag = 'internal scratch']
  #allocation2 [shape = 'bf16[18,18,32]{2,1,0:T(8,128)(2,1)}', space=vmem, size = 0x1b000, scoped, tag = 'scratch operand']
  #allocation3 [shape = 'bf16[256,288]{1,0:T(8,128)(2,1)}', space=vmem, size = 0x30000, scoped, tag = 'scratch operand']
  %s0 = inlined_call_operand.vmem [shape: bf16[2,16,16,64], index: 0, kind: input, shape index: {}]
  %s1 = inlined_call_operand.vmem [shape: bf16[64,160], index: 1, kind: input, shape index: {}]
  %s2 = inlined_call_operand.vmem [shape: f32[1,32], index: 2, kind: input, shape index: {}]
  %s3 = inlined_call_operand.vmem [shape: f32[1,32], index: 3, kind: input, shape index: {}]
  %s4 = inlined_call_operand.vmem [shape: bf16[288,32], index: 4, kind: input, shape index: {}]
  %s5 = inlined_call_operand.vmem [shape: f32[1,32], index: 5, kind: input, shape index: {}]
  %s6 = inlined_call_operand.vmem [shape: f32[1,32], index: 6, kind: input, shape index: {}]
  %s7 = inlined_call_operand.vmem [shape: bf16[32,128], index: 7, kind: input, shape index: {}]
  %s8 = inlined_call_operand.vmem [shape: f32[1,128], index: 8, kind: input, shape index: {}]
  %s9 = inlined_call_operand.vmem [shape: f32[1,128], index: 9, kind: input, shape index: {}]
  %s10 = inlined_call_operand.vmem [shape: f32[1,128], index: 10, kind: input, shape index: {}]
  %s11 = inlined_call_operand.vmem [shape: f32[1,128], index: 11, kind: input, shape index: {}]
  %s12 = inlined_call_operand.hbm [shape: f32[2,16,16,128], index: 12, kind: output, shape index: {}]
  %s13 = sld [smem:[#allocation0]]
  $region81: #{bottleneck_forward.1} parent=0
    _
  %s15 = ssub.s32 1, %s13
  %s16 = scalar_select 0, %s15, %s13
  $region1: #{bottleneck_forward.1} parent=0
    #allocation4 [shape = 'u8[262144]{0}', space=vmem, size = 0x40000, scoped, tag = 'output window, operand 0']
    #allocation5 [shape = 's32[2]{0}', space=sflag, size = 0x8, scoped, tag = 'scoped memory for bottleneck_forward.1']
    %17 = vsyncpa [#allocation5], 0
    %s18 = scalar_lea.sflag [#allocation5], 1
    %19 = vsyncpa %s18, 0
    loop: start=0, step=1, limit=4
    $region2: #{bottleneck_forward.1} parent=1 // loop_pre_header
      _
    $region3: #{bottleneck_forward.1} parent=1 // loop_header
      %s21 = sphi 0, %s25
      %p22 = scmp.ge.s32.totalorder %s21, 4
      %s31 = sphi 0, %s33
      %s34 = sphi 0, %s31
      %s35 = sphi 0, %s34
      %s51 = sphi 0, %s35
      %s55 = sphi 0, %s55
      %s57 = sphi 0, %s55
      %s58 = sphi 0, %s57
      %s72 = sphi 0, %s58
      %s76 = sphi 0, %s76
      %s78 = sphi 0, %s76
      %s79 = sphi 0, %s78
      %s93 = sphi 0, %s79
      %s97 = sphi 0, %s97
      %s99 = sphi 0, %s97
      %s100 = sphi 0, %s99
      %s114 = sphi 0, %s100
      %s118 = sphi 0, %s118
      %s120 = sphi 0, %s118
      %s121 = sphi 0, %s120
      %s135 = sphi 0, %s121
      %s139 = sphi 0, %s139
      %s141 = sphi 0, %s139
      %s142 = sphi 0, %s141
      %s156 = sphi 0, %s142
      %s160 = sphi 0, %s160
      %s162 = sphi 0, %s160
      %s163 = sphi 0, %s162
      %s177 = sphi 0, %s163
      %s181 = sphi 0, %s181
      %s183 = sphi 0, %s181
      %s184 = sphi 0, %s183
      %s198 = sphi 0, %s184
      %s202 = sphi 0, %s202
      %s204 = sphi 0, %s202
      %s205 = sphi 0, %s204
      %s219 = sphi 0, %s205
      %s223 = sphi 0, %s223
      %s225 = sphi 0, %s223
      %s226 = sphi 0, %s225
      %s240 = sphi 0, %s226
      %s244 = sphi 0, %s244
      %s246 = sphi 0, %s244
      %s247 = sphi 0, %s246
      %s261 = sphi 0, %s247
      %s265 = sphi 0, %s265
      %s267 = sphi 0, %s265
      %s268 = sphi 0, %s267
      %s282 = sphi 0, %s268
      %s288 = sphi 0, %s290
      %s291 = sphi 0, %s288
      %s292 = sphi 0, %s291
      %s308 = sphi 0, %s292
    $region4: #{bottleneck_forward.1} parent=1 // loop_header_branch
      %24 = sbr.rel (%p22) target = $region8
    $region5: #{bottleneck_forward.1} parent=1 // loop_body
      %s26 = ssub.s32 %s21, 1
      %s27 = ssub.s32 %s21, 2
      %s28 = sadd.s32 %s21, 1
      %s29 = ssub.s32 %s21, %s28
      %p30 = scmp.eq.s32.totalorder %s29, 0
      %s32 = sadd.s32 %s31, 1
      %s33 = scalar_select %p30, %s31, %s32
      %p36 = pneg %p30
      %p37 = scmp.eq.s32.totalorder %s21, 1
      %p38 = por %p36, %p37
      %p39 = scmp.ne.s32.totalorder %s31, %s34
      %p40 = scmp.eq.s32.totalorder %s21, 0
      %p41 = por %p39, %p40
      %p42 = scmp.ne.s32.totalorder %s31, %s34
      %p43 = scmp.eq.s32.totalorder %s26, 1
      %p44 = por %p42, %p43
      %p45 = scmp.ne.s32.totalorder %s34, %s35
      %p46 = scmp.eq.s32.totalorder %s26, 0
      %p47 = por %p45, %p46
      %p48 = scmp.ne.s32.totalorder %s34, %s35
      %p49 = scmp.eq.s32.totalorder %s27, 1
      %p50 = por %p48, %p49
      %p52 = scmp.ne.s32.totalorder %s35, %s51
      %p53 = scmp.eq.s32.totalorder %s27, 0
      %p54 = por %p52, %p53
      %s56 = sadd.s32 %s55, 1
      %p59 = scmp.eq.s32.totalorder %s21, 1
      %p60 = scmp.ne.s32.totalorder %s55, %s57
      %p61 = scmp.eq.s32.totalorder %s21, 0
      %p62 = por %p60, %p61
      %p63 = scmp.ne.s32.totalorder %s55, %s57
      %p64 = scmp.eq.s32.totalorder %s26, 1
      %p65 = por %p63, %p64
      %p66 = scmp.ne.s32.totalorder %s57, %s58
      %p67 = scmp.eq.s32.totalorder %s26, 0
      %p68 = por %p66, %p67
      %p69 = scmp.ne.s32.totalorder %s57, %s58
      %p70 = scmp.eq.s32.totalorder %s27, 1
      %p71 = por %p69, %p70
      %p73 = scmp.ne.s32.totalorder %s58, %s72
      %p74 = scmp.eq.s32.totalorder %s27, 0
      %p75 = por %p73, %p74
      %s77 = sadd.s32 %s76, 1
      %p80 = scmp.eq.s32.totalorder %s21, 1
      %p81 = scmp.ne.s32.totalorder %s76, %s78
      %p82 = scmp.eq.s32.totalorder %s21, 0
      %p83 = por %p81, %p82
      %p84 = scmp.ne.s32.totalorder %s76, %s78
      %p85 = scmp.eq.s32.totalorder %s26, 1
      %p86 = por %p84, %p85
      %p87 = scmp.ne.s32.totalorder %s78, %s79
      %p88 = scmp.eq.s32.totalorder %s26, 0
      %p89 = por %p87, %p88
      %p90 = scmp.ne.s32.totalorder %s78, %s79
      %p91 = scmp.eq.s32.totalorder %s27, 1
      %p92 = por %p90, %p91
      %p94 = scmp.ne.s32.totalorder %s79, %s93
      %p95 = scmp.eq.s32.totalorder %s27, 0
      %p96 = por %p94, %p95
      %s98 = sadd.s32 %s97, 1
      %p101 = scmp.eq.s32.totalorder %s21, 1
      %p102 = scmp.ne.s32.totalorder %s97, %s99
      %p103 = scmp.eq.s32.totalorder %s21, 0
      %p104 = por %p102, %p103
      %p105 = scmp.ne.s32.totalorder %s97, %s99
      %p106 = scmp.eq.s32.totalorder %s26, 1
      %p107 = por %p105, %p106
      %p108 = scmp.ne.s32.totalorder %s99, %s100
      %p109 = scmp.eq.s32.totalorder %s26, 0
      %p110 = por %p108, %p109
      %p111 = scmp.ne.s32.totalorder %s99, %s100
      %p112 = scmp.eq.s32.totalorder %s27, 1
      %p113 = por %p111, %p112
      %p115 = scmp.ne.s32.totalorder %s100, %s114
      %p116 = scmp.eq.s32.totalorder %s27, 0
      %p117 = por %p115, %p116
      %s119 = sadd.s32 %s118, 1
      %p122 = scmp.eq.s32.totalorder %s21, 1
      %p123 = scmp.ne.s32.totalorder %s118, %s120
      %p124 = scmp.eq.s32.totalorder %s21, 0
      %p125 = por %p123, %p124
      %p126 = scmp.ne.s32.totalorder %s118, %s120
      %p127 = scmp.eq.s32.totalorder %s26, 1
      %p128 = por %p126, %p127
      %p129 = scmp.ne.s32.totalorder %s120, %s121
      %p130 = scmp.eq.s32.totalorder %s26, 0
      %p131 = por %p129, %p130
      %p132 = scmp.ne.s32.totalorder %s120, %s121
      %p133 = scmp.eq.s32.totalorder %s27, 1
      %p134 = por %p132, %p133
      %p136 = scmp.ne.s32.totalorder %s121, %s135
      %p137 = scmp.eq.s32.totalorder %s27, 0
      %p138 = por %p136, %p137
      %s140 = sadd.s32 %s139, 1
      %p143 = scmp.eq.s32.totalorder %s21, 1
      %p144 = scmp.ne.s32.totalorder %s139, %s141
      %p145 = scmp.eq.s32.totalorder %s21, 0
      %p146 = por %p144, %p145
      %p147 = scmp.ne.s32.totalorder %s139, %s141
      %p148 = scmp.eq.s32.totalorder %s26, 1
      %p149 = por %p147, %p148
      %p150 = scmp.ne.s32.totalorder %s141, %s142
      %p151 = scmp.eq.s32.totalorder %s26, 0
      %p152 = por %p150, %p151
      %p153 = scmp.ne.s32.totalorder %s141, %s142
      %p154 = scmp.eq.s32.totalorder %s27, 1
      %p155 = por %p153, %p154
      %p157 = scmp.ne.s32.totalorder %s142, %s156
      %p158 = scmp.eq.s32.totalorder %s27, 0
      %p159 = por %p157, %p158
      %s161 = sadd.s32 %s160, 1
      %p164 = scmp.eq.s32.totalorder %s21, 1
      %p165 = scmp.ne.s32.totalorder %s160, %s162
      %p166 = scmp.eq.s32.totalorder %s21, 0
      %p167 = por %p165, %p166
      %p168 = scmp.ne.s32.totalorder %s160, %s162
      %p169 = scmp.eq.s32.totalorder %s26, 1
      %p170 = por %p168, %p169
      %p171 = scmp.ne.s32.totalorder %s162, %s163
      %p172 = scmp.eq.s32.totalorder %s26, 0
      %p173 = por %p171, %p172
      %p174 = scmp.ne.s32.totalorder %s162, %s163
      %p175 = scmp.eq.s32.totalorder %s27, 1
      %p176 = por %p174, %p175
      %p178 = scmp.ne.s32.totalorder %s163, %s177
      %p179 = scmp.eq.s32.totalorder %s27, 0
      %p180 = por %p178, %p179
      %s182 = sadd.s32 %s181, 1
      %p185 = scmp.eq.s32.totalorder %s21, 1
      %p186 = scmp.ne.s32.totalorder %s181, %s183
      %p187 = scmp.eq.s32.totalorder %s21, 0
      %p188 = por %p186, %p187
      %p189 = scmp.ne.s32.totalorder %s181, %s183
      %p190 = scmp.eq.s32.totalorder %s26, 1
      %p191 = por %p189, %p190
      %p192 = scmp.ne.s32.totalorder %s183, %s184
      %p193 = scmp.eq.s32.totalorder %s26, 0
      %p194 = por %p192, %p193
      %p195 = scmp.ne.s32.totalorder %s183, %s184
      %p196 = scmp.eq.s32.totalorder %s27, 1
      %p197 = por %p195, %p196
      %p199 = scmp.ne.s32.totalorder %s184, %s198
      %p200 = scmp.eq.s32.totalorder %s27, 0
      %p201 = por %p199, %p200
      %s203 = sadd.s32 %s202, 1
      %p206 = scmp.eq.s32.totalorder %s21, 1
      %p207 = scmp.ne.s32.totalorder %s202, %s204
      %p208 = scmp.eq.s32.totalorder %s21, 0
      %p209 = por %p207, %p208
      %p210 = scmp.ne.s32.totalorder %s202, %s204
      %p211 = scmp.eq.s32.totalorder %s26, 1
      %p212 = por %p210, %p211
      %p213 = scmp.ne.s32.totalorder %s204, %s205
      %p214 = scmp.eq.s32.totalorder %s26, 0
      %p215 = por %p213, %p214
      %p216 = scmp.ne.s32.totalorder %s204, %s205
      %p217 = scmp.eq.s32.totalorder %s27, 1
      %p218 = por %p216, %p217
      %p220 = scmp.ne.s32.totalorder %s205, %s219
      %p221 = scmp.eq.s32.totalorder %s27, 0
      %p222 = por %p220, %p221
      %s224 = sadd.s32 %s223, 1
      %p227 = scmp.eq.s32.totalorder %s21, 1
      %p228 = scmp.ne.s32.totalorder %s223, %s225
      %p229 = scmp.eq.s32.totalorder %s21, 0
      %p230 = por %p228, %p229
      %p231 = scmp.ne.s32.totalorder %s223, %s225
      %p232 = scmp.eq.s32.totalorder %s26, 1
      %p233 = por %p231, %p232
      %p234 = scmp.ne.s32.totalorder %s225, %s226
      %p235 = scmp.eq.s32.totalorder %s26, 0
      %p236 = por %p234, %p235
      %p237 = scmp.ne.s32.totalorder %s225, %s226
      %p238 = scmp.eq.s32.totalorder %s27, 1
      %p239 = por %p237, %p238
      %p241 = scmp.ne.s32.totalorder %s226, %s240
      %p242 = scmp.eq.s32.totalorder %s27, 0
      %p243 = por %p241, %p242
      %s245 = sadd.s32 %s244, 1
      %p248 = scmp.eq.s32.totalorder %s21, 1
      %p249 = scmp.ne.s32.totalorder %s244, %s246
      %p250 = scmp.eq.s32.totalorder %s21, 0
      %p251 = por %p249, %p250
      %p252 = scmp.ne.s32.totalorder %s244, %s246
      %p253 = scmp.eq.s32.totalorder %s26, 1
      %p254 = por %p252, %p253
      %p255 = scmp.ne.s32.totalorder %s246, %s247
      %p256 = scmp.eq.s32.totalorder %s26, 0
      %p257 = por %p255, %p256
      %p258 = scmp.ne.s32.totalorder %s246, %s247
      %p259 = scmp.eq.s32.totalorder %s27, 1
      %p260 = por %p258, %p259
      %p262 = scmp.ne.s32.totalorder %s247, %s261
      %p263 = scmp.eq.s32.totalorder %s27, 0
      %p264 = por %p262, %p263
      %s266 = sadd.s32 %s265, 1
      %p269 = scmp.eq.s32.totalorder %s21, 1
      %p270 = scmp.ne.s32.totalorder %s265, %s267
      %p271 = scmp.eq.s32.totalorder %s21, 0
      %p272 = por %p270, %p271
      %p273 = scmp.ne.s32.totalorder %s265, %s267
      %p274 = scmp.eq.s32.totalorder %s26, 1
      %p275 = por %p273, %p274
      %p276 = scmp.ne.s32.totalorder %s267, %s268
      %p277 = scmp.eq.s32.totalorder %s26, 0
      %p278 = por %p276, %p277
      %p279 = scmp.ne.s32.totalorder %s267, %s268
      %p280 = scmp.eq.s32.totalorder %s27, 1
      %p281 = por %p279, %p280
      %p283 = scmp.ne.s32.totalorder %s268, %s282
      %p284 = scmp.eq.s32.totalorder %s27, 0
      %p285 = por %p283, %p284
      %s286 = ssub.s32 %s21, %s28
      %p287 = scmp.eq.s32.totalorder %s286, 0
      %s289 = sadd.s32 %s288, 1
      %s290 = scalar_select %p287, %s288, %s289
      %p293 = pneg %p287
      %p294 = scmp.eq.s32.totalorder %s21, 1
      %p295 = por %p293, %p294
      %p296 = scmp.ne.s32.totalorder %s288, %s291
      %p297 = scmp.eq.s32.totalorder %s21, 0
      %p298 = por %p296, %p297
      %p299 = scmp.ne.s32.totalorder %s288, %s291
      %p300 = scmp.eq.s32.totalorder %s26, 1
      %p301 = por %p299, %p300
      %p302 = scmp.ne.s32.totalorder %s291, %s292
      %p303 = scmp.eq.s32.totalorder %s26, 0
      %p304 = por %p302, %p303
      %p305 = scmp.ne.s32.totalorder %s291, %s292
      %p306 = scmp.eq.s32.totalorder %s27, 1
      %p307 = por %p305, %p306
      %p309 = scmp.ne.s32.totalorder %s292, %s308
      %p310 = scmp.eq.s32.totalorder %s27, 0
      %p311 = por %p309, %p310
      %p312 = scmp.le.s32.totalorder 1, %s21
      %p313 = scmp.lt.s32.totalorder %s21, 3
      %p314 = pnand %p312, %p313
      %p315 = pneg %p314
      // Predicated region
      $region9: #{bottleneck_forward.1} parent=5 // pred_check
        _
      $region10: #{bottleneck_forward.1} parent=5 // pred_check_branch
        %317 = sbr.rel (%p314) target = $region12
      $region11: #{bottleneck_forward.1} parent=5 // pred_region
        %s318 = ssub.s32 %s21, 1
        // Predicated region
        $region13: #{bottleneck_forward.1} parent=11 // pred_check
          %p319 = pneg %p68
        $region14: #{bottleneck_forward.1} parent=11 // pred_check_branch
          %321 = sbr.rel (%p319) target = $region16
        $region15: #{bottleneck_forward.1} parent=11 // pred_region
          _
        $region16: #{bottleneck_forward.1} parent=11 // pred_fallthru
          _
        // Predicated region
        $region17: #{bottleneck_forward.1} parent=11 // pred_check
          %p322 = pneg %p89
        $region18: #{bottleneck_forward.1} parent=11 // pred_check_branch
          %324 = sbr.rel (%p322) target = $region20
        $region19: #{bottleneck_forward.1} parent=11 // pred_region
          _
        $region20: #{bottleneck_forward.1} parent=11 // pred_fallthru
          _
        // Predicated region
        $region21: #{bottleneck_forward.1} parent=11 // pred_check
          %p325 = pneg %p110
        $region22: #{bottleneck_forward.1} parent=11 // pred_check_branch
          %327 = sbr.rel (%p325) target = $region24
        $region23: #{bottleneck_forward.1} parent=11 // pred_region
          _
        $region24: #{bottleneck_forward.1} parent=11 // pred_fallthru
          _
        // Predicated region
        $region25: #{bottleneck_forward.1} parent=11 // pred_check
          %p328 = pneg %p131
        $region26: #{bottleneck_forward.1} parent=11 // pred_check_branch
          %330 = sbr.rel (%p328) target = $region28
        $region27: #{bottleneck_forward.1} parent=11 // pred_region
          _
        $region28: #{bottleneck_forward.1} parent=11 // pred_fallthru
          _
        // Predicated region
        $region29: #{bottleneck_forward.1} parent=11 // pred_check
          %p331 = pneg %p152
        $region30: #{bottleneck_forward.1} parent=11 // pred_check_branch
          %333 = sbr.rel (%p331) target = $region32
        $region31: #{bottleneck_forward.1} parent=11 // pred_region
          _
        $region32: #{bottleneck_forward.1} parent=11 // pred_fallthru
          _
        // Predicated region
        $region33: #{bottleneck_forward.1} parent=11 // pred_check
          %p334 = pneg %p173
        $region34: #{bottleneck_forward.1} parent=11 // pred_check_branch
          %336 = sbr.rel (%p334) target = $region36
        $region35: #{bottleneck_forward.1} parent=11 // pred_region
          _
        $region36: #{bottleneck_forward.1} parent=11 // pred_fallthru
          _
        // Predicated region
        $region37: #{bottleneck_forward.1} parent=11 // pred_check
          %p337 = pneg %p194
        $region38: #{bottleneck_forward.1} parent=11 // pred_check_branch
          %339 = sbr.rel (%p337) target = $region40
        $region39: #{bottleneck_forward.1} parent=11 // pred_region
          _
        $region40: #{bottleneck_forward.1} parent=11 // pred_fallthru
          _
        // Predicated region
        $region41: #{bottleneck_forward.1} parent=11 // pred_check
          %p340 = pneg %p215
        $region42: #{bottleneck_forward.1} parent=11 // pred_check_branch
          %342 = sbr.rel (%p340) target = $region44
        $region43: #{bottleneck_forward.1} parent=11 // pred_region
          _
        $region44: #{bottleneck_forward.1} parent=11 // pred_fallthru
          _
        // Predicated region
        $region45: #{bottleneck_forward.1} parent=11 // pred_check
          %p343 = pneg %p236
        $region46: #{bottleneck_forward.1} parent=11 // pred_check_branch
          %345 = sbr.rel (%p343) target = $region48
        $region47: #{bottleneck_forward.1} parent=11 // pred_region
          _
        $region48: #{bottleneck_forward.1} parent=11 // pred_fallthru
          _
        // Predicated region
        $region49: #{bottleneck_forward.1} parent=11 // pred_check
          %p346 = pneg %p257
        $region50: #{bottleneck_forward.1} parent=11 // pred_check_branch
          %348 = sbr.rel (%p346) target = $region52
        $region51: #{bottleneck_forward.1} parent=11 // pred_region
          _
        $region52: #{bottleneck_forward.1} parent=11 // pred_fallthru
          _
        // Predicated region
        $region53: #{bottleneck_forward.1} parent=11 // pred_check
          %p349 = pneg %p278
        $region54: #{bottleneck_forward.1} parent=11 // pred_check_branch
          %351 = sbr.rel (%p349) target = $region56
        $region55: #{bottleneck_forward.1} parent=11 // pred_region
          _
        $region56: #{bottleneck_forward.1} parent=11 // pred_fallthru
          _
      $region12: #{bottleneck_forward.1} parent=5 // pred_fallthru
        _
      %p352 = scmp.lt.s32.totalorder %s21, 2
      // Predicated region
      $region57: #{bottleneck_forward.1} parent=5 // pred_check
        %p353 = pneg %p352
      $region58: #{bottleneck_forward.1} parent=5 // pred_check_branch
        %355 = sbr.rel (%p353) target = $region60
      $region59: #{bottleneck_forward.1} parent=5 // pred_region
        // Predicated region
        $region61: #{bottleneck_forward.1} parent=59 // pred_check
          %p356 = pneg %p41
        $region62: #{bottleneck_forward.1} parent=59 // pred_check_branch
          %358 = sbr.rel (%p356) target = $region64
        $region63: #{bottleneck_forward.1} parent=59 // pred_region
          %p359 = scmp.lt.s32.totalorder %s21, 1
          %s360 = scalar_select %p359, %s21, 1
          %s361 = smul.addr %s360, 32
          %s362 = smul.addr %s361, 4
          %s363 = scalar_lea.vmem %s0, %s362
        $region64: #{bottleneck_forward.1} parent=59 // pred_fallthru
          _
      $region60: #{bottleneck_forward.1} parent=5 // pred_fallthru
        _
      %p364 = scmp.le.s32.totalorder 1, %s21
      %p365 = scmp.lt.s32.totalorder %s21, 3
      %p366 = pnand %p364, %p365
      %p367 = pneg %p366
      // Predicated region
      $region65: #{bottleneck_forward.1} parent=5 // pred_check
        _
      $region66: #{bottleneck_forward.1} parent=5 // pred_check_branch
        %369 = sbr.rel (%p366) target = $region68
      $region67: #{bottleneck_forward.1} parent=5 // pred_region
        %s370 = ssub.s32 %s21, 1
        %p371 = scmp.lt.s32.totalorder %s26, 1
        %s372 = scalar_select %p371, %s26, 1
        %s373 = smul.addr %s372, 32
        %s374 = smul.addr %s373, 4
        %s375 = scalar_lea.vmem %s0, %s374
        %p376 = pneg %p47
        %p377 = pneg %p44
        %p378 = pneg %p68
        %p379 = pneg %p65
        %p380 = pneg %p89
        %p381 = pneg %p86
        %p382 = pneg %p110
        %p383 = pneg %p107
        %p384 = pneg %p131
        %p385 = pneg %p128
        %p386 = pneg %p152
        %p387 = pneg %p149
        %p388 = pneg %p173
        %p389 = pneg %p170
        %p390 = pneg %p194
        %p391 = pneg %p191
        %p392 = pneg %p215
        %p393 = pneg %p212
        %p394 = pneg %p236
        %p395 = pneg %p233
        %p396 = pneg %p257
        %p397 = pneg %p254
        %p398 = pneg %p278
        %p399 = pneg %p275
        %p400 = pneg %p304
        %p401 = pneg %p301
        %s402 = sand.u32 %s291, 1
        %s403 = scalar_lea.sflag [#allocation5], %s402
        %s404 = sand.u32 %s291, 1
        %s405 = smul.addr %s404, 256
        %s406 = scalar_lea.vmem [#allocation4], %s405
        %p407 = scmp.lt.s32.totalorder %s26, 1
        %s408 = scalar_select %p407, %s26, 1
        %s409 = smul.addr %s408, 32
        %s410 = smul.addr %s409, 4
        %s411 = scalar_lea.vmem %s0, %s410
        %v413 = vld [vmem:[%s411] sm:$0xf]
        %v414 = vld [vmem:[%s411 + $0x4] sm:$0xf]
        %v415 = vld [vmem:[%s411 + $0x8] sm:$0xf]
        %v416 = vld [vmem:[%s411 + $0xc] sm:$0xf]
        %v417 = vld [vmem:[%s411 + $0x10] sm:$0xf]
        %v418 = vld [vmem:[%s411 + $0x14] sm:$0xf]
        %v419 = vld [vmem:[%s411 + $0x18] sm:$0xf]
        %v420 = vld [vmem:[%s411 + $0x1c] sm:$0xf]
        %v421 = vld [vmem:[%s411 + $0x20] sm:$0xf]
        %v422 = vld [vmem:[%s411 + $0x24] sm:$0xf]
        %v423 = vld [vmem:[%s411 + $0x28] sm:$0xf]
        %v424 = vld [vmem:[%s411 + $0x2c] sm:$0xf]
        %v425 = vld [vmem:[%s411 + $0x30] sm:$0xf]
        %v426 = vld [vmem:[%s411 + $0x34] sm:$0xf]
        %v427 = vld [vmem:[%s411 + $0x38] sm:$0xf]
        %v428 = vld [vmem:[%s411 + $0x3c] sm:$0xf]
        %v429 = vld [vmem:[%s411 + $0x40] sm:$0xf]
        %v430 = vld [vmem:[%s411 + $0x44] sm:$0xf]
        %v431 = vld [vmem:[%s411 + $0x48] sm:$0xf]
        %v432 = vld [vmem:[%s411 + $0x4c] sm:$0xf]
        %v433 = vld [vmem:[%s411 + $0x50] sm:$0xf]
        %v434 = vld [vmem:[%s411 + $0x54] sm:$0xf]
        %v435 = vld [vmem:[%s411 + $0x58] sm:$0xf]
        %v436 = vld [vmem:[%s411 + $0x5c] sm:$0xf]
        %v437 = vld [vmem:[%s411 + $0x60] sm:$0xf]
        %v438 = vld [vmem:[%s411 + $0x64] sm:$0xf]
        %v439 = vld [vmem:[%s411 + $0x68] sm:$0xf]
        %v440 = vld [vmem:[%s411 + $0x6c] sm:$0xf]
        %v441 = vld [vmem:[%s411 + $0x70] sm:$0xf]
        %v442 = vld [vmem:[%s411 + $0x74] sm:$0xf]
        %v443 = vld [vmem:[%s411 + $0x78] sm:$0xf]
        %v444 = vld [vmem:[%s411 + $0x7c] sm:$0xf]
        %v445 = vld [vmem:[%s1] sm:$0xff]
        %v446 = vld [vmem:[%s1 + $0x8] sm:$0xff]
        %v447 = vld [vmem:[%s1 + $0x10] sm:$0xff]
        %v448 = vld [vmem:[%s1 + $0x18] sm:$0xff]
        %v449 = vld [vmem:[%s1 + $0x20] sm:$0xff]
        %v450 = vld [vmem:[%s1 + $0x28] sm:$0xff]
        %v451 = vld [vmem:[%s1 + $0x30] sm:$0xff]
        %v452 = vld [vmem:[%s1 + $0x38] sm:$0xff]
        %v485 = vunpack.c.l.b16 %v413
        %v486 = vunpack.c.l.b16 %v414
        %v487 = vunpack.c.l.b16 %v415
        %v488 = vunpack.c.l.b16 %v416
        %v489 = vunpack.c.l.b16 %v417
        %v490 = vunpack.c.l.b16 %v418
        %v491 = vunpack.c.l.b16 %v419
        %v492 = vunpack.c.l.b16 %v420
        %v493 = vunpack.c.l.b16 %v421
        %v494 = vunpack.c.l.b16 %v422
        %v495 = vunpack.c.l.b16 %v423
        %v496 = vunpack.c.l.b16 %v424
        %v497 = vunpack.c.l.b16 %v425
        %v498 = vunpack.c.l.b16 %v426
        %v499 = vunpack.c.l.b16 %v427
        %v500 = vunpack.c.l.b16 %v428
        %v501 = vunpack.c.l.b16 %v429
        %v502 = vunpack.c.l.b16 %v430
        %v503 = vunpack.c.l.b16 %v431
        %v504 = vunpack.c.l.b16 %v432
        %v505 = vunpack.c.l.b16 %v433
        %v506 = vunpack.c.l.b16 %v434
        %v507 = vunpack.c.l.b16 %v435
        %v508 = vunpack.c.l.b16 %v436
        %v509 = vunpack.c.l.b16 %v437
        %v510 = vunpack.c.l.b16 %v438
        %v511 = vunpack.c.l.b16 %v439
        %v512 = vunpack.c.l.b16 %v440
        %v513 = vunpack.c.l.b16 %v441
        %v514 = vunpack.c.l.b16 %v442
        %v515 = vunpack.c.l.b16 %v443
        %v516 = vunpack.c.l.b16 %v444
        %v517 = vpack.c.b16 %v486, %v485
        %v518 = vpack.c.b16 %v488, %v487
        %v519 = vpack.c.b16 %v490, %v489
        %v520 = vpack.c.b16 %v492, %v491
        %v521 = vpack.c.b16 %v494, %v493
        %v522 = vpack.c.b16 %v496, %v495
        %v523 = vpack.c.b16 %v498, %v497
        %v524 = vpack.c.b16 %v500, %v499
        %v525 = vpack.c.b16 %v502, %v501
        %v526 = vpack.c.b16 %v504, %v503
        %v527 = vpack.c.b16 %v506, %v505
        %v528 = vpack.c.b16 %v508, %v507
        %v529 = vpack.c.b16 %v510, %v509
        %v530 = vpack.c.b16 %v512, %v511
        %v531 = vpack.c.b16 %v514, %v513
        %v532 = vpack.c.b16 %v516, %v515
        %v541 = vunpack.c.l.b16 %v445
        %v542 = vunpack.c.h.b16 %v445
        %v543 = vunpack.c.l.b16 %v446
        %v544 = vunpack.c.h.b16 %v446
        %v545 = vunpack.c.l.b16 %v447
        %v546 = vunpack.c.h.b16 %v447
        %v547 = vunpack.c.l.b16 %v448
        %v548 = vunpack.c.h.b16 %v448
        %v549 = vunpack.c.l.b16 %v449
        %v550 = vunpack.c.h.b16 %v449
        %v551 = vunpack.c.l.b16 %v450
        %v552 = vunpack.c.h.b16 %v450
        %v553 = vunpack.c.l.b16 %v451
        %v554 = vunpack.c.h.b16 %v451
        %v555 = vunpack.c.l.b16 %v452
        %v556 = vunpack.c.h.b16 %v452
        %v557 = vpack.c.b16 %v543, %v541
        %v558 = vpack.c.b16 %v544, %v542
        %v559 = vpack.c.b16 %v547, %v545
        %v560 = vpack.c.b16 %v548, %v546
        %v561 = vpack.c.b16 %v551, %v549
        %v562 = vpack.c.b16 %v552, %v550
        %v563 = vpack.c.b16 %v555, %v553
        %v564 = vpack.c.b16 %v556, %v554
        %vm573 = vcmask 523264
        %v575 = vsel %vm573, %v517, 0
        %v578 = vsel %vm573, %v518, 0
        %v581 = vsel %vm573, %v519, 0
        %v584 = vsel %vm573, %v520, 0
        %v587 = vsel %vm573, %v521, 0
        %v590 = vsel %vm573, %v522, 0
        %v593 = vsel %vm573, %v523, 0
        %v596 = vsel %vm573, %v524, 0
        %v599 = vsel %vm573, %v525, 0
        %v602 = vsel %vm573, %v526, 0
        %v605 = vsel %vm573, %v527, 0
        %v608 = vsel %vm573, %v528, 0
        %v611 = vsel %vm573, %v529, 0
        %v614 = vsel %vm573, %v530, 0
        %v617 = vsel %vm573, %v531, 0
        %v620 = vsel %vm573, %v532, 0
        %622 = vmatprep.subr.bf16.mxu0 0
        %623 = vmatpush1.bf16.msra.mxu0 0
        %624 = vmatprep.subr.bf16.mxu0 0
        %625 = vmatpush1.bf16.msra.mxu0 0
        %626 = vmatprep.subr.bf16.mxu0 0
        %627 = vmatpush1.bf16.msra.mxu0 0
        %628 = vmatprep.subr.bf16.mxu0 0
        %629 = vmatpush1.bf16.msra.mxu0 0
        %630 = vmatprep.subr.bf16.mxu0 %v564
        %631 = vmatpush1.bf16.msra.mxu0 %v563
        %632 = vmatprep.subr.bf16.mxu0 %v562
        %633 = vmatpush1.bf16.msra.mxu0 %v561
        %634 = vmatprep.subr.bf16.mxu0 %v560
        %635 = vmatpush1.bf16.msra.mxu0 %v559
        %636 = vmatprep.subr.bf16.mxu0 %v558
        %637 = vmatpush1.bf16.msra.mxu0 %v557
        %638 = vmatprep.subr.bf16.mxu0 0
        %639 = vmatpush2.bf16.msra.mxu0 0
        %640 = vmatprep.subr.bf16.mxu0 0
        %641 = vmatpush2.bf16.msra.mxu0 0
        %642 = vmatprep.subr.bf16.mxu0 0
        %643 = vmatpush2.bf16.msra.mxu0 0
        %644 = vmatprep.subr.bf16.mxu0 0
        %645 = vmatpush2.bf16.msra.mxu0 0
        %646 = vmatprep.subr.bf16.mxu0 0
        %647 = vmatpush2.bf16.msra.mxu0 0
        %648 = vmatprep.subr.bf16.mxu0 0
        %649 = vmatpush2.bf16.msra.mxu0 0
        %650 = vmatprep.subr.bf16.mxu0 0
        %651 = vmatpush2.bf16.msra.mxu0 0
        %652 = vmatprep.subr.bf16.mxu0 0
        %653 = vmatpush2.bf16.msra.mxu0 0
        %654 = vmatprep.mubr.bf16.mxu0 0
        %655 = vmatmul.mubr.bf16.gmra.mxu0 %v575
        %v656 = vpop.f32.mrf.mxu0
        %v657 = vadd.f32 0.0, %v656
        %v658 = vpop.f32.mrf.mxu0
        %v659 = vadd.f32 0.0, %v658
        %v660 = vpop.f32.mrf.mxu0
        %v661 = vadd.f32 0.0, %v660
        %v662 = vpop.f32.mrf.mxu0
        %v663 = vadd.f32 0.0, %v662
        %664 = vmatprep.mubr.bf16.mxu0 0
        %665 = vmatmul.mubr.bf16.gmra.mxu0 %v578
        %v666 = vpop.f32.mrf.mxu0
        %v667 = vadd.f32 0.0, %v666
        %v668 = vpop.f32.mrf.mxu0
        %v669 = vadd.f32 0.0, %v668
        %v670 = vpop.f32.mrf.mxu0
        %v671 = vadd.f32 0.0, %v670
        %v672 = vpop.f32.mrf.mxu0
        %v673 = vadd.f32 0.0, %v672
        %674 = vmatprep.mubr.bf16.mxu0 0
        %675 = vmatmul.mubr.bf16.gmra.mxu0 %v581
        %v676 = vpop.f32.mrf.mxu0
        %v677 = vadd.f32 0.0, %v676
        %v678 = vpop.f32.mrf.mxu0
        %v679 = vadd.f32 0.0, %v678
        %v680 = vpop.f32.mrf.mxu0
        %v681 = vadd.f32 0.0, %v680
        %v682 = vpop.f32.mrf.mxu0
        %v683 = vadd.f32 0.0, %v682
        %684 = vmatprep.mubr.bf16.mxu0 0
        %685 = vmatmul.mubr.bf16.gmra.mxu0 %v584
        %v686 = vpop.f32.mrf.mxu0
        %v687 = vadd.f32 0.0, %v686
        %v688 = vpop.f32.mrf.mxu0
        %v689 = vadd.f32 0.0, %v688
        %v690 = vpop.f32.mrf.mxu0
        %v691 = vadd.f32 0.0, %v690
        %v692 = vpop.f32.mrf.mxu0
        %v693 = vadd.f32 0.0, %v692
        %694 = vmatprep.mubr.bf16.mxu0 0
        %695 = vmatmul.mubr.bf16.gmra.mxu0 %v587
        %v696 = vpop.f32.mrf.mxu0
        %v697 = vadd.f32 0.0, %v696
        %v698 = vpop.f32.mrf.mxu0
        %v699 = vadd.f32 0.0, %v698
        %v700 = vpop.f32.mrf.mxu0
        %v701 = vadd.f32 0.0, %v700
        %v702 = vpop.f32.mrf.mxu0
        %v703 = vadd.f32 0.0, %v702
        %704 = vmatprep.mubr.bf16.mxu0 0
        %705 = vmatmul.mubr.bf16.gmra.mxu0 %v590
        %v706 = vpop.f32.mrf.mxu0
        %v707 = vadd.f32 0.0, %v706
        %v708 = vpop.f32.mrf.mxu0
        %v709 = vadd.f32 0.0, %v708
        %v710 = vpop.f32.mrf.mxu0
        %v711 = vadd.f32 0.0, %v710
        %v712 = vpop.f32.mrf.mxu0
        %v713 = vadd.f32 0.0, %v712
        %714 = vmatprep.mubr.bf16.mxu0 0
        %715 = vmatmul.mubr.bf16.gmra.mxu0 %v593
        %v716 = vpop.f32.mrf.mxu0
        %v717 = vadd.f32 0.0, %v716
        %v718 = vpop.f32.mrf.mxu0
        %v719 = vadd.f32 0.0, %v718
        %v720 = vpop.f32.mrf.mxu0
        %v721 = vadd.f32 0.0, %v720
        %v722 = vpop.f32.mrf.mxu0
        %v723 = vadd.f32 0.0, %v722
        %724 = vmatprep.mubr.bf16.mxu0 0
        %725 = vmatmul.mubr.bf16.gmra.mxu0 %v596
        %v726 = vpop.f32.mrf.mxu0
        %v727 = vadd.f32 0.0, %v726
        %v728 = vpop.f32.mrf.mxu0
        %v729 = vadd.f32 0.0, %v728
        %v730 = vpop.f32.mrf.mxu0
        %v731 = vadd.f32 0.0, %v730
        %v732 = vpop.f32.mrf.mxu0
        %v733 = vadd.f32 0.0, %v732
        %734 = vmatprep.mubr.bf16.mxu0 0
        %735 = vmatmul.mubr.bf16.gmra.mxu0 %v599
        %v736 = vpop.f32.mrf.mxu0
        %v737 = vadd.f32 0.0, %v736
        %v738 = vpop.f32.mrf.mxu0
        %v739 = vadd.f32 0.0, %v738
        %v740 = vpop.f32.mrf.mxu0
        %v741 = vadd.f32 0.0, %v740
        %v742 = vpop.f32.mrf.mxu0
        %v743 = vadd.f32 0.0, %v742
        %744 = vmatprep.mubr.bf16.mxu0 0
        %745 = vmatmul.mubr.bf16.gmra.mxu0 %v602
        %v746 = vpop.f32.mrf.mxu0
        %v747 = vadd.f32 0.0, %v746
        %v748 = vpop.f32.mrf.mxu0
        %v749 = vadd.f32 0.0, %v748
        %v750 = vpop.f32.mrf.mxu0
        %v751 = vadd.f32 0.0, %v750
        %v752 = vpop.f32.mrf.mxu0
        %v753 = vadd.f32 0.0, %v752
        %754 = vmatprep.mubr.bf16.mxu0 0
        %755 = vmatmul.mubr.bf16.gmra.mxu0 %v605
        %v756 = vpop.f32.mrf.mxu0
        %v757 = vadd.f32 0.0, %v756
        %v758 = vpop.f32.mrf.mxu0
        %v759 = vadd.f32 0.0, %v758
        %v760 = vpop.f32.mrf.mxu0
        %v761 = vadd.f32 0.0, %v760
        %v762 = vpop.f32.mrf.mxu0
        %v763 = vadd.f32 0.0, %v762
        %764 = vmatprep.mubr.bf16.mxu0 0
        %765 = vmatmul.mubr.bf16.gmra.mxu0 %v608
        %v766 = vpop.f32.mrf.mxu0
        %v767 = vadd.f32 0.0, %v766
        %v768 = vpop.f32.mrf.mxu0
        %v769 = vadd.f32 0.0, %v768
        %v770 = vpop.f32.mrf.mxu0
        %v771 = vadd.f32 0.0, %v770
        %v772 = vpop.f32.mrf.mxu0
        %v773 = vadd.f32 0.0, %v772
        %774 = vmatprep.mubr.bf16.mxu0 0
        %775 = vmatmul.mubr.bf16.gmra.mxu0 %v611
        %v776 = vpop.f32.mrf.mxu0
        %v777 = vadd.f32 0.0, %v776
        %v778 = vpop.f32.mrf.mxu0
        %v779 = vadd.f32 0.0, %v778
        %v780 = vpop.f32.mrf.mxu0
        %v781 = vadd.f32 0.0, %v780
        %v782 = vpop.f32.mrf.mxu0
        %v783 = vadd.f32 0.0, %v782
        %784 = vmatprep.mubr.bf16.mxu0 0
        %785 = vmatmul.mubr.bf16.gmra.mxu0 %v614
        %v786 = vpop.f32.mrf.mxu0
        %v787 = vadd.f32 0.0, %v786
        %v788 = vpop.f32.mrf.mxu0
        %v789 = vadd.f32 0.0, %v788
        %v790 = vpop.f32.mrf.mxu0
        %v791 = vadd.f32 0.0, %v790
        %v792 = vpop.f32.mrf.mxu0
        %v793 = vadd.f32 0.0, %v792
        %794 = vmatprep.mubr.bf16.mxu0 0
        %795 = vmatmul.mubr.bf16.gmra.mxu0 %v617
        %v796 = vpop.f32.mrf.mxu0
        %v797 = vadd.f32 0.0, %v796
        %v798 = vpop.f32.mrf.mxu0
        %v799 = vadd.f32 0.0, %v798
        %v800 = vpop.f32.mrf.mxu0
        %v801 = vadd.f32 0.0, %v800
        %v802 = vpop.f32.mrf.mxu0
        %v803 = vadd.f32 0.0, %v802
        %804 = vmatprep.mubr.bf16.mxu0 0
        %805 = vmatmul.mubr.bf16.gmra.mxu0 %v620
        %v806 = vpop.f32.mrf.mxu0
        %v807 = vadd.f32 0.0, %v806
        %v808 = vpop.f32.mrf.mxu0
        %v809 = vadd.f32 0.0, %v808
        %v810 = vpop.f32.mrf.mxu0
        %v811 = vadd.f32 0.0, %v810
        %v812 = vpop.f32.mrf.mxu0
        %v813 = vadd.f32 0.0, %v812
        %814 = vdwg.mxu0
        %v815 = vld [vmem:[%s10] sm:$0x1]
        %v817 = vlaneseq
        %v818 = vshrl.u32 %v817, 7
        %v819 = vsub.s32 0, %v818
        %v820 = vrot.slane %v815, %v819
        %v822 = vmul.f32 %v657, %v820
        %v823 = vmul.f32 %v661, %v820
        %v824 = vmul.f32 %v667, %v820
        %v825 = vmul.f32 %v671, %v820
        %v826 = vmul.f32 %v677, %v820
        %v827 = vmul.f32 %v681, %v820
        %v828 = vmul.f32 %v687, %v820
        %v829 = vmul.f32 %v691, %v820
        %v830 = vmul.f32 %v697, %v820
        %v831 = vmul.f32 %v701, %v820
        %v832 = vmul.f32 %v707, %v820
        %v833 = vmul.f32 %v711, %v820
        %v834 = vmul.f32 %v717, %v820
        %v835 = vmul.f32 %v721, %v820
        %v836 = vmul.f32 %v727, %v820
        %v837 = vmul.f32 %v731, %v820
        %v838 = vmul.f32 %v737, %v820
        %v839 = vmul.f32 %v741, %v820
        %v840 = vmul.f32 %v747, %v820
        %v841 = vmul.f32 %v751, %v820
        %v842 = vmul.f32 %v757, %v820
        %v843 = vmul.f32 %v761, %v820
        %v844 = vmul.f32 %v767, %v820
        %v845 = vmul.f32 %v771, %v820
        %v846 = vmul.f32 %v777, %v820
        %v847 = vmul.f32 %v781, %v820
        %v848 = vmul.f32 %v787, %v820
        %v849 = vmul.f32 %v791, %v820
        %v850 = vmul.f32 %v797, %v820
        %v851 = vmul.f32 %v801, %v820
        %v852 = vmul.f32 %v807, %v820
        %v853 = vmul.f32 %v811, %v820
        %v854 = vld [vmem:[%s11] sm:$0x1]
        %v856 = vlaneseq
        %v857 = vshrl.u32 %v856, 7
        %v858 = vsub.s32 0, %v857
        %v859 = vrot.slane %v854, %v858
        %v861 = vadd.f32 %v822, %v859
        %v862 = vadd.f32 %v823, %v859
        %v863 = vadd.f32 %v824, %v859
        %v864 = vadd.f32 %v825, %v859
        %v865 = vadd.f32 %v826, %v859
        %v866 = vadd.f32 %v827, %v859
        %v867 = vadd.f32 %v828, %v859
        %v868 = vadd.f32 %v829, %v859
        %v869 = vadd.f32 %v830, %v859
        %v870 = vadd.f32 %v831, %v859
        %v871 = vadd.f32 %v832, %v859
        %v872 = vadd.f32 %v833, %v859
        %v873 = vadd.f32 %v834, %v859
        %v874 = vadd.f32 %v835, %v859
        %v875 = vadd.f32 %v836, %v859
        %v876 = vadd.f32 %v837, %v859
        %v877 = vadd.f32 %v838, %v859
        %v878 = vadd.f32 %v839, %v859
        %v879 = vadd.f32 %v840, %v859
        %v880 = vadd.f32 %v841, %v859
        %v881 = vadd.f32 %v842, %v859
        %v882 = vadd.f32 %v843, %v859
        %v883 = vadd.f32 %v844, %v859
        %v884 = vadd.f32 %v845, %v859
        %v885 = vadd.f32 %v846, %v859
        %v886 = vadd.f32 %v847, %v859
        %v887 = vadd.f32 %v848, %v859
        %v888 = vadd.f32 %v849, %v859
        %v889 = vadd.f32 %v850, %v859
        %v890 = vadd.f32 %v851, %v859
        %v891 = vadd.f32 %v852, %v859
        %v892 = vadd.f32 %v853, %v859
        %v893 = vld [vmem:[%s2] sm:$0x1]
        %v895 = vlaneseq
        %v896 = vshrl.u32 %v895, 7
        %v897 = vsub.s32 0, %v896
        %v898 = vrot.slane %v893, %v897
        %v900 = vmul.f32 %v659, %v898
        %v901 = vmul.f32 %v663, %v898
        %v902 = vmul.f32 %v669, %v898
        %v903 = vmul.f32 %v673, %v898
        %v904 = vmul.f32 %v679, %v898
        %v905 = vmul.f32 %v683, %v898
        %v906 = vmul.f32 %v689, %v898
        %v907 = vmul.f32 %v693, %v898
        %v908 = vmul.f32 %v699, %v898
        %v909 = vmul.f32 %v703, %v898
        %v910 = vmul.f32 %v709, %v898
        %v911 = vmul.f32 %v713, %v898
        %v912 = vmul.f32 %v719, %v898
        %v913 = vmul.f32 %v723, %v898
        %v914 = vmul.f32 %v729, %v898
        %v915 = vmul.f32 %v733, %v898
        %v916 = vmul.f32 %v739, %v898
        %v917 = vmul.f32 %v743, %v898
        %v918 = vmul.f32 %v749, %v898
        %v919 = vmul.f32 %v753, %v898
        %v920 = vmul.f32 %v759, %v898
        %v921 = vmul.f32 %v763, %v898
        %v922 = vmul.f32 %v769, %v898
        %v923 = vmul.f32 %v773, %v898
        %v924 = vmul.f32 %v779, %v898
        %v925 = vmul.f32 %v783, %v898
        %v926 = vmul.f32 %v789, %v898
        %v927 = vmul.f32 %v793, %v898
        %v928 = vmul.f32 %v799, %v898
        %v929 = vmul.f32 %v803, %v898
        %v930 = vmul.f32 %v809, %v898
        %v931 = vmul.f32 %v813, %v898
        %v932 = vld [vmem:[%s3] sm:$0x1]
        %v934 = vlaneseq
        %v935 = vshrl.u32 %v934, 7
        %v936 = vsub.s32 0, %v935
        %v937 = vrot.slane %v932, %v936
        %v939 = vadd.f32 %v900, %v937
        %v940 = vadd.f32 %v901, %v937
        %v941 = vadd.f32 %v902, %v937
        %v942 = vadd.f32 %v903, %v937
        %v943 = vadd.f32 %v904, %v937
        %v944 = vadd.f32 %v905, %v937
        %v945 = vadd.f32 %v906, %v937
        %v946 = vadd.f32 %v907, %v937
        %v947 = vadd.f32 %v908, %v937
        %v948 = vadd.f32 %v909, %v937
        %v949 = vadd.f32 %v910, %v937
        %v950 = vadd.f32 %v911, %v937
        %v951 = vadd.f32 %v912, %v937
        %v952 = vadd.f32 %v913, %v937
        %v953 = vadd.f32 %v914, %v937
        %v954 = vadd.f32 %v915, %v937
        %v955 = vadd.f32 %v916, %v937
        %v956 = vadd.f32 %v917, %v937
        %v957 = vadd.f32 %v918, %v937
        %v958 = vadd.f32 %v919, %v937
        %v959 = vadd.f32 %v920, %v937
        %v960 = vadd.f32 %v921, %v937
        %v961 = vadd.f32 %v922, %v937
        %v962 = vadd.f32 %v923, %v937
        %v963 = vadd.f32 %v924, %v937
        %v964 = vadd.f32 %v925, %v937
        %v965 = vadd.f32 %v926, %v937
        %v966 = vadd.f32 %v927, %v937
        %v967 = vadd.f32 %v928, %v937
        %v968 = vadd.f32 %v929, %v937
        %v969 = vadd.f32 %v930, %v937
        %v970 = vadd.f32 %v931, %v937
        %v971 = vmax.f32 %v939, 0.0
        %v972 = vmax.f32 %v940, 0.0
        %v973 = vmax.f32 %v941, 0.0
        %v974 = vmax.f32 %v942, 0.0
        %v975 = vmax.f32 %v943, 0.0
        %v976 = vmax.f32 %v944, 0.0
        %v977 = vmax.f32 %v945, 0.0
        %v978 = vmax.f32 %v946, 0.0
        %v979 = vmax.f32 %v947, 0.0
        %v980 = vmax.f32 %v948, 0.0
        %v981 = vmax.f32 %v949, 0.0
        %v982 = vmax.f32 %v950, 0.0
        %v983 = vmax.f32 %v951, 0.0
        %v984 = vmax.f32 %v952, 0.0
        %v985 = vmax.f32 %v953, 0.0
        %v986 = vmax.f32 %v954, 0.0
        %v987 = vmax.f32 %v955, 0.0
        %v988 = vmax.f32 %v956, 0.0
        %v989 = vmax.f32 %v957, 0.0
        %v990 = vmax.f32 %v958, 0.0
        %v991 = vmax.f32 %v959, 0.0
        %v992 = vmax.f32 %v960, 0.0
        %v993 = vmax.f32 %v961, 0.0
        %v994 = vmax.f32 %v962, 0.0
        %v995 = vmax.f32 %v963, 0.0
        %v996 = vmax.f32 %v964, 0.0
        %v997 = vmax.f32 %v965, 0.0
        %v998 = vmax.f32 %v966, 0.0
        %v999 = vmax.f32 %v967, 0.0
        %v1000 = vmax.f32 %v968, 0.0
        %v1001 = vmax.f32 %v969, 0.0
        %v1002 = vmax.f32 %v970, 0.0
        %vm1003 = vcmask 257024
        %1004 = vst.msk [vmem:[#allocation2] sm:$0xf] %vm1003, 0
        %1005 = vst.msk [vmem:[#allocation2 + $0x4] sm:$0xf] %vm1003, 0
        %vm1006 = vcmask 253952
        %1007 = vst.msk [vmem:[#allocation2 + $0x8] sm:$0x1] %vm1006, 0
        %s1008 = scalar_lea.vmem [#allocation2], 204
        %1009 = vst.msk [vmem:[%s1008] sm:$0xf] %vm1003, 0
        %1010 = vst.msk [vmem:[%s1008 + $0x4] sm:$0xf] %vm1003, 0
        %1011 = vst.msk [vmem:[%s1008 + $0x8] sm:$0x1] %vm1006, 0
        %vm1012 = vcmask 253952
        %vm1013 = vsmask.f32 256
        %vm1014 = vmand %vm1012, %vm1013
        %v1015 = vld [vmem:[#allocation2] sm:$0x1]
        %v1016 = vsel %vm1014, 0, %v1015
        %1017 = vst [vmem:[#allocation2] sm:$0x1] %v1016
        %v1018 = vld [vmem:[#allocation2 + $0xc] sm:$0x1]
        %v1019 = vsel %vm1014, 0, %v1018
        %1020 = vst [vmem:[#allocation2 + $0xc] sm:$0x1] %v1019
        %v1021 = vld [vmem:[#allocation2 + $0x18] sm:$0x1]
        %v1022 = vsel %vm1014, 0, %v1021
        %1023 = vst [vmem:[#allocation2 + $0x18] sm:$0x1] %v1022
        %v1024 = vld [vmem:[#allocation2 + $0x24] sm:$0x1]
        %v1025 = vsel %vm1014, 0, %v1024
        %1026 = vst [vmem:[#allocation2 + $0x24] sm:$0x1] %v1025
        %v1027 = vld [vmem:[#allocation2 + $0x30] sm:$0x1]
        %v1028 = vsel %vm1014, 0, %v1027
        %1029 = vst [vmem:[#allocation2 + $0x30] sm:$0x1] %v1028
        %v1030 = vld [vmem:[#allocation2 + $0x3c] sm:$0x1]
        %v1031 = vsel %vm1014, 0, %v1030
        %1032 = vst [vmem:[#allocation2 + $0x3c] sm:$0x1] %v1031
        %v1033 = vld [vmem:[#allocation2 + $0x48] sm:$0x1]
        %v1034 = vsel %vm1014, 0, %v1033
        %1035 = vst [vmem:[#allocation2 + $0x48] sm:$0x1] %v1034
        %v1036 = vld [vmem:[#allocation2 + $0x54] sm:$0x1]
        %v1037 = vsel %vm1014, 0, %v1036
        %1038 = vst [vmem:[#allocation2 + $0x54] sm:$0x1] %v1037
        %v1039 = vld [vmem:[#allocation2 + $0x60] sm:$0x1]
        %v1040 = vsel %vm1014, 0, %v1039
        %1041 = vst [vmem:[#allocation2 + $0x60] sm:$0x1] %v1040
        %v1042 = vld [vmem:[#allocation2 + $0x6c] sm:$0x1]
        %v1043 = vsel %vm1014, 0, %v1042
        %1044 = vst [vmem:[#allocation2 + $0x6c] sm:$0x1] %v1043
        %v1045 = vld [vmem:[#allocation2 + $0x78] sm:$0x1]
        %v1046 = vsel %vm1014, 0, %v1045
        %1047 = vst [vmem:[#allocation2 + $0x78] sm:$0x1] %v1046
        %v1048 = vld [vmem:[#allocation2 + $0x84] sm:$0x1]
        %v1049 = vsel %vm1014, 0, %v1048
        %1050 = vst [vmem:[#allocation2 + $0x84] sm:$0x1] %v1049
        %v1051 = vld [vmem:[#allocation2 + $0x90] sm:$0x1]
        %v1052 = vsel %vm1014, 0, %v1051
        %1053 = vst [vmem:[#allocation2 + $0x90] sm:$0x1] %v1052
        %v1054 = vld [vmem:[#allocation2 + $0x9c] sm:$0x1]
        %v1055 = vsel %vm1014, 0, %v1054
        %1056 = vst [vmem:[#allocation2 + $0x9c] sm:$0x1] %v1055
        %v1057 = vld [vmem:[#allocation2 + $0xa8] sm:$0x1]
        %v1058 = vsel %vm1014, 0, %v1057
        %1059 = vst [vmem:[#allocation2 + $0xa8] sm:$0x1] %v1058
        %v1060 = vld [vmem:[#allocation2 + $0xb4] sm:$0x1]
        %v1061 = vsel %vm1014, 0, %v1060
        %1062 = vst [vmem:[#allocation2 + $0xb4] sm:$0x1] %v1061
        %v1063 = vld [vmem:[#allocation2 + $0xc0] sm:$0x1]
        %v1064 = vsel %vm1014, 0, %v1063
        %1065 = vst [vmem:[#allocation2 + $0xc0] sm:$0x1] %v1064
        %v1066 = vld [vmem:[#allocation2 + $0xcc] sm:$0x1]
        %v1067 = vsel %vm1014, 0, %v1066
        %1068 = vst [vmem:[#allocation2 + $0xcc] sm:$0x1] %v1067
        %vm1069 = vsmask.f32 7938
        %vm1070 = vmand %vm1012, %vm1069
        %v1071 = vld [vmem:[#allocation2 + $0x8] sm:$0x1]
        %v1072 = vsel %vm1070, 0, %v1071
        %1073 = vst [vmem:[#allocation2 + $0x8] sm:$0x1] %v1072
        %v1074 = vld [vmem:[#allocation2 + $0x14] sm:$0x1]
        %v1075 = vsel %vm1070, 0, %v1074
        %1076 = vst [vmem:[#allocation2 + $0x14] sm:$0x1] %v1075
        %v1077 = vld [vmem:[#allocation2 + $0x20] sm:$0x1]
        %v1078 = vsel %vm1070, 0, %v1077
        %1079 = vst [vmem:[#allocation2 + $0x20] sm:$0x1] %v1078
        %v1080 = vld [vmem:[#allocation2 + $0x2c] sm:$0x1]
        %v1081 = vsel %vm1070, 0, %v1080
        %1082 = vst [vmem:[#allocation2 + $0x2c] sm:$0x1] %v1081
        %v1083 = vld [vmem:[#allocation2 + $0x38] sm:$0x1]
        %v1084 = vsel %vm1070, 0, %v1083
        %1085 = vst [vmem:[#allocation2 + $0x38] sm:$0x1] %v1084
        %v1086 = vld [vmem:[#allocation2 + $0x44] sm:$0x1]
        %v1087 = vsel %vm1070, 0, %v1086
        %1088 = vst [vmem:[#allocation2 + $0x44] sm:$0x1] %v1087
        %v1089 = vld [vmem:[#allocation2 + $0x50] sm:$0x1]
        %v1090 = vsel %vm1070, 0, %v1089
        %1091 = vst [vmem:[#allocation2 + $0x50] sm:$0x1] %v1090
        %v1092 = vld [vmem:[#allocation2 + $0x5c] sm:$0x1]
        %v1093 = vsel %vm1070, 0, %v1092
        %1094 = vst [vmem:[#allocation2 + $0x5c] sm:$0x1] %v1093
        %v1095 = vld [vmem:[#allocation2 + $0x68] sm:$0x1]
        %v1096 = vsel %vm1070, 0, %v1095
        %1097 = vst [vmem:[#allocation2 + $0x68] sm:$0x1] %v1096
        %v1098 = vld [vmem:[#allocation2 + $0x74] sm:$0x1]
        %v1099 = vsel %vm1070, 0, %v1098
        %1100 = vst [vmem:[#allocation2 + $0x74] sm:$0x1] %v1099
        %v1101 = vld [vmem:[#allocation2 + $0x80] sm:$0x1]
        %v1102 = vsel %vm1070, 0, %v1101
        %1103 = vst [vmem:[#allocation2 + $0x80] sm:$0x1] %v1102
        %v1104 = vld [vmem:[#allocation2 + $0x8c] sm:$0x1]
        %v1105 = vsel %vm1070, 0, %v1104
        %1106 = vst [vmem:[#allocation2 + $0x8c] sm:$0x1] %v1105
        %v1107 = vld [vmem:[#allocation2 + $0x98] sm:$0x1]
        %v1108 = vsel %vm1070, 0, %v1107
        %1109 = vst [vmem:[#allocation2 + $0x98] sm:$0x1] %v1108
        %v1110 = vld [vmem:[#allocation2 + $0xa4] sm:$0x1]
        %v1111 = vsel %vm1070, 0, %v1110
        %1112 = vst [vmem:[#allocation2 + $0xa4] sm:$0x1] %v1111
        %v1113 = vld [vmem:[#allocation2 + $0xb0] sm:$0x1]
        %v1114 = vsel %vm1070, 0, %v1113
        %1115 = vst [vmem:[#allocation2 + $0xb0] sm:$0x1] %v1114
        %v1116 = vld [vmem:[#allocation2 + $0xbc] sm:$0x1]
        %v1117 = vsel %vm1070, 0, %v1116
        %1118 = vst [vmem:[#allocation2 + $0xbc] sm:$0x1] %v1117
        %v1119 = vld [vmem:[#allocation2 + $0xc8] sm:$0x1]
        %v1120 = vsel %vm1070, 0, %v1119
        %1121 = vst [vmem:[#allocation2 + $0xc8] sm:$0x1] %v1120
        %v1122 = vld [vmem:[#allocation2 + $0xd4] sm:$0x1]
        %v1123 = vsel %vm1070, 0, %v1122
        %1124 = vst [vmem:[#allocation2 + $0xd4] sm:$0x1] %v1123
        %v1125 = vpack.c.bf16 %v972, %v971
        %v1126 = vpack.c.bf16 %v974, %v973
        %v1127 = vpack.c.bf16 %v976, %v975
        %v1128 = vpack.c.bf16 %v978, %v977
        %v1129 = vpack.c.bf16 %v980, %v979
        %v1130 = vpack.c.bf16 %v982, %v981
        %v1131 = vpack.c.bf16 %v984, %v983
        %v1132 = vpack.c.bf16 %v986, %v985
        %v1133 = vpack.c.bf16 %v988, %v987
        %v1134 = vpack.c.bf16 %v990, %v989
        %v1135 = vpack.c.bf16 %v992, %v991
        %v1136 = vpack.c.bf16 %v994, %v993
        %v1137 = vpack.c.bf16 %v996, %v995
        %v1138 = vpack.c.bf16 %v998, %v997
        %v1139 = vpack.c.bf16 %v1000, %v999
        %v1140 = vpack.c.bf16 %v1002, %v1001
        %v1157 = vunpack.c.l.b16 %v1125
        %v1158 = vunpack.c.h.b16 %v1125
        %v1159 = vunpack.c.l.b16 %v1126
        %v1160 = vunpack.c.h.b16 %v1126
        %v1161 = vunpack.c.l.b16 %v1127
        %v1162 = vunpack.c.h.b16 %v1127
        %v1163 = vunpack.c.l.b16 %v1128
        %v1164 = vunpack.c.h.b16 %v1128
        %v1165 = vunpack.c.l.b16 %v1129
        %v1166 = vunpack.c.h.b16 %v1129
        %v1167 = vunpack.c.l.b16 %v1130
        %v1168 = vunpack.c.h.b16 %v1130
        %v1169 = vunpack.c.l.b16 %v1131
        %v1170 = vunpack.c.h.b16 %v1131
        %v1171 = vunpack.c.l.b16 %v1132
        %v1172 = vunpack.c.h.b16 %v1132
        %v1173 = vunpack.c.l.b16 %v1133
        %v1174 = vunpack.c.h.b16 %v1133
        %v1175 = vunpack.c.l.b16 %v1134
        %v1176 = vunpack.c.h.b16 %v1134
        %v1177 = vunpack.c.l.b16 %v1135
        %v1178 = vunpack.c.h.b16 %v1135
        %v1179 = vunpack.c.l.b16 %v1136
        %v1180 = vunpack.c.h.b16 %v1136
        %v1181 = vunpack.c.l.b16 %v1137
        %v1182 = vunpack.c.h.b16 %v1137
        %v1183 = vunpack.c.l.b16 %v1138
        %v1184 = vunpack.c.h.b16 %v1138
        %v1185 = vunpack.c.l.b16 %v1139
        %v1186 = vunpack.c.h.b16 %v1139
        %v1187 = vunpack.c.l.b16 %v1140
        %v1188 = vunpack.c.h.b16 %v1140
        %v1189 = vpack.c.b16 %v1157, %v1157
        %v1190 = vpack.c.b16 %v1158, %v1158
        %v1191 = vpack.c.b16 %v1159, %v1159
        %v1192 = vpack.c.b16 %v1160, %v1160
        %v1193 = vpack.c.b16 %v1161, %v1161
        %v1194 = vpack.c.b16 %v1162, %v1162
        %v1195 = vpack.c.b16 %v1163, %v1163
        %v1196 = vpack.c.b16 %v1164, %v1164
        %v1197 = vpack.c.b16 %v1165, %v1165
        %v1198 = vpack.c.b16 %v1166, %v1166
        %v1199 = vpack.c.b16 %v1167, %v1167
        %v1200 = vpack.c.b16 %v1168, %v1168
        %v1201 = vpack.c.b16 %v1169, %v1169
        %v1202 = vpack.c.b16 %v1170, %v1170
        %v1203 = vpack.c.b16 %v1171, %v1171
        %v1204 = vpack.c.b16 %v1172, %v1172
        %v1205 = vpack.c.b16 %v1173, %v1173
        %v1206 = vpack.c.b16 %v1174, %v1174
        %v1207 = vpack.c.b16 %v1175, %v1175
        %v1208 = vpack.c.b16 %v1176, %v1176
        %v1209 = vpack.c.b16 %v1177, %v1177
        %v1210 = vpack.c.b16 %v1178, %v1178
        %v1211 = vpack.c.b16 %v1179, %v1179
        %v1212 = vpack.c.b16 %v1180, %v1180
        %v1213 = vpack.c.b16 %v1181, %v1181
        %v1214 = vpack.c.b16 %v1182, %v1182
        %v1215 = vpack.c.b16 %v1183, %v1183
        %v1216 = vpack.c.b16 %v1184, %v1184
        %v1217 = vpack.c.b16 %v1185, %v1185
        %v1218 = vpack.c.b16 %v1186, %v1186
        %v1219 = vpack.c.b16 %v1187, %v1187
        %v1220 = vpack.c.b16 %v1188, %v1188
        %vm1221 = vsmask.f32 4368
        %vm1222 = vmor %vm1013, %vm1221
        %v1224 = vshrl.u32 %v1189, 16
        %v1226 = vrot.slane %v1224, 7
        %v1227 = vshll.u32 %v1189, 16
        %v1229 = vor.u32 %v1226, %v1227
        %v1230 = vrot.slane %v1226, 4
        %v1232 = vshrl.u32 %v1190, 16
        %v1234 = vrot.slane %v1232, 7
        %v1235 = vshll.u32 %v1190, 16
        %v1237 = vor.u32 %v1234, %v1235
        %v1238 = vsel %vm1222, %v1230, %v1237
        %v1239 = vrot.slane %v1234, 4
        %v1241 = vshrl.u32 %v1191, 16
        %v1243 = vrot.slane %v1241, 7
        %v1244 = vshll.u32 %v1191, 16
        %v1246 = vor.u32 %v1243, %v1244
        %v1247 = vrot.slane %v1243, 4
        %v1249 = vshrl.u32 %v1192, 16
        %v1251 = vrot.slane %v1249, 7
        %v1252 = vshll.u32 %v1192, 16
        %v1254 = vor.u32 %v1251, %v1252
        %v1255 = vsel %vm1222, %v1247, %v1254
        %v1256 = vrot.slane %v1251, 4
        %v1258 = vshrl.u32 %v1193, 16
        %v1260 = vrot.slane %v1258, 7
        %v1261 = vshll.u32 %v1193, 16
        %v1263 = vor.u32 %v1260, %v1261
        %v1264 = vrot.slane %v1260, 4
        %v1266 = vshrl.u32 %v1194, 16
        %v1268 = vrot.slane %v1266, 7
        %v1269 = vshll.u32 %v1194, 16
        %v1271 = vor.u32 %v1268, %v1269
        %v1272 = vsel %vm1222, %v1264, %v1271
        %v1273 = vrot.slane %v1268, 4
        %v1275 = vshrl.u32 %v1195, 16
        %v1277 = vrot.slane %v1275, 7
        %v1278 = vshll.u32 %v1195, 16
        %v1280 = vor.u32 %v1277, %v1278
        %v1281 = vrot.slane %v1277, 4
        %v1283 = vshrl.u32 %v1196, 16
        %v1285 = vrot.slane %v1283, 7
        %v1286 = vshll.u32 %v1196, 16
        %v1288 = vor.u32 %v1285, %v1286
        %v1289 = vsel %vm1222, %v1281, %v1288
        %v1290 = vrot.slane %v1285, 4
        %v1292 = vshrl.u32 %v1197, 16
        %v1294 = vrot.slane %v1292, 7
        %v1295 = vshll.u32 %v1197, 16
        %v1297 = vor.u32 %v1294, %v1295
        %v1298 = vrot.slane %v1294, 4
        %v1300 = vshrl.u32 %v1198, 16
        %v1302 = vrot.slane %v1300, 7
        %v1303 = vshll.u32 %v1198, 16
        %v1305 = vor.u32 %v1302, %v1303
        %v1306 = vsel %vm1222, %v1298, %v1305
        %v1307 = vrot.slane %v1302, 4
        %v1309 = vshrl.u32 %v1199, 16
        %v1311 = vrot.slane %v1309, 7
        %v1312 = vshll.u32 %v1199, 16
        %v1314 = vor.u32 %v1311, %v1312
        %v1315 = vrot.slane %v1311, 4
        %v1317 = vshrl.u32 %v1200, 16
        %v1319 = vrot.slane %v1317, 7
        %v1320 = vshll.u32 %v1200, 16
        %v1322 = vor.u32 %v1319, %v1320
        %v1323 = vsel %vm1222, %v1315, %v1322
        %v1324 = vrot.slane %v1319, 4
        %v1326 = vshrl.u32 %v1201, 16
        %v1328 = vrot.slane %v1326, 7
        %v1329 = vshll.u32 %v1201, 16
        %v1331 = vor.u32 %v1328, %v1329
        %v1332 = vrot.slane %v1328, 4
        %v1334 = vshrl.u32 %v1202, 16
        %v1336 = vrot.slane %v1334, 7
        %v1337 = vshll.u32 %v1202, 16
        %v1339 = vor.u32 %v1336, %v1337
        %v1340 = vsel %vm1222, %v1332, %v1339
        %v1341 = vrot.slane %v1336, 4
        %v1343 = vshrl.u32 %v1203, 16
        %v1345 = vrot.slane %v1343, 7
        %v1346 = vshll.u32 %v1203, 16
        %v1348 = vor.u32 %v1345, %v1346
        %v1349 = vrot.slane %v1345, 4
        %v1351 = vshrl.u32 %v1204, 16
        %v1353 = vrot.slane %v1351, 7
        %v1354 = vshll.u32 %v1204, 16
        %v1356 = vor.u32 %v1353, %v1354
        %v1357 = vsel %vm1222, %v1349, %v1356
        %v1358 = vrot.slane %v1353, 4
        %v1360 = vshrl.u32 %v1205, 16
        %v1362 = vrot.slane %v1360, 7
        %v1363 = vshll.u32 %v1205, 16
        %v1365 = vor.u32 %v1362, %v1363
        %v1366 = vrot.slane %v1362, 4
        %v1368 = vshrl.u32 %v1206, 16
        %v1370 = vrot.slane %v1368, 7
        %v1371 = vshll.u32 %v1206, 16
        %v1373 = vor.u32 %v1370, %v1371
        %v1374 = vsel %vm1222, %v1366, %v1373
        %v1375 = vrot.slane %v1370, 4
        %v1377 = vshrl.u32 %v1207, 16
        %v1379 = vrot.slane %v1377, 7
        %v1380 = vshll.u32 %v1207, 16
        %v1382 = vor.u32 %v1379, %v1380
        %v1383 = vrot.slane %v1379, 4
        %v1385 = vshrl.u32 %v1208, 16
        %v1387 = vrot.slane %v1385, 7
        %v1388 = vshll.u32 %v1208, 16
        %v1390 = vor.u32 %v1387, %v1388
        %v1391 = vsel %vm1222, %v1383, %v1390
        %v1392 = vrot.slane %v1387, 4
        %v1394 = vshrl.u32 %v1209, 16
        %v1396 = vrot.slane %v1394, 7
        %v1397 = vshll.u32 %v1209, 16
        %v1399 = vor.u32 %v1396, %v1397
        %v1400 = vrot.slane %v1396, 4
        %v1402 = vshrl.u32 %v1210, 16
        %v1404 = vrot.slane %v1402, 7
        %v1405 = vshll.u32 %v1210, 16
        %v1407 = vor.u32 %v1404, %v1405
        %v1408 = vsel %vm1222, %v1400, %v1407
        %v1409 = vrot.slane %v1404, 4
        %v1411 = vshrl.u32 %v1211, 16
        %v1413 = vrot.slane %v1411, 7
        %v1414 = vshll.u32 %v1211, 16
        %v1416 = vor.u32 %v1413, %v1414
        %v1417 = vrot.slane %v1413, 4
        %v1419 = vshrl.u32 %v1212, 16
        %v1421 = vrot.slane %v1419, 7
        %v1422 = vshll.u32 %v1212, 16
        %v1424 = vor.u32 %v1421, %v1422
        %v1425 = vsel %vm1222, %v1417, %v1424
        %v1426 = vrot.slane %v1421, 4
        %v1428 = vshrl.u32 %v1213, 16
        %v1430 = vrot.slane %v1428, 7
        %v1431 = vshll.u32 %v1213, 16
        %v1433 = vor.u32 %v1430, %v1431
        %v1434 = vrot.slane %v1430, 4
        %v1436 = vshrl.u32 %v1214, 16
        %v1438 = vrot.slane %v1436, 7
        %v1439 = vshll.u32 %v1214, 16
        %v1441 = vor.u32 %v1438, %v1439
        %v1442 = vsel %vm1222, %v1434, %v1441
        %v1443 = vrot.slane %v1438, 4
        %v1445 = vshrl.u32 %v1215, 16
        %v1447 = vrot.slane %v1445, 7
        %v1448 = vshll.u32 %v1215, 16
        %v1450 = vor.u32 %v1447, %v1448
        %v1451 = vrot.slane %v1447, 4
        %v1453 = vshrl.u32 %v1216, 16
        %v1455 = vrot.slane %v1453, 7
        %v1456 = vshll.u32 %v1216, 16
        %v1458 = vor.u32 %v1455, %v1456
        %v1459 = vsel %vm1222, %v1451, %v1458
        %v1460 = vrot.slane %v1455, 4
        %v1462 = vshrl.u32 %v1217, 16
        %v1464 = vrot.slane %v1462, 7
        %v1465 = vshll.u32 %v1217, 16
        %v1467 = vor.u32 %v1464, %v1465
        %v1468 = vrot.slane %v1464, 4
        %v1470 = vshrl.u32 %v1218, 16
        %v1472 = vrot.slane %v1470, 7
        %v1473 = vshll.u32 %v1218, 16
        %v1475 = vor.u32 %v1472, %v1473
        %v1476 = vsel %vm1222, %v1468, %v1475
        %v1477 = vrot.slane %v1472, 4
        %v1479 = vshrl.u32 %v1219, 16
        %v1481 = vrot.slane %v1479, 7
        %v1482 = vshll.u32 %v1219, 16
        %v1484 = vor.u32 %v1481, %v1482
        %v1485 = vrot.slane %v1481, 4
        %v1487 = vshrl.u32 %v1220, 16
        %v1489 = vrot.slane %v1487, 7
        %v1490 = vshll.u32 %v1220, 16
        %v1492 = vor.u32 %v1489, %v1490
        %v1493 = vsel %vm1222, %v1485, %v1492
        %v1494 = vrot.slane %v1489, 4
        %s1543 = scalar_lea.vmem [#allocation2], 12
        %vm1544 = vcmask 257024
        %vm1545 = vmand %vm1544, %vm1069
        %v1546 = vld [vmem:[%s1543] sm:$0xf]
        %v1547 = vsel %vm1545, %v1229, %v1546
        %1548 = vst [vmem:[%s1543] sm:$0xf] %v1547
        %1549 = vst.msk [vmem:[%s1543 + $0x4] sm:$0xf] %vm1003, %v1238
        %v1550 = vld [vmem:[%s1543 + $0x8] sm:$0x1]
        %v1551 = vsel %vm1014, %v1239, %v1550
        %1552 = vst [vmem:[%s1543 + $0x8] sm:$0x1] %v1551
        %v1553 = vld [vmem:[%s1543 + $0xc] sm:$0xf]
        %v1554 = vsel %vm1545, %v1246, %v1553
        %1555 = vst [vmem:[%s1543 + $0xc] sm:$0xf] %v1554
        %1556 = vst.msk [vmem:[%s1543 + $0x10] sm:$0xf] %vm1003, %v1255
        %v1557 = vld [vmem:[%s1543 + $0x14] sm:$0x1]
        %v1558 = vsel %vm1014, %v1256, %v1557
        %1559 = vst [vmem:[%s1543 + $0x14] sm:$0x1] %v1558
        %v1560 = vld [vmem:[%s1543 + $0x18] sm:$0xf]
        %v1561 = vsel %vm1545, %v1263, %v1560
        %1562 = vst [vmem:[%s1543 + $0x18] sm:$0xf] %v1561
        %1563 = vst.msk [vmem:[%s1543 + $0x1c] sm:$0xf] %vm1003, %v1272
        %v1564 = vld [vmem:[%s1543 + $0x20] sm:$0x1]
        %v1565 = vsel %vm1014, %v1273, %v1564
        %1566 = vst [vmem:[%s1543 + $0x20] sm:$0x1] %v1565
        %v1567 = vld [vmem:[%s1543 + $0x24] sm:$0xf]
        %v1568 = vsel %vm1545, %v1280, %v1567
        %1569 = vst [vmem:[%s1543 + $0x24] sm:$0xf] %v1568
        %1570 = vst.msk [vmem:[%s1543 + $0x28] sm:$0xf] %vm1003, %v1289
        %v1571 = vld [vmem:[%s1543 + $0x2c] sm:$0x1]
        %v1572 = vsel %vm1014, %v1290, %v1571
        %1573 = vst [vmem:[%s1543 + $0x2c] sm:$0x1] %v1572
        %v1574 = vld [vmem:[%s1543 + $0x30] sm:$0xf]
        %v1575 = vsel %vm1545, %v1297, %v1574
        %1576 = vst [vmem:[%s1543 + $0x30] sm:$0xf] %v1575
        %1577 = vst.msk [vmem:[%s1543 + $0x34] sm:$0xf] %vm1003, %v1306
        %v1578 = vld [vmem:[%s1543 + $0x38] sm:$0x1]
        %v1579 = vsel %vm1014, %v1307, %v1578
        %1580 = vst [vmem:[%s1543 + $0x38] sm:$0x1] %v1579
        %v1581 = vld [vmem:[%s1543 + $0x3c] sm:$0xf]
        %v1582 = vsel %vm1545, %v1314, %v1581
        %1583 = vst [vmem:[%s1543 + $0x3c] sm:$0xf] %v1582
        %1584 = vst.msk [vmem:[%s1543 + $0x40] sm:$0xf] %vm1003, %v1323
        %v1585 = vld [vmem:[%s1543 + $0x44] sm:$0x1]
        %v1586 = vsel %vm1014, %v1324, %v1585
        %1587 = vst [vmem:[%s1543 + $0x44] sm:$0x1] %v1586
        %v1588 = vld [vmem:[%s1543 + $0x48] sm:$0xf]
        %v1589 = vsel %vm1545, %v1331, %v1588
        %1590 = vst [vmem:[%s1543 + $0x48] sm:$0xf] %v1589
        %1591 = vst.msk [vmem:[%s1543 + $0x4c] sm:$0xf] %vm1003, %v1340
        %v1592 = vld [vmem:[%s1543 + $0x50] sm:$0x1]
        %v1593 = vsel %vm1014, %v1341, %v1592
        %1594 = vst [vmem:[%s1543 + $0x50] sm:$0x1] %v1593
        %v1595 = vld [vmem:[%s1543 + $0x54] sm:$0xf]
        %v1596 = vsel %vm1545, %v1348, %v1595
        %1597 = vst [vmem:[%s1543 + $0x54] sm:$0xf] %v1596
        %1598 = vst.msk [vmem:[%s1543 + $0x58] sm:$0xf] %vm1003, %v1357
        %v1599 = vld [vmem:[%s1543 + $0x5c] sm:$0x1]
        %v1600 = vsel %vm1014, %v1358, %v1599
        %1601 = vst [vmem:[%s1543 + $0x5c] sm:$0x1] %v1600
        %v1602 = vld [vmem:[%s1543 + $0x60] sm:$0xf]
        %v1603 = vsel %vm1545, %v1365, %v1602
        %1604 = vst [vmem:[%s1543 + $0x60] sm:$0xf] %v1603
        %1605 = vst.msk [vmem:[%s1543 + $0x64] sm:$0xf] %vm1003, %v1374
        %v1606 = vld [vmem:[%s1543 + $0x68] sm:$0x1]
        %v1607 = vsel %vm1014, %v1375, %v1606
        %1608 = vst [vmem:[%s1543 + $0x68] sm:$0x1] %v1607
        %v1609 = vld [vmem:[%s1543 + $0x6c] sm:$0xf]
        %v1610 = vsel %vm1545, %v1382, %v1609
        %1611 = vst [vmem:[%s1543 + $0x6c] sm:$0xf] %v1610
        %1612 = vst.msk [vmem:[%s1543 + $0x70] sm:$0xf] %vm1003, %v1391
        %v1613 = vld [vmem:[%s1543 + $0x74] sm:$0x1]
        %v1614 = vsel %vm1014, %v1392, %v1613
        %1615 = vst [vmem:[%s1543 + $0x74] sm:$0x1] %v1614
        %v1616 = vld [vmem:[%s1543 + $0x78] sm:$0xf]
        %v1617 = vsel %vm1545, %v1399, %v1616
        %1618 = vst [vmem:[%s1543 + $0x78] sm:$0xf] %v1617
        %1619 = vst.msk [vmem:[%s1543 + $0x7c] sm:$0xf] %vm1003, %v1408
        %v1620 = vld [vmem:[%s1543 + $0x80] sm:$0x1]
        %v1621 = vsel %vm1014, %v1409, %v1620
        %1622 = vst [vmem:[%s1543 + $0x80] sm:$0x1] %v1621
        %v1623 = vld [vmem:[%s1543 + $0x84] sm:$0xf]
        %v1624 = vsel %vm1545, %v1416, %v1623
        %1625 = vst [vmem:[%s1543 + $0x84] sm:$0xf] %v1624
        %1626 = vst.msk [vmem:[%s1543 + $0x88] sm:$0xf] %vm1003, %v1425
        %v1627 = vld [vmem:[%s1543 + $0x8c] sm:$0x1]
        %v1628 = vsel %vm1014, %v1426, %v1627
        %1629 = vst [vmem:[%s1543 + $0x8c] sm:$0x1] %v1628
        %v1630 = vld [vmem:[%s1543 + $0x90] sm:$0xf]
        %v1631 = vsel %vm1545, %v1433, %v1630
        %1632 = vst [vmem:[%s1543 + $0x90] sm:$0xf] %v1631
        %1633 = vst.msk [vmem:[%s1543 + $0x94] sm:$0xf] %vm1003, %v1442
        %v1634 = vld [vmem:[%s1543 + $0x98] sm:$0x1]
        %v1635 = vsel %vm1014, %v1443, %v1634
        %1636 = vst [vmem:[%s1543 + $0x98] sm:$0x1] %v1635
        %v1637 = vld [vmem:[%s1543 + $0x9c] sm:$0xf]
        %v1638 = vsel %vm1545, %v1450, %v1637
        %1639 = vst [vmem:[%s1543 + $0x9c] sm:$0xf] %v1638
        %1640 = vst.msk [vmem:[%s1543 + $0xa0] sm:$0xf] %vm1003, %v1459
        %v1641 = vld [vmem:[%s1543 + $0xa4] sm:$0x1]
        %v1642 = vsel %vm1014, %v1460, %v1641
        %1643 = vst [vmem:[%s1543 + $0xa4] sm:$0x1] %v1642
        %v1644 = vld [vmem:[%s1543 + $0xa8] sm:$0xf]
        %v1645 = vsel %vm1545, %v1467, %v1644
        %1646 = vst [vmem:[%s1543 + $0xa8] sm:$0xf] %v1645
        %1647 = vst.msk [vmem:[%s1543 + $0xac] sm:$0xf] %vm1003, %v1476
        %v1648 = vld [vmem:[%s1543 + $0xb0] sm:$0x1]
        %v1649 = vsel %vm1014, %v1477, %v1648
        %1650 = vst [vmem:[%s1543 + $0xb0] sm:$0x1] %v1649
        %v1651 = vld [vmem:[%s1543 + $0xb4] sm:$0xf]
        %v1652 = vsel %vm1545, %v1484, %v1651
        %1653 = vst [vmem:[%s1543 + $0xb4] sm:$0xf] %v1652
        %1654 = vst.msk [vmem:[%s1543 + $0xb8] sm:$0xf] %vm1003, %v1493
        %v1655 = vld [vmem:[%s1543 + $0xbc] sm:$0x1]
        %v1656 = vsel %vm1014, %v1494, %v1655
        %1657 = vst [vmem:[%s1543 + $0xbc] sm:$0x1] %v1656
        %v1658 = vld [vmem:[#allocation2] sm:$0xf]
        %v1659 = vld [vmem:[#allocation2 + $0x4] sm:$0xf]
        %v1660 = vld [vmem:[#allocation2 + $0xc] sm:$0xf]
        %v1661 = vld [vmem:[#allocation2 + $0x10] sm:$0xf]
        %v1662 = vld [vmem:[#allocation2 + $0x18] sm:$0xf]
        %v1663 = vld [vmem:[#allocation2 + $0x1c] sm:$0xf]
        %v1664 = vld [vmem:[#allocation2 + $0x24] sm:$0xf]
        %v1665 = vld [vmem:[#allocation2 + $0x28] sm:$0xf]
        %v1666 = vld [vmem:[#allocation2 + $0x30] sm:$0xf]
        %v1667 = vld [vmem:[#allocation2 + $0x34] sm:$0xf]
        %v1668 = vld [vmem:[#allocation2 + $0x3c] sm:$0xf]
        %v1669 = vld [vmem:[#allocation2 + $0x40] sm:$0xf]
        %v1670 = vld [vmem:[#allocation2 + $0x48] sm:$0xf]
        %v1671 = vld [vmem:[#allocation2 + $0x4c] sm:$0xf]
        %v1672 = vld [vmem:[#allocation2 + $0x54] sm:$0xf]
        %v1673 = vld [vmem:[#allocation2 + $0x58] sm:$0xf]
        %v1674 = vld [vmem:[#allocation2 + $0x60] sm:$0xf]
        %v1675 = vld [vmem:[#allocation2 + $0x64] sm:$0xf]
        %v1676 = vld [vmem:[#allocation2 + $0x6c] sm:$0xf]
        %v1677 = vld [vmem:[#allocation2 + $0x70] sm:$0xf]
        %v1678 = vld [vmem:[#allocation2 + $0x78] sm:$0xf]
        %v1679 = vld [vmem:[#allocation2 + $0x7c] sm:$0xf]
        %v1680 = vld [vmem:[#allocation2 + $0x84] sm:$0xf]
        %v1681 = vld [vmem:[#allocation2 + $0x88] sm:$0xf]
        %v1682 = vld [vmem:[#allocation2 + $0x90] sm:$0xf]
        %v1683 = vld [vmem:[#allocation2 + $0x94] sm:$0xf]
        %v1684 = vld [vmem:[#allocation2 + $0x9c] sm:$0xf]
        %v1685 = vld [vmem:[#allocation2 + $0xa0] sm:$0xf]
        %v1686 = vld [vmem:[#allocation2 + $0xa8] sm:$0xf]
        %v1687 = vld [vmem:[#allocation2 + $0xac] sm:$0xf]
        %v1688 = vld [vmem:[#allocation2 + $0xb4] sm:$0xf]
        %v1689 = vld [vmem:[#allocation2 + $0xb8] sm:$0xf]
        %1690 = vst.msk [vmem:[#allocation3] sm:$0xf] %vm1003, %v1658
        %1691 = vst.msk [vmem:[#allocation3 + $0xc] sm:$0xf] %vm1003, %v1659
        %1692 = vst.msk [vmem:[#allocation3 + $0x18] sm:$0xf] %vm1003, %v1660
        %1693 = vst.msk [vmem:[#allocation3 + $0x24] sm:$0xf] %vm1003, %v1661
        %1694 = vst.msk [vmem:[#allocation3 + $0x30] sm:$0xf] %vm1003, %v1662
        %1695 = vst.msk [vmem:[#allocation3 + $0x3c] sm:$0xf] %vm1003, %v1663
        %1696 = vst.msk [vmem:[#allocation3 + $0x48] sm:$0xf] %vm1003, %v1664
        %1697 = vst.msk [vmem:[#allocation3 + $0x54] sm:$0xf] %vm1003, %v1665
        %1698 = vst.msk [vmem:[#allocation3 + $0x60] sm:$0xf] %vm1003, %v1666
        %1699 = vst.msk [vmem:[#allocation3 + $0x6c] sm:$0xf] %vm1003, %v1667
        %1700 = vst.msk [vmem:[#allocation3 + $0x78] sm:$0xf] %vm1003, %v1668
        %1701 = vst.msk [vmem:[#allocation3 + $0x84] sm:$0xf] %vm1003, %v1669
        %1702 = vst.msk [vmem:[#allocation3 + $0x90] sm:$0xf] %vm1003, %v1670
        %1703 = vst.msk [vmem:[#allocation3 + $0x9c] sm:$0xf] %vm1003, %v1671
        %1704 = vst.msk [vmem:[#allocation3 + $0xa8] sm:$0xf] %vm1003, %v1672
        %1705 = vst.msk [vmem:[#allocation3 + $0xb4] sm:$0xf] %vm1003, %v1673
        %1706 = vst.msk [vmem:[#allocation3 + $0xc0] sm:$0xf] %vm1003, %v1674
        %1707 = vst.msk [vmem:[#allocation3 + $0xcc] sm:$0xf] %vm1003, %v1675
        %1708 = vst.msk [vmem:[#allocation3 + $0xd8] sm:$0xf] %vm1003, %v1676
        %1709 = vst.msk [vmem:[#allocation3 + $0xe4] sm:$0xf] %vm1003, %v1677
        %1710 = vst.msk [vmem:[#allocation3 + $0xf0] sm:$0xf] %vm1003, %v1678
        %1711 = vst.msk [vmem:[#allocation3 + $0xfc] sm:$0xf] %vm1003, %v1679
        %1712 = vst.msk [vmem:[#allocation3 + $0x108] sm:$0xf] %vm1003, %v1680
        %1713 = vst.msk [vmem:[#allocation3 + $0x114] sm:$0xf] %vm1003, %v1681
        %1714 = vst.msk [vmem:[#allocation3 + $0x120] sm:$0xf] %vm1003, %v1682
        %1715 = vst.msk [vmem:[#allocation3 + $0x12c] sm:$0xf] %vm1003, %v1683
        %1716 = vst.msk [vmem:[#allocation3 + $0x138] sm:$0xf] %vm1003, %v1684
        %1717 = vst.msk [vmem:[#allocation3 + $0x144] sm:$0xf] %vm1003, %v1685
        %1718 = vst.msk [vmem:[#allocation3 + $0x150] sm:$0xf] %vm1003, %v1686
        %1719 = vst.msk [vmem:[#allocation3 + $0x15c] sm:$0xf] %vm1003, %v1687
        %1720 = vst.msk [vmem:[#allocation3 + $0x168] sm:$0xf] %vm1003, %v1688
        %1721 = vst.msk [vmem:[#allocation3 + $0x174] sm:$0xf] %vm1003, %v1689
        %v1722 = vld [vmem:[#allocation2] sm:$0xf]
        %v1723 = vld [vmem:[#allocation2 + $0x4] sm:$0xf]
        %v1724 = vld [vmem:[#allocation2 + $0x8] sm:$0x1]
        %v1725 = vld [vmem:[#allocation2 + $0xc] sm:$0xf]
        %v1726 = vld [vmem:[#allocation2 + $0x10] sm:$0xf]
        %v1727 = vld [vmem:[#allocation2 + $0x14] sm:$0x1]
        %v1728 = vld [vmem:[#allocation2 + $0x18] sm:$0xf]
        %v1729 = vld [vmem:[#allocation2 + $0x1c] sm:$0xf]
        %v1730 = vld [vmem:[#allocation2 + $0x20] sm:$0x1]
        %v1731 = vld [vmem:[#allocation2 + $0x24] sm:$0xf]
        %v1732 = vld [vmem:[#allocation2 + $0x28] sm:$0xf]
        %v1733 = vld [vmem:[#allocation2 + $0x2c] sm:$0x1]
        %v1734 = vld [vmem:[#allocation2 + $0x30] sm:$0xf]
        %v1735 = vld [vmem:[#allocation2 + $0x34] sm:$0xf]
        %v1736 = vld [vmem:[#allocation2 + $0x38] sm:$0x1]
        %v1737 = vld [vmem:[#allocation2 + $0x3c] sm:$0xf]
        %v1738 = vld [vmem:[#allocation2 + $0x40] sm:$0xf]
        %v1739 = vld [vmem:[#allocation2 + $0x44] sm:$0x1]
        %v1740 = vld [vmem:[#allocation2 + $0x48] sm:$0xf]
        %v1741 = vld [vmem:[#allocation2 + $0x4c] sm:$0xf]
        %v1742 = vld [vmem:[#allocation2 + $0x50] sm:$0x1]
        %v1743 = vld [vmem:[#allocation2 + $0x54] sm:$0xf]
        %v1744 = vld [vmem:[#allocation2 + $0x58] sm:$0xf]
        %v1745 = vld [vmem:[#allocation2 + $0x5c] sm:$0x1]
        %v1746 = vld [vmem:[#allocation2 + $0x60] sm:$0xf]
        %v1747 = vld [vmem:[#allocation2 + $0x64] sm:$0xf]
        %v1748 = vld [vmem:[#allocation2 + $0x68] sm:$0x1]
        %v1749 = vld [vmem:[#allocation2 + $0x6c] sm:$0xf]
        %v1750 = vld [vmem:[#allocation2 + $0x70] sm:$0xf]
        %v1751 = vld [vmem:[#allocation2 + $0x74] sm:$0x1]
        %v1752 = vld [vmem:[#allocation2 + $0x78] sm:$0xf]
        %v1753 = vld [vmem:[#allocation2 + $0x7c] sm:$0xf]
        %v1754 = vld [vmem:[#allocation2 + $0x80] sm:$0x1]
        %v1755 = vld [vmem:[#allocation2 + $0x84] sm:$0xf]
        %v1756 = vld [vmem:[#allocation2 + $0x88] sm:$0xf]
        %v1757 = vld [vmem:[#allocation2 + $0x8c] sm:$0x1]
        %v1758 = vld [vmem:[#allocation2 + $0x90] sm:$0xf]
        %v1759 = vld [vmem:[#allocation2 + $0x94] sm:$0xf]
        %v1760 = vld [vmem:[#allocation2 + $0x98] sm:$0x1]
        %v1761 = vld [vmem:[#allocation2 + $0x9c] sm:$0xf]
        %v1762 = vld [vmem:[#allocation2 + $0xa0] sm:$0xf]
        %v1763 = vld [vmem:[#allocation2 + $0xa4] sm:$0x1]
        %v1764 = vld [vmem:[#allocation2 + $0xa8] sm:$0xf]
        %v1765 = vld [vmem:[#allocation2 + $0xac] sm:$0xf]
        %v1766 = vld [vmem:[#allocation2 + $0xb0] sm:$0x1]
        %v1767 = vld [vmem:[#allocation2 + $0xb4] sm:$0xf]
        %v1768 = vld [vmem:[#allocation2 + $0xb8] sm:$0xf]
        %v1769 = vld [vmem:[#allocation2 + $0xbc] sm:$0x1]
        %vm1770 = vsmask.f32 3328
        %vm1771 = vsmask.f32 7440
        %vm1772 = vmor %vm1770, %vm1771
        %v1774 = vshrl.u32 %v1722, 16
        %v1776 = vrot.slane %v1774, 4
        %v1777 = vshll.u32 %v1722, 16
        %v1779 = vrot.slane %v1777, 5
        %v1780 = vor.u32 %v1776, %v1779
        %v1781 = vrot.slane %v1780, 4
        %v1783 = vshll.u32 %v1723, 16
        %v1785 = vrot.slane %v1783, 5
        %v1786 = vsel %vm1772, %v1781, %v1785
        %v1787 = vshrl.u32 %v1723, 16
        %v1789 = vrot.slane %v1787, 4
        %v1790 = vor.u32 %v1789, %v1785
        %v1791 = vrot.slane %v1790, 4
        %v1793 = vshll.u32 %v1724, 16
        %v1795 = vrot.slane %v1793, 5
        %v1796 = vsel %vm1772, %v1791, %v1795
        %v1798 = vshrl.u32 %v1725, 16
        %v1800 = vrot.slane %v1798, 4
        %v1801 = vshll.u32 %v1725, 16
        %v1803 = vrot.slane %v1801, 5
        %v1804 = vor.u32 %v1800, %v1803
        %v1805 = vrot.slane %v1804, 4
        %v1807 = vshll.u32 %v1726, 16
        %v1809 = vrot.slane %v1807, 5
        %v1810 = vsel %vm1772, %v1805, %v1809
        %v1811 = vshrl.u32 %v1726, 16
        %v1813 = vrot.slane %v1811, 4
        %v1814 = vor.u32 %v1813, %v1809
        %v1815 = vrot.slane %v1814, 4
        %v1817 = vshll.u32 %v1727, 16
        %v1819 = vrot.slane %v1817, 5
        %v1820 = vsel %vm1772, %v1815, %v1819
        %v1822 = vshrl.u32 %v1728, 16
        %v1824 = vrot.slane %v1822, 4
        %v1825 = vshll.u32 %v1728, 16
        %v1827 = vrot.slane %v1825, 5
        %v1828 = vor.u32 %v1824, %v1827
        %v1829 = vrot.slane %v1828, 4
        %v1831 = vshll.u32 %v1729, 16
        %v1833 = vrot.slane %v1831, 5
        %v1834 = vsel %vm1772, %v1829, %v1833
        %v1835 = vshrl.u32 %v1729, 16
        %v1837 = vrot.slane %v1835, 4
        %v1838 = vor.u32 %v1837, %v1833
        %v1839 = vrot.slane %v1838, 4
        %v1841 = vshll.u32 %v1730, 16
        %v1843 = vrot.slane %v1841, 5
        %v1844 = vsel %vm1772, %v1839, %v1843
        %v1846 = vshrl.u32 %v1731, 16
        %v1848 = vrot.slane %v1846, 4
        %v1849 = vshll.u32 %v1731, 16
        %v1851 = vrot.slane %v1849, 5
        %v1852 = vor.u32 %v1848, %v1851
        %v1853 = vrot.slane %v1852, 4
        %v1855 = vshll.u32 %v1732, 16
        %v1857 = vrot.slane %v1855, 5
        %v1858 = vsel %vm1772, %v1853, %v1857
        %v1859 = vshrl.u32 %v1732, 16
        %v1861 = vrot.slane %v1859, 4
        %v1862 = vor.u32 %v1861, %v1857
        %v1863 = vrot.slane %v1862, 4
        %v1865 = vshll.u32 %v1733, 16
        %v1867 = vrot.slane %v1865, 5
        %v1868 = vsel %vm1772, %v1863, %v1867
        %v1870 = vshrl.u32 %v1734, 16
        %v1872 = vrot.slane %v1870, 4
        %v1873 = vshll.u32 %v1734, 16
        %v1875 = vrot.slane %v1873, 5
        %v1876 = vor.u32 %v1872, %v1875
        %v1877 = vrot.slane %v1876, 4
        %v1879 = vshll.u32 %v1735, 16
        %v1881 = vrot.slane %v1879, 5
        %v1882 = vsel %vm1772, %v1877, %v1881
        %v1883 = vshrl.u32 %v1735, 16
        %v1885 = vrot.slane %v1883, 4
        %v1886 = vor.u32 %v1885, %v1881
        %v1887 = vrot.slane %v1886, 4
        %v1889 = vshll.u32 %v1736, 16
        %v1891 = vrot.slane %v1889, 5
        %v1892 = vsel %vm1772, %v1887, %v1891
        %v1894 = vshrl.u32 %v1737, 16
        %v1896 = vrot.slane %v1894, 4
        %v1897 = vshll.u32 %v1737, 16
        %v1899 = vrot.slane %v1897, 5
        %v1900 = vor.u32 %v1896, %v1899
        %v1901 = vrot.slane %v1900, 4
        %v1903 = vshll.u32 %v1738, 16
        %v1905 = vrot.slane %v1903, 5
        %v1906 = vsel %vm1772, %v1901, %v1905
        %v1907 = vshrl.u32 %v1738, 16
        %v1909 = vrot.slane %v1907, 4
        %v1910 = vor.u32 %v1909, %v1905
        %v1911 = vrot.slane %v1910, 4
        %v1913 = vshll.u32 %v1739, 16
        %v1915 = vrot.slane %v1913, 5
        %v1916 = vsel %vm1772, %v1911, %v1915
        %v1918 = vshrl.u32 %v1740, 16
        %v1920 = vrot.slane %v1918, 4
        %v1921 = vshll.u32 %v1740, 16
        %v1923 = vrot.slane %v1921, 5
        %v1924 = vor.u32 %v1920, %v1923
        %v1925 = vrot.slane %v1924, 4
        %v1927 = vshll.u32 %v1741, 16
        %v1929 = vrot.slane %v1927, 5
        %v1930 = vsel %vm1772, %v1925, %v1929
        %v1931 = vshrl.u32 %v1741, 16
        %v1933 = vrot.slane %v1931, 4
        %v1934 = vor.u32 %v1933, %v1929
        %v1935 = vrot.slane %v1934, 4
        %v1937 = vshll.u32 %v1742, 16
        %v1939 = vrot.slane %v1937, 5
        %v1940 = vsel %vm1772, %v1935, %v1939
        %v1942 = vshrl.u32 %v1743, 16
        %v1944 = vrot.slane %v1942, 4
        %v1945 = vshll.u32 %v1743, 16
        %v1947 = vrot.slane %v1945, 5
        %v1948 = vor.u32 %v1944, %v1947
        %v1949 = vrot.slane %v1948, 4
        %v1951 = vshll.u32 %v1744, 16
        %v1953 = vrot.slane %v1951, 5
        %v1954 = vsel %vm1772, %v1949, %v1953
        %v1955 = vshrl.u32 %v1744, 16
        %v1957 = vrot.slane %v1955, 4
        %v1958 = vor.u32 %v1957, %v1953
        %v1959 = vrot.slane %v1958, 4
        %v1961 = vshll.u32 %v1745, 16
        %v1963 = vrot.slane %v1961, 5
        %v1964 = vsel %vm1772, %v1959, %v1963
        %v1966 = vshrl.u32 %v1746, 16
        %v1968 = vrot.slane %v1966, 4
        %v1969 = vshll.u32 %v1746, 16
        %v1971 = vrot.slane %v1969, 5
        %v1972 = vor.u32 %v1968, %v1971
        %v1973 = vrot.slane %v1972, 4
        %v1975 = vshll.u32 %v1747, 16
        %v1977 = vrot.slane %v1975, 5
        %v1978 = vsel %vm1772, %v1973, %v1977
        %v1979 = vshrl.u32 %v1747, 16
        %v1981 = vrot.slane %v1979, 4
        %v1982 = vor.u32 %v1981, %v1977
        %v1983 = vrot.slane %v1982, 4
        %v1985 = vshll.u32 %v1748, 16
        %v1987 = vrot.slane %v1985, 5
        %v1988 = vsel %vm1772, %v1983, %v1987
        %v1990 = vshrl.u32 %v1749, 16
        %v1992 = vrot.slane %v1990, 4
        %v1993 = vshll.u32 %v1749, 16
        %v1995 = vrot.slane %v1993, 5
        %v1996 = vor.u32 %v1992, %v1995
        %v1997 = vrot.slane %v1996, 4
        %v1999 = vshll.u32 %v1750, 16
        %v2001 = vrot.slane %v1999, 5
        %v2002 = vsel %vm1772, %v1997, %v2001
        %v2003 = vshrl.u32 %v1750, 16
        %v2005 = vrot.slane %v2003, 4
        %v2006 = vor.u32 %v2005, %v2001
        %v2007 = vrot.slane %v2006, 4
        %v2009 = vshll.u32 %v1751, 16
        %v2011 = vrot.slane %v2009, 5
        %v2012 = vsel %vm1772, %v2007, %v2011
        %v2014 = vshrl.u32 %v1752, 16
        %v2016 = vrot.slane %v2014, 4
        %v2017 = vshll.u32 %v1752, 16
        %v2019 = vrot.slane %v2017, 5
        %v2020 = vor.u32 %v2016, %v2019
        %v2021 = vrot.slane %v2020, 4
        %v2023 = vshll.u32 %v1753, 16
        %v2025 = vrot.slane %v2023, 5
        %v2026 = vsel %vm1772, %v2021, %v2025
        %v2027 = vshrl.u32 %v1753, 16
        %v2029 = vrot.slane %v2027, 4
        %v2030 = vor.u32 %v2029, %v2025
        %v2031 = vrot.slane %v2030, 4
        %v2033 = vshll.u32 %v1754, 16
        %v2035 = vrot.slane %v2033, 5
        %v2036 = vsel %vm1772, %v2031, %v2035
        %v2038 = vshrl.u32 %v1755, 16
        %v2040 = vrot.slane %v2038, 4
        %v2041 = vshll.u32 %v1755, 16
        %v2043 = vrot.slane %v2041, 5
        %v2044 = vor.u32 %v2040, %v2043
        %v2045 = vrot.slane %v2044, 4
        %v2047 = vshll.u32 %v1756, 16
        %v2049 = vrot.slane %v2047, 5
        %v2050 = vsel %vm1772, %v2045, %v2049
        %v2051 = vshrl.u32 %v1756, 16
        %v2053 = vrot.slane %v2051, 4
        %v2054 = vor.u32 %v2053, %v2049
        %v2055 = vrot.slane %v2054, 4
        %v2057 = vshll.u32 %v1757, 16
        %v2059 = vrot.slane %v2057, 5
        %v2060 = vsel %vm1772, %v2055, %v2059
        %v2062 = vshrl.u32 %v1758, 16
        %v2064 = vrot.slane %v2062, 4
        %v2065 = vshll.u32 %v1758, 16
        %v2067 = vrot.slane %v2065, 5
        %v2068 = vor.u32 %v2064, %v2067
        %v2069 = vrot.slane %v2068, 4
        %v2071 = vshll.u32 %v1759, 16
        %v2073 = vrot.slane %v2071, 5
        %v2074 = vsel %vm1772, %v2069, %v2073
        %v2075 = vshrl.u32 %v1759, 16
        %v2077 = vrot.slane %v2075, 4
        %v2078 = vor.u32 %v2077, %v2073
        %v2079 = vrot.slane %v2078, 4
        %v2081 = vshll.u32 %v1760, 16
        %v2083 = vrot.slane %v2081, 5
        %v2084 = vsel %vm1772, %v2079, %v2083
        %v2086 = vshrl.u32 %v1761, 16
        %v2088 = vrot.slane %v2086, 4
        %v2089 = vshll.u32 %v1761, 16
        %v2091 = vrot.slane %v2089, 5
        %v2092 = vor.u32 %v2088, %v2091
        %v2093 = vrot.slane %v2092, 4
        %v2095 = vshll.u32 %v1762, 16
        %v2097 = vrot.slane %v2095, 5
        %v2098 = vsel %vm1772, %v2093, %v2097
        %v2099 = vshrl.u32 %v1762, 16
        %v2101 = vrot.slane %v2099, 4
        %v2102 = vor.u32 %v2101, %v2097
        %v2103 = vrot.slane %v2102, 4
        %v2105 = vshll.u32 %v1763, 16
        %v2107 = vrot.slane %v2105, 5
        %v2108 = vsel %vm1772, %v2103, %v2107
        %v2110 = vshrl.u32 %v1764, 16
        %v2112 = vrot.slane %v2110, 4
        %v2113 = vshll.u32 %v1764, 16
        %v2115 = vrot.slane %v2113, 5
        %v2116 = vor.u32 %v2112, %v2115
        %v2117 = vrot.slane %v2116, 4
        %v2119 = vshll.u32 %v1765, 16
        %v2121 = vrot.slane %v2119, 5
        %v2122 = vsel %vm1772, %v2117, %v2121
        %v2123 = vshrl.u32 %v1765, 16
        %v2125 = vrot.slane %v2123, 4
        %v2126 = vor.u32 %v2125, %v2121
        %v2127 = vrot.slane %v2126, 4
        %v2129 = vshll.u32 %v1766, 16
        %v2131 = vrot.slane %v2129, 5
        %v2132 = vsel %vm1772, %v2127, %v2131
        %v2134 = vshrl.u32 %v1767, 16
        %v2136 = vrot.slane %v2134, 4
        %v2137 = vshll.u32 %v1767, 16
        %v2139 = vrot.slane %v2137, 5
        %v2140 = vor.u32 %v2136, %v2139
        %v2141 = vrot.slane %v2140, 4
        %v2143 = vshll.u32 %v1768, 16
        %v2145 = vrot.slane %v2143, 5
        %v2146 = vsel %vm1772, %v2141, %v2145
        %v2147 = vshrl.u32 %v1768, 16
        %v2149 = vrot.slane %v2147, 4
        %v2150 = vor.u32 %v2149, %v2145
        %v2151 = vrot.slane %v2150, 4
        %v2153 = vshll.u32 %v1769, 16
        %v2155 = vrot.slane %v2153, 5
        %v2156 = vsel %vm1772, %v2151, %v2155
        %2157 = vrot.lane.b32.xlu0 %v1786, 32
        %v2158 = vpop.permute.xlu0 %2157
        %2159 = vrot.lane.b32.xlu0 %v1796, 32
        %v2160 = vpop.permute.xlu0 %2159
        %2161 = vrot.lane.b32.xlu0 %v1810, 32
        %v2162 = vpop.permute.xlu0 %2161
        %2163 = vrot.lane.b32.xlu0 %v1820, 32
        %v2164 = vpop.permute.xlu0 %2163
        %2165 = vrot.lane.b32.xlu0 %v1834, 32
        %v2166 = vpop.permute.xlu0 %2165
        %2167 = vrot.lane.b32.xlu0 %v1844, 32
        %v2168 = vpop.permute.xlu0 %2167
        %2169 = vrot.lane.b32.xlu0 %v1858, 32
        %v2170 = vpop.permute.xlu0 %2169
        %2171 = vrot.lane.b32.xlu0 %v1868, 32
        %v2172 = vpop.permute.xlu0 %2171
        %2173 = vrot.lane.b32.xlu0 %v1882, 32
        %v2174 = vpop.permute.xlu0 %2173
        %2175 = vrot.lane.b32.xlu0 %v1892, 32
        %v2176 = vpop.permute.xlu0 %2175
        %2177 = vrot.lane.b32.xlu0 %v1906, 32
        %v2178 = vpop.permute.xlu0 %2177
        %2179 = vrot.lane.b32.xlu0 %v1916, 32
        %v2180 = vpop.permute.xlu0 %2179
        %2181 = vrot.lane.b32.xlu0 %v1930, 32
        %v2182 = vpop.permute.xlu0 %2181
        %2183 = vrot.lane.b32.xlu0 %v1940, 32
        %v2184 = vpop.permute.xlu0 %2183
        %2185 = vrot.lane.b32.xlu0 %v1954, 32
        %v2186 = vpop.permute.xlu0 %2185
        %2187 = vrot.lane.b32.xlu0 %v1964, 32
        %v2188 = vpop.permute.xlu0 %2187
        %2189 = vrot.lane.b32.xlu0 %v1978, 32
        %v2190 = vpop.permute.xlu0 %2189
        %2191 = vrot.lane.b32.xlu0 %v1988, 32
        %v2192 = vpop.permute.xlu0 %2191
        %2193 = vrot.lane.b32.xlu0 %v2002, 32
        %v2194 = vpop.permute.xlu0 %2193
        %2195 = vrot.lane.b32.xlu0 %v2012, 32
        %v2196 = vpop.permute.xlu0 %2195
        %2197 = vrot.lane.b32.xlu0 %v2026, 32
        %v2198 = vpop.permute.xlu0 %2197
        %2199 = vrot.lane.b32.xlu0 %v2036, 32
        %v2200 = vpop.permute.xlu0 %2199
        %2201 = vrot.lane.b32.xlu0 %v2050, 32
        %v2202 = vpop.permute.xlu0 %2201
        %2203 = vrot.lane.b32.xlu0 %v2060, 32
        %v2204 = vpop.permute.xlu0 %2203
        %2205 = vrot.lane.b32.xlu0 %v2074, 32
        %v2206 = vpop.permute.xlu0 %2205
        %2207 = vrot.lane.b32.xlu0 %v2084, 32
        %v2208 = vpop.permute.xlu0 %2207
        %2209 = vrot.lane.b32.xlu0 %v2098, 32
        %v2210 = vpop.permute.xlu0 %2209
        %2211 = vrot.lane.b32.xlu0 %v2108, 32
        %v2212 = vpop.permute.xlu0 %2211
        %2213 = vrot.lane.b32.xlu0 %v2122, 32
        %v2214 = vpop.permute.xlu0 %2213
        %2215 = vrot.lane.b32.xlu0 %v2132, 32
        %v2216 = vpop.permute.xlu0 %2215
        %2217 = vrot.lane.b32.xlu0 %v2146, 32
        %v2218 = vpop.permute.xlu0 %2217
        %2219 = vrot.lane.b32.xlu0 %v2156, 32
        %v2220 = vpop.permute.xlu0 %2219
        %vm2253 = vcmask 519424
        %2254 = vst.msk [vmem:[#allocation3] sm:$0xf] %vm2253, %v2158
        %2255 = vst.msk [vmem:[#allocation3 + $0xc] sm:$0xf] %vm2253, %v2160
        %2256 = vst.msk [vmem:[#allocation3 + $0x18] sm:$0xf] %vm2253, %v2162
        %2257 = vst.msk [vmem:[#allocation3 + $0x24] sm:$0xf] %vm2253, %v2164
        %2258 = vst.msk [vmem:[#allocation3 + $0x30] sm:$0xf] %vm2253, %v2166
        %2259 = vst.msk [vmem:[#allocation3 + $0x3c] sm:$0xf] %vm2253, %v2168
        %2260 = vst.msk [vmem:[#allocation3 + $0x48] sm:$0xf] %vm2253, %v2170
        %2261 = vst.msk [vmem:[#allocation3 + $0x54] sm:$0xf] %vm2253, %v2172
        %2262 = vst.msk [vmem:[#allocation3 + $0x60] sm:$0xf] %vm2253, %v2174
        %2263 = vst.msk [vmem:[#allocation3 + $0x6c] sm:$0xf] %vm2253, %v2176
        %2264 = vst.msk [vmem:[#allocation3 + $0x78] sm:$0xf] %vm2253, %v2178
        %2265 = vst.msk [vmem:[#allocation3 + $0x84] sm:$0xf] %vm2253, %v2180
        %2266 = vst.msk [vmem:[#allocation3 + $0x90] sm:$0xf] %vm2253, %v2182
        %2267 = vst.msk [vmem:[#allocation3 + $0x9c] sm:$0xf] %vm2253, %v2184
        %2268 = vst.msk [vmem:[#allocation3 + $0xa8] sm:$0xf] %vm2253, %v2186
        %2269 = vst.msk [vmem:[#allocation3 + $0xb4] sm:$0xf] %vm2253, %v2188
        %2270 = vst.msk [vmem:[#allocation3 + $0xc0] sm:$0xf] %vm2253, %v2190
        %2271 = vst.msk [vmem:[#allocation3 + $0xcc] sm:$0xf] %vm2253, %v2192
        %2272 = vst.msk [vmem:[#allocation3 + $0xd8] sm:$0xf] %vm2253, %v2194
        %2273 = vst.msk [vmem:[#allocation3 + $0xe4] sm:$0xf] %vm2253, %v2196
        %2274 = vst.msk [vmem:[#allocation3 + $0xf0] sm:$0xf] %vm2253, %v2198
        %2275 = vst.msk [vmem:[#allocation3 + $0xfc] sm:$0xf] %vm2253, %v2200
        %2276 = vst.msk [vmem:[#allocation3 + $0x108] sm:$0xf] %vm2253, %v2202
        %2277 = vst.msk [vmem:[#allocation3 + $0x114] sm:$0xf] %vm2253, %v2204
        %2278 = vst.msk [vmem:[#allocation3 + $0x120] sm:$0xf] %vm2253, %v2206
        %2279 = vst.msk [vmem:[#allocation3 + $0x12c] sm:$0xf] %vm2253, %v2208
        %2280 = vst.msk [vmem:[#allocation3 + $0x138] sm:$0xf] %vm2253, %v2210
        %2281 = vst.msk [vmem:[#allocation3 + $0x144] sm:$0xf] %vm2253, %v2212
        %2282 = vst.msk [vmem:[#allocation3 + $0x150] sm:$0xf] %vm2253, %v2214
        %2283 = vst.msk [vmem:[#allocation3 + $0x15c] sm:$0xf] %vm2253, %v2216
        %2284 = vst.msk [vmem:[#allocation3 + $0x168] sm:$0xf] %vm2253, %v2218
        %2285 = vst.msk [vmem:[#allocation3 + $0x174] sm:$0xf] %vm2253, %v2220
        %v2286 = vld [vmem:[#allocation2] sm:$0xe]
        %v2287 = vld [vmem:[#allocation2 + $0x4] sm:$0xf]
        %v2288 = vld [vmem:[#allocation2 + $0x8] sm:$0x1]
        %v2289 = vld [vmem:[#allocation2 + $0xc] sm:$0xe]
        %v2290 = vld [vmem:[#allocation2 + $0x10] sm:$0xf]
        %v2291 = vld [vmem:[#allocation2 + $0x14] sm:$0x1]
        %v2292 = vld [vmem:[#allocation2 + $0x18] sm:$0xe]
        %v2293 = vld [vmem:[#allocation2 + $0x1c] sm:$0xf]
        %v2294 = vld [vmem:[#allocation2 + $0x20] sm:$0x1]
        %v2295 = vld [vmem:[#allocation2 + $0x24] sm:$0xe]
        %v2296 = vld [vmem:[#allocation2 + $0x28] sm:$0xf]
        %v2297 = vld [vmem:[#allocation2 + $0x2c] sm:$0x1]
        %v2298 = vld [vmem:[#allocation2 + $0x30] sm:$0xe]
        %v2299 = vld [vmem:[#allocation2 + $0x34] sm:$0xf]
        %v2300 = vld [vmem:[#allocation2 + $0x38] sm:$0x1]
        %v2301 = vld [vmem:[#allocation2 + $0x3c] sm:$0xe]
        %v2302 = vld [vmem:[#allocation2 + $0x40] sm:$0xf]
        %v2303 = vld [vmem:[#allocation2 + $0x44] sm:$0x1]
        %v2304 = vld [vmem:[#allocation2 + $0x48] sm:$0xe]
        %v2305 = vld [vmem:[#allocation2 + $0x4c] sm:$0xf]
        %v2306 = vld [vmem:[#allocation2 + $0x50] sm:$0x1]
        %v2307 = vld [vmem:[#allocation2 + $0x54] sm:$0xe]
        %v2308 = vld [vmem:[#allocation2 + $0x58] sm:$0xf]
        %v2309 = vld [vmem:[#allocation2 + $0x5c] sm:$0x1]
        %v2310 = vld [vmem:[#allocation2 + $0x60] sm:$0xe]
        %v2311 = vld [vmem:[#allocation2 + $0x64] sm:$0xf]
        %v2312 = vld [vmem:[#allocation2 + $0x68] sm:$0x1]
        %v2313 = vld [vmem:[#allocation2 + $0x6c] sm:$0xe]
        %v2314 = vld [vmem:[#allocation2 + $0x70] sm:$0xf]
        %v2315 = vld [vmem:[#allocation2 + $0x74] sm:$0x1]
        %v2316 = vld [vmem:[#allocation2 + $0x78] sm:$0xe]
        %v2317 = vld [vmem:[#allocation2 + $0x7c] sm:$0xf]
        %v2318 = vld [vmem:[#allocation2 + $0x80] sm:$0x1]
        %v2319 = vld [vmem:[#allocation2 + $0x84] sm:$0xe]
        %v2320 = vld [vmem:[#allocation2 + $0x88] sm:$0xf]
        %v2321 = vld [vmem:[#allocation2 + $0x8c] sm:$0x1]
        %v2322 = vld [vmem:[#allocation2 + $0x90] sm:$0xe]
        %v2323 = vld [vmem:[#allocation2 + $0x94] sm:$0xf]
        %v2324 = vld [vmem:[#allocation2 + $0x98] sm:$0x1]
        %v2325 = vld [vmem:[#allocation2 + $0x9c] sm:$0xe]
        %v2326 = vld [vmem:[#allocation2 + $0xa0] sm:$0xf]
        %v2327 = vld [vmem:[#allocation2 + $0xa4] sm:$0x1]
        %v2328 = vld [vmem:[#allocation2 + $0xa8] sm:$0xe]
        %v2329 = vld [vmem:[#allocation2 + $0xac] sm:$0xf]
        %v2330 = vld [vmem:[#allocation2 + $0xb0] sm:$0x1]
        %v2331 = vld [vmem:[#allocation2 + $0xb4] sm:$0xe]
        %v2332 = vld [vmem:[#allocation2 + $0xb8] sm:$0xf]
        %v2333 = vld [vmem:[#allocation2 + $0xbc] sm:$0x1]
        %vm2382 = vcmask 1042432
        %vm2383 = vcmask 1046532
        %vm2384 = vmor %vm2382, %vm2383
        %v2385 = vrot.slane %v2286, 5
        %v2386 = vrot.slane %v2385, 4
        %v2387 = vrot.slane %v2287, 5
        %v2388 = vsel %vm2384, %v2386, %v2387
        %v2389 = vrot.slane %v2387, 4
        %v2390 = vrot.slane %v2288, 5
        %v2391 = vsel %vm2384, %v2389, %v2390
        %v2392 = vrot.slane %v2289, 5
        %v2393 = vrot.slane %v2392, 4
        %v2394 = vrot.slane %v2290, 5
        %v2395 = vsel %vm2384, %v2393, %v2394
        %v2396 = vrot.slane %v2394, 4
        %v2397 = vrot.slane %v2291, 5
        %v2398 = vsel %vm2384, %v2396, %v2397
        %v2399 = vrot.slane %v2292, 5
        %v2400 = vrot.slane %v2399, 4
        %v2401 = vrot.slane %v2293, 5
        %v2402 = vsel %vm2384, %v2400, %v2401
        %v2403 = vrot.slane %v2401, 4
        %v2404 = vrot.slane %v2294, 5
        %v2405 = vsel %vm2384, %v2403, %v2404
        %v2406 = vrot.slane %v2295, 5
        %v2407 = vrot.slane %v2406, 4
        %v2408 = vrot.slane %v2296, 5
        %v2409 = vsel %vm2384, %v2407, %v2408
        %v2410 = vrot.slane %v2408, 4
        %v2411 = vrot.slane %v2297, 5
        %v2412 = vsel %vm2384, %v2410, %v2411
        %v2413 = vrot.slane %v2298, 5
        %v2414 = vrot.slane %v2413, 4
        %v2415 = vrot.slane %v2299, 5
        %v2416 = vsel %vm2384, %v2414, %v2415
        %v2417 = vrot.slane %v2415, 4
        %v2418 = vrot.slane %v2300, 5
        %v2419 = vsel %vm2384, %v2417, %v2418
        %v2420 = vrot.slane %v2301, 5
        %v2421 = vrot.slane %v2420, 4
        %v2422 = vrot.slane %v2302, 5
        %v2423 = vsel %vm2384, %v2421, %v2422
        %v2424 = vrot.slane %v2422, 4
        %v2425 = vrot.slane %v2303, 5
        %v2426 = vsel %vm2384, %v2424, %v2425
        %v2427 = vrot.slane %v2304, 5
        %v2428 = vrot.slane %v2427, 4
        %v2429 = vrot.slane %v2305, 5
        %v2430 = vsel %vm2384, %v2428, %v2429
        %v2431 = vrot.slane %v2429, 4
        %v2432 = vrot.slane %v2306, 5
        %v2433 = vsel %vm2384, %v2431, %v2432
        %v2434 = vrot.slane %v2307, 5
        %v2435 = vrot.slane %v2434, 4
        %v2436 = vrot.slane %v2308, 5
        %v2437 = vsel %vm2384, %v2435, %v2436
        %v2438 = vrot.slane %v2436, 4
        %v2439 = vrot.slane %v2309, 5
        %v2440 = vsel %vm2384, %v2438, %v2439
        %v2441 = vrot.slane %v2310, 5
        %v2442 = vrot.slane %v2441, 4
        %v2443 = vrot.slane %v2311, 5
        %v2444 = vsel %vm2384, %v2442, %v2443
        %v2445 = vrot.slane %v2443, 4
        %v2446 = vrot.slane %v2312, 5
        %v2447 = vsel %vm2384, %v2445, %v2446
        %v2448 = vrot.slane %v2313, 5
        %v2449 = vrot.slane %v2448, 4
        %v2450 = vrot.slane %v2314, 5
        %v2451 = vsel %vm2384, %v2449, %v2450
        %v2452 = vrot.slane %v2450, 4
        %v2453 = vrot.slane %v2315, 5
        %v2454 = vsel %vm2384, %v2452, %v2453
        %v2455 = vrot.slane %v2316, 5
        %v2456 = vrot.slane %v2455, 4
        %v2457 = vrot.slane %v2317, 5
        %v2458 = vsel %vm2384, %v2456, %v2457
        %v2459 = vrot.slane %v2457, 4
        %v2460 = vrot.slane %v2318, 5
        %v2461 = vsel %vm2384, %v2459, %v2460
        %v2462 = vrot.slane %v2319, 5
        %v2463 = vrot.slane %v2462, 4
        %v2464 = vrot.slane %v2320, 5
        %v2465 = vsel %vm2384, %v2463, %v2464
        %v2466 = vrot.slane %v2464, 4
        %v2467 = vrot.slane %v2321, 5
        %v2468 = vsel %vm2384, %v2466, %v2467
        %v2469 = vrot.slane %v2322, 5
        %v2470 = vrot.slane %v2469, 4
        %v2471 = vrot.slane %v2323, 5
        %v2472 = vsel %vm2384, %v2470, %v2471
        %v2473 = vrot.slane %v2471, 4
        %v2474 = vrot.slane %v2324, 5
        %v2475 = vsel %vm2384, %v2473, %v2474
        %v2476 = vrot.slane %v2325, 5
        %v2477 = vrot.slane %v2476, 4
        %v2478 = vrot.slane %v2326, 5
        %v2479 = vsel %vm2384, %v2477, %v2478
        %v2480 = vrot.slane %v2478, 4
        %v2481 = vrot.slane %v2327, 5
        %v2482 = vsel %vm2384, %v2480, %v2481
        %v2483 = vrot.slane %v2328, 5
        %v2484 = vrot.slane %v2483, 4
        %v2485 = vrot.slane %v2329, 5
        %v2486 = vsel %vm2384, %v2484, %v2485
        %v2487 = vrot.slane %v2485, 4
        %v2488 = vrot.slane %v2330, 5
        %v2489 = vsel %vm2384, %v2487, %v2488
        %v2490 = vrot.slane %v2331, 5
        %v2491 = vrot.slane %v2490, 4
        %v2492 = vrot.slane %v2332, 5
        %v2493 = vsel %vm2384, %v2491, %v2492
        %v2494 = vrot.slane %v2492, 4
        %v2495 = vrot.slane %v2333, 5
        %v2496 = vsel %vm2384, %v2494, %v2495
        %2497 = vrot.lane.b32.xlu0 %v2388, 64
        %v2498 = vpop.permute.xlu0 %2497
        %2499 = vrot.lane.b32.xlu0 %v2391, 64
        %v2500 = vpop.permute.xlu0 %2499
        %2501 = vrot.lane.b32.xlu0 %v2395, 64
        %v2502 = vpop.permute.xlu0 %2501
        %2503 = vrot.lane.b32.xlu0 %v2398, 64
        %v2504 = vpop.permute.xlu0 %2503
        %2505 = vrot.lane.b32.xlu0 %v2402, 64
        %v2506 = vpop.permute.xlu0 %2505
        %2507 = vrot.lane.b32.xlu0 %v2405, 64
        %v2508 = vpop.permute.xlu0 %2507
        %2509 = vrot.lane.b32.xlu0 %v2409, 64
        %v2510 = vpop.permute.xlu0 %2509
        %2511 = vrot.lane.b32.xlu0 %v2412, 64
        %v2512 = vpop.permute.xlu0 %2511
        %2513 = vrot.lane.b32.xlu0 %v2416, 64
        %v2514 = vpop.permute.xlu0 %2513
        %2515 = vrot.lane.b32.xlu0 %v2419, 64
        %v2516 = vpop.permute.xlu0 %2515
        %2517 = vrot.lane.b32.xlu0 %v2423, 64
        %v2518 = vpop.permute.xlu0 %2517
        %2519 = vrot.lane.b32.xlu0 %v2426, 64
        %v2520 = vpop.permute.xlu0 %2519
        %2521 = vrot.lane.b32.xlu0 %v2430, 64
        %v2522 = vpop.permute.xlu0 %2521
        %2523 = vrot.lane.b32.xlu0 %v2433, 64
        %v2524 = vpop.permute.xlu0 %2523
        %2525 = vrot.lane.b32.xlu0 %v2437, 64
        %v2526 = vpop.permute.xlu0 %2525
        %2527 = vrot.lane.b32.xlu0 %v2440, 64
        %v2528 = vpop.permute.xlu0 %2527
        %2529 = vrot.lane.b32.xlu0 %v2444, 64
        %v2530 = vpop.permute.xlu0 %2529
        %2531 = vrot.lane.b32.xlu0 %v2447, 64
        %v2532 = vpop.permute.xlu0 %2531
        %2533 = vrot.lane.b32.xlu0 %v2451, 64
        %v2534 = vpop.permute.xlu0 %2533
        %2535 = vrot.lane.b32.xlu0 %v2454, 64
        %v2536 = vpop.permute.xlu0 %2535
        %2537 = vrot.lane.b32.xlu0 %v2458, 64
        %v2538 = vpop.permute.xlu0 %2537
        %2539 = vrot.lane.b32.xlu0 %v2461, 64
        %v2540 = vpop.permute.xlu0 %2539
        %2541 = vrot.lane.b32.xlu0 %v2465, 64
        %v2542 = vpop.permute.xlu0 %2541
        %2543 = vrot.lane.b32.xlu0 %v2468, 64
        %v2544 = vpop.permute.xlu0 %2543
        %2545 = vrot.lane.b32.xlu0 %v2472, 64
        %v2546 = vpop.permute.xlu0 %2545
        %2547 = vrot.lane.b32.xlu0 %v2475, 64
        %v2548 = vpop.permute.xlu0 %2547
        %2549 = vrot.lane.b32.xlu0 %v2479, 64
        %v2550 = vpop.permute.xlu0 %2549
        %2551 = vrot.lane.b32.xlu0 %v2482, 64
        %v2552 = vpop.permute.xlu0 %2551
        %2553 = vrot.lane.b32.xlu0 %v2486, 64
        %v2554 = vpop.permute.xlu0 %2553
        %2555 = vrot.lane.b32.xlu0 %v2489, 64
        %v2556 = vpop.permute.xlu0 %2555
        %2557 = vrot.lane.b32.xlu0 %v2493, 64
        %v2558 = vpop.permute.xlu0 %2557
        %2559 = vrot.lane.b32.xlu0 %v2496, 64
        %v2560 = vpop.permute.xlu0 %2559
        %vm2593 = vcmask 781824
        %2594 = vst.msk [vmem:[#allocation3] sm:$0xf] %vm2593, %v2498
        %2595 = vst.msk [vmem:[#allocation3 + $0xc] sm:$0xf] %vm2593, %v2500
        %2596 = vst.msk [vmem:[#allocation3 + $0x18] sm:$0xf] %vm2593, %v2502
        %2597 = vst.msk [vmem:[#allocation3 + $0x24] sm:$0xf] %vm2593, %v2504
        %2598 = vst.msk [vmem:[#allocation3 + $0x30] sm:$0xf] %vm2593, %v2506
        %2599 = vst.msk [vmem:[#allocation3 + $0x3c] sm:$0xf] %vm2593, %v2508
        %2600 = vst.msk [vmem:[#allocation3 + $0x48] sm:$0xf] %vm2593, %v2510
        %2601 = vst.msk [vmem:[#allocation3 + $0x54] sm:$0xf] %vm2593, %v2512
        %2602 = vst.msk [vmem:[#allocation3 + $0x60] sm:$0xf] %vm2593, %v2514
        %2603 = vst.msk [vmem:[#allocation3 + $0x6c] sm:$0xf] %vm2593, %v2516
        %2604 = vst.msk [vmem:[#allocation3 + $0x78] sm:$0xf] %vm2593, %v2518
        %2605 = vst.msk [vmem:[#allocation3 + $0x84] sm:$0xf] %vm2593, %v2520
        %2606 = vst.msk [vmem:[#allocation3 + $0x90] sm:$0xf] %vm2593, %v2522
        %2607 = vst.msk [vmem:[#allocation3 + $0x9c] sm:$0xf] %vm2593, %v2524
        %2608 = vst.msk [vmem:[#allocation3 + $0xa8] sm:$0xf] %vm2593, %v2526
        %2609 = vst.msk [vmem:[#allocation3 + $0xb4] sm:$0xf] %vm2593, %v2528
        %2610 = vst.msk [vmem:[#allocation3 + $0xc0] sm:$0xf] %vm2593, %v2530
        %2611 = vst.msk [vmem:[#allocation3 + $0xcc] sm:$0xf] %vm2593, %v2532
        %2612 = vst.msk [vmem:[#allocation3 + $0xd8] sm:$0xf] %vm2593, %v2534
        %2613 = vst.msk [vmem:[#allocation3 + $0xe4] sm:$0xf] %vm2593, %v2536
        %2614 = vst.msk [vmem:[#allocation3 + $0xf0] sm:$0xf] %vm2593, %v2538
        %2615 = vst.msk [vmem:[#allocation3 + $0xfc] sm:$0xf] %vm2593, %v2540
        %2616 = vst.msk [vmem:[#allocation3 + $0x108] sm:$0xf] %vm2593, %v2542
        %2617 = vst.msk [vmem:[#allocation3 + $0x114] sm:$0xf] %vm2593, %v2544
        %2618 = vst.msk [vmem:[#allocation3 + $0x120] sm:$0xf] %vm2593, %v2546
        %2619 = vst.msk [vmem:[#allocation3 + $0x12c] sm:$0xf] %vm2593, %v2548
        %2620 = vst.msk [vmem:[#allocation3 + $0x138] sm:$0xf] %vm2593, %v2550
        %2621 = vst.msk [vmem:[#allocation3 + $0x144] sm:$0xf] %vm2593, %v2552
        %2622 = vst.msk [vmem:[#allocation3 + $0x150] sm:$0xf] %vm2593, %v2554
        %2623 = vst.msk [vmem:[#allocation3 + $0x15c] sm:$0xf] %vm2593, %v2556
        %2624 = vst.msk [vmem:[#allocation3 + $0x168] sm:$0xf] %vm2593, %v2558
        %2625 = vst.msk [vmem:[#allocation3 + $0x174] sm:$0xf] %vm2593, %v2560
        %v2626 = vld [vmem:[%s1543] sm:$0xf]
        %v2627 = vld [vmem:[%s1543 + $0x4] sm:$0xf]
        %v2628 = vld [vmem:[%s1543 + $0xc] sm:$0xf]
        %v2629 = vld [vmem:[%s1543 + $0x10] sm:$0xf]
        %v2630 = vld [vmem:[%s1543 + $0x18] sm:$0xf]
        %v2631 = vld [vmem:[%s1543 + $0x1c] sm:$0xf]
        %v2632 = vld [vmem:[%s1543 + $0x24] sm:$0xf]
        %v2633 = vld [vmem:[%s1543 + $0x28] sm:$0xf]
        %v2634 = vld [vmem:[%s1543 + $0x30] sm:$0xf]
        %v2635 = vld [vmem:[%s1543 + $0x34] sm:$0xf]
        %v2636 = vld [vmem:[%s1543 + $0x3c] sm:$0xf]
        %v2637 = vld [vmem:[%s1543 + $0x40] sm:$0xf]
        %v2638 = vld [vmem:[%s1543 + $0x48] sm:$0xf]
        %v2639 = vld [vmem:[%s1543 + $0x4c] sm:$0xf]
        %v2640 = vld [vmem:[%s1543 + $0x54] sm:$0xf]
        %v2641 = vld [vmem:[%s1543 + $0x58] sm:$0xf]
        %v2642 = vld [vmem:[%s1543 + $0x60] sm:$0xf]
        %v2643 = vld [vmem:[%s1543 + $0x64] sm:$0xf]
        %v2644 = vld [vmem:[%s1543 + $0x6c] sm:$0xf]
        %v2645 = vld [vmem:[%s1543 + $0x70] sm:$0xf]
        %v2646 = vld [vmem:[%s1543 + $0x78] sm:$0xf]
        %v2647 = vld [vmem:[%s1543 + $0x7c] sm:$0xf]
        %v2648 = vld [vmem:[%s1543 + $0x84] sm:$0xf]
        %v2649 = vld [vmem:[%s1543 + $0x88] sm:$0xf]
        %v2650 = vld [vmem:[%s1543 + $0x90] sm:$0xf]
        %v2651 = vld [vmem:[%s1543 + $0x94] sm:$0xf]
        %v2652 = vld [vmem:[%s1543 + $0x9c] sm:$0xf]
        %v2653 = vld [vmem:[%s1543 + $0xa0] sm:$0xf]
        %v2654 = vld [vmem:[%s1543 + $0xa8] sm:$0xf]
        %v2655 = vld [vmem:[%s1543 + $0xac] sm:$0xf]
        %v2656 = vld [vmem:[%s1543 + $0xb4] sm:$0xf]
        %v2657 = vld [vmem:[%s1543 + $0xb8] sm:$0xf]
        %2690 = vrot.lane.b32.xlu0 %v2626, 96
        %v2691 = vpop.permute.xlu0 %2690
        %2692 = vrot.lane.b32.xlu0 %v2627, 96
        %v2693 = vpop.permute.xlu0 %2692
        %2694 = vrot.lane.b32.xlu0 %v2628, 96
        %v2695 = vpop.permute.xlu0 %2694
        %2696 = vrot.lane.b32.xlu0 %v2629, 96
        %v2697 = vpop.permute.xlu0 %2696
        %2698 = vrot.lane.b32.xlu0 %v2630, 96
        %v2699 = vpop.permute.xlu0 %2698
        %2700 = vrot.lane.b32.xlu0 %v2631, 96
        %v2701 = vpop.permute.xlu0 %2700
        %2702 = vrot.lane.b32.xlu0 %v2632, 96
        %v2703 = vpop.permute.xlu0 %2702
        %2704 = vrot.lane.b32.xlu0 %v2633, 96
        %v2705 = vpop.permute.xlu0 %2704
        %2706 = vrot.lane.b32.xlu0 %v2634, 96
        %v2707 = vpop.permute.xlu0 %2706
        %2708 = vrot.lane.b32.xlu0 %v2635, 96
        %v2709 = vpop.permute.xlu0 %2708
        %2710 = vrot.lane.b32.xlu0 %v2636, 96
        %v2711 = vpop.permute.xlu0 %2710
        %2712 = vrot.lane.b32.xlu0 %v2637, 96
        %v2713 = vpop.permute.xlu0 %2712
        %2714 = vrot.lane.b32.xlu0 %v2638, 96
        %v2715 = vpop.permute.xlu0 %2714
        %2716 = vrot.lane.b32.xlu0 %v2639, 96
        %v2717 = vpop.permute.xlu0 %2716
        %2718 = vrot.lane.b32.xlu0 %v2640, 96
        %v2719 = vpop.permute.xlu0 %2718
        %2720 = vrot.lane.b32.xlu0 %v2641, 96
        %v2721 = vpop.permute.xlu0 %2720
        %2722 = vrot.lane.b32.xlu0 %v2642, 96
        %v2723 = vpop.permute.xlu0 %2722
        %2724 = vrot.lane.b32.xlu0 %v2643, 96
        %v2725 = vpop.permute.xlu0 %2724
        %2726 = vrot.lane.b32.xlu0 %v2644, 96
        %v2727 = vpop.permute.xlu0 %2726
        %2728 = vrot.lane.b32.xlu0 %v2645, 96
        %v2729 = vpop.permute.xlu0 %2728
        %2730 = vrot.lane.b32.xlu0 %v2646, 96
        %v2731 = vpop.permute.xlu0 %2730
        %2732 = vrot.lane.b32.xlu0 %v2647, 96
        %v2733 = vpop.permute.xlu0 %2732
        %2734 = vrot.lane.b32.xlu0 %v2648, 96
        %v2735 = vpop.permute.xlu0 %2734
        %2736 = vrot.lane.b32.xlu0 %v2649, 96
        %v2737 = vpop.permute.xlu0 %2736
        %2738 = vrot.lane.b32.xlu0 %v2650, 96
        %v2739 = vpop.permute.xlu0 %2738
        %2740 = vrot.lane.b32.xlu0 %v2651, 96
        %v2741 = vpop.permute.xlu0 %2740
        %2742 = vrot.lane.b32.xlu0 %v2652, 96
        %v2743 = vpop.permute.xlu0 %2742
        %2744 = vrot.lane.b32.xlu0 %v2653, 96
        %v2745 = vpop.permute.xlu0 %2744
        %2746 = vrot.lane.b32.xlu0 %v2654, 96
        %v2747 = vpop.permute.xlu0 %2746
        %2748 = vrot.lane.b32.xlu0 %v2655, 96
        %v2749 = vpop.permute.xlu0 %2748
        %2750 = vrot.lane.b32.xlu0 %v2656, 96
        %v2751 = vpop.permute.xlu0 %2750
        %2752 = vrot.lane.b32.xlu0 %v2657, 96
        %v2753 = vpop.permute.xlu0 %2752
        %vm2786 = vcmask 1044224
        %2787 = vst.msk [vmem:[#allocation3] sm:$0xf] %vm2786, %v2691
        %2788 = vst.msk [vmem:[#allocation3 + $0xc] sm:$0xf] %vm2786, %v2693
        %2789 = vst.msk [vmem:[#allocation3 + $0x18] sm:$0xf] %vm2786, %v2695
        %2790 = vst.msk [vmem:[#allocation3 + $0x24] sm:$0xf] %vm2786, %v2697
        %2791 = vst.msk [vmem:[#allocation3 + $0x30] sm:$0xf] %vm2786, %v2699
        %2792 = vst.msk [vmem:[#allocation3 + $0x3c] sm:$0xf] %vm2786, %v2701
        %2793 = vst.msk [vmem:[#allocation3 + $0x48] sm:$0xf] %vm2786, %v2703
        %2794 = vst.msk [vmem:[#allocation3 + $0x54] sm:$0xf] %vm2786, %v2705
        %2795 = vst.msk [vmem:[#allocation3 + $0x60] sm:$0xf] %vm2786, %v2707
        %2796 = vst.msk [vmem:[#allocation3 + $0x6c] sm:$0xf] %vm2786, %v2709
        %2797 = vst.msk [vmem:[#allocation3 + $0x78] sm:$0xf] %vm2786, %v2711
        %2798 = vst.msk [vmem:[#allocation3 + $0x84] sm:$0xf] %vm2786, %v2713
        %2799 = vst.msk [vmem:[#allocation3 + $0x90] sm:$0xf] %vm2786, %v2715
        %2800 = vst.msk [vmem:[#allocation3 + $0x9c] sm:$0xf] %vm2786, %v2717
        %2801 = vst.msk [vmem:[#allocation3 + $0xa8] sm:$0xf] %vm2786, %v2719
        %2802 = vst.msk [vmem:[#allocation3 + $0xb4] sm:$0xf] %vm2786, %v2721
        %2803 = vst.msk [vmem:[#allocation3 + $0xc0] sm:$0xf] %vm2786, %v2723
        %2804 = vst.msk [vmem:[#allocation3 + $0xcc] sm:$0xf] %vm2786, %v2725
        %2805 = vst.msk [vmem:[#allocation3 + $0xd8] sm:$0xf] %vm2786, %v2727
        %2806 = vst.msk [vmem:[#allocation3 + $0xe4] sm:$0xf] %vm2786, %v2729
        %2807 = vst.msk [vmem:[#allocation3 + $0xf0] sm:$0xf] %vm2786, %v2731
        %2808 = vst.msk [vmem:[#allocation3 + $0xfc] sm:$0xf] %vm2786, %v2733
        %2809 = vst.msk [vmem:[#allocation3 + $0x108] sm:$0xf] %vm2786, %v2735
        %2810 = vst.msk [vmem:[#allocation3 + $0x114] sm:$0xf] %vm2786, %v2737
        %2811 = vst.msk [vmem:[#allocation3 + $0x120] sm:$0xf] %vm2786, %v2739
        %2812 = vst.msk [vmem:[#allocation3 + $0x12c] sm:$0xf] %vm2786, %v2741
        %2813 = vst.msk [vmem:[#allocation3 + $0x138] sm:$0xf] %vm2786, %v2743
        %2814 = vst.msk [vmem:[#allocation3 + $0x144] sm:$0xf] %vm2786, %v2745
        %2815 = vst.msk [vmem:[#allocation3 + $0x150] sm:$0xf] %vm2786, %v2747
        %2816 = vst.msk [vmem:[#allocation3 + $0x15c] sm:$0xf] %vm2786, %v2749
        %2817 = vst.msk [vmem:[#allocation3 + $0x168] sm:$0xf] %vm2786, %v2751
        %2818 = vst.msk [vmem:[#allocation3 + $0x174] sm:$0xf] %vm2786, %v2753
        %v2819 = vld [vmem:[%s1543] sm:$0xf]
        %v2820 = vld [vmem:[%s1543 + $0x4] sm:$0xf]
        %v2821 = vld [vmem:[%s1543 + $0x8] sm:$0x1]
        %v2822 = vld [vmem:[%s1543 + $0xc] sm:$0xf]
        %v2823 = vld [vmem:[%s1543 + $0x10] sm:$0xf]
        %v2824 = vld [vmem:[%s1543 + $0x14] sm:$0x1]
        %v2825 = vld [vmem:[%s1543 + $0x18] sm:$0xf]
        %v2826 = vld [vmem:[%s1543 + $0x1c] sm:$0xf]
        %v2827 = vld [vmem:[%s1543 + $0x20] sm:$0x1]
        %v2828 = vld [vmem:[%s1543 + $0x24] sm:$0xf]
        %v2829 = vld [vmem:[%s1543 + $0x28] sm:$0xf]
        %v2830 = vld [vmem:[%s1543 + $0x2c] sm:$0x1]
        %v2831 = vld [vmem:[%s1543 + $0x30] sm:$0xf]
        %v2832 = vld [vmem:[%s1543 + $0x34] sm:$0xf]
        %v2833 = vld [vmem:[%s1543 + $0x38] sm:$0x1]
        %v2834 = vld [vmem:[%s1543 + $0x3c] sm:$0xf]
        %v2835 = vld [vmem:[%s1543 + $0x40] sm:$0xf]
        %v2836 = vld [vmem:[%s1543 + $0x44] sm:$0x1]
        %v2837 = vld [vmem:[%s1543 + $0x48] sm:$0xf]
        %v2838 = vld [vmem:[%s1543 + $0x4c] sm:$0xf]
        %v2839 = vld [vmem:[%s1543 + $0x50] sm:$0x1]
        %v2840 = vld [vmem:[%s1543 + $0x54] sm:$0xf]
        %v2841 = vld [vmem:[%s1543 + $0x58] sm:$0xf]
        %v2842 = vld [vmem:[%s1543 + $0x5c] sm:$0x1]
        %v2843 = vld [vmem:[%s1543 + $0x60] sm:$0xf]
        %v2844 = vld [vmem:[%s1543 + $0x64] sm:$0xf]
        %v2845 = vld [vmem:[%s1543 + $0x68] sm:$0x1]
        %v2846 = vld [vmem:[%s1543 + $0x6c] sm:$0xf]
        %v2847 = vld [vmem:[%s1543 + $0x70] sm:$0xf]
        %v2848 = vld [vmem:[%s1543 + $0x74] sm:$0x1]
        %v2849 = vld [vmem:[%s1543 + $0x78] sm:$0xf]
        %v2850 = vld [vmem:[%s1543 + $0x7c] sm:$0xf]
        %v2851 = vld [vmem:[%s1543 + $0x80] sm:$0x1]
        %v2852 = vld [vmem:[%s1543 + $0x84] sm:$0xf]
        %v2853 = vld [vmem:[%s1543 + $0x88] sm:$0xf]
        %v2854 = vld [vmem:[%s1543 + $0x8c] sm:$0x1]
        %v2855 = vld [vmem:[%s1543 + $0x90] sm:$0xf]
        %v2856 = vld [vmem:[%s1543 + $0x94] sm:$0xf]
        %v2857 = vld [vmem:[%s1543 + $0x98] sm:$0x1]
        %v2858 = vld [vmem:[%s1543 + $0x9c] sm:$0xf]
        %v2859 = vld [vmem:[%s1543 + $0xa0] sm:$0xf]
        %v2860 = vld [vmem:[%s1543 + $0xa4] sm:$0x1]
        %v2861 = vld [vmem:[%s1543 + $0xa8] sm:$0xf]
        %v2862 = vld [vmem:[%s1543 + $0xac] sm:$0xf]
        %v2863 = vld [vmem:[%s1543 + $0xb0] sm:$0x1]
        %v2864 = vld [vmem:[%s1543 + $0xb4] sm:$0xf]
        %v2865 = vld [vmem:[%s1543 + $0xb8] sm:$0xf]
        %v2866 = vld [vmem:[%s1543 + $0xbc] sm:$0x1]
        %v2868 = vshrl.u32 %v2819, 16
        %v2870 = vrot.slane %v2868, 4
        %v2871 = vshll.u32 %v2819, 16
        %v2873 = vrot.slane %v2871, 5
        %v2874 = vor.u32 %v2870, %v2873
        %v2875 = vrot.slane %v2874, 4
        %v2877 = vshll.u32 %v2820, 16
        %v2879 = vrot.slane %v2877, 5
        %v2880 = vsel %vm1772, %v2875, %v2879
        %v2881 = vshrl.u32 %v2820, 16
        %v2883 = vrot.slane %v2881, 4
        %v2884 = vor.u32 %v2883, %v2879
        %v2885 = vrot.slane %v2884, 4
        %v2887 = vshll.u32 %v2821, 16
        %v2889 = vrot.slane %v2887, 5
        %v2890 = vsel %vm1772, %v2885, %v2889
        %v2892 = vshrl.u32 %v2822, 16
        %v2894 = vrot.slane %v2892, 4
        %v2895 = vshll.u32 %v2822, 16
        %v2897 = vrot.slane %v2895, 5
        %v2898 = vor.u32 %v2894, %v2897
        %v2899 = vrot.slane %v2898, 4
        %v2901 = vshll.u32 %v2823, 16
        %v2903 = vrot.slane %v2901, 5
        %v2904 = vsel %vm1772, %v2899, %v2903
        %v2905 = vshrl.u32 %v2823, 16
        %v2907 = vrot.slane %v2905, 4
        %v2908 = vor.u32 %v2907, %v2903
        %v2909 = vrot.slane %v2908, 4
        %v2911 = vshll.u32 %v2824, 16
        %v2913 = vrot.slane %v2911, 5
        %v2914 = vsel %vm1772, %v2909, %v2913
        %v2916 = vshrl.u32 %v2825, 16
        %v2918 = vrot.slane %v2916, 4
        %v2919 = vshll.u32 %v2825, 16
        %v2921 = vrot.slane %v2919, 5
        %v2922 = vor.u32 %v2918, %v2921
        %v2923 = vrot.slane %v2922, 4
        %v2925 = vshll.u32 %v2826, 16
        %v2927 = vrot.slane %v2925, 5
        %v2928 = vsel %vm1772, %v2923, %v2927
        %v2929 = vshrl.u32 %v2826, 16
        %v2931 = vrot.slane %v2929, 4
        %v2932 = vor.u32 %v2931, %v2927
        %v2933 = vrot.slane %v2932, 4
        %v2935 = vshll.u32 %v2827, 16
        %v2937 = vrot.slane %v2935, 5
        %v2938 = vsel %vm1772, %v2933, %v2937
        %v2940 = vshrl.u32 %v2828, 16
        %v2942 = vrot.slane %v2940, 4
        %v2943 = vshll.u32 %v2828, 16
        %v2945 = vrot.slane %v2943, 5
        %v2946 = vor.u32 %v2942, %v2945
        %v2947 = vrot.slane %v2946, 4
        %v2949 = vshll.u32 %v2829, 16
        %v2951 = vrot.slane %v2949, 5
        %v2952 = vsel %vm1772, %v2947, %v2951
        %v2953 = vshrl.u32 %v2829, 16
        %v2955 = vrot.slane %v2953, 4
        %v2956 = vor.u32 %v2955, %v2951
        %v2957 = vrot.slane %v2956, 4
        %v2959 = vshll.u32 %v2830, 16
        %v2961 = vrot.slane %v2959, 5
        %v2962 = vsel %vm1772, %v2957, %v2961
        %v2964 = vshrl.u32 %v2831, 16
        %v2966 = vrot.slane %v2964, 4
        %v2967 = vshll.u32 %v2831, 16
        %v2969 = vrot.slane %v2967, 5
        %v2970 = vor.u32 %v2966, %v2969
        %v2971 = vrot.slane %v2970, 4
        %v2973 = vshll.u32 %v2832, 16
        %v2975 = vrot.slane %v2973, 5
        %v2976 = vsel %vm1772, %v2971, %v2975
        %v2977 = vshrl.u32 %v2832, 16
        %v2979 = vrot.slane %v2977, 4
        %v2980 = vor.u32 %v2979, %v2975
        %v2981 = vrot.slane %v2980, 4
        %v2983 = vshll.u32 %v2833, 16
        %v2985 = vrot.slane %v2983, 5
        %v2986 = vsel %vm1772, %v2981, %v2985
        %v2988 = vshrl.u32 %v2834, 16
        %v2990 = vrot.slane %v2988, 4
        %v2991 = vshll.u32 %v2834, 16
        %v2993 = vrot.slane %v2991, 5
        %v2994 = vor.u32 %v2990, %v2993
        %v2995 = vrot.slane %v2994, 4
        %v2997 = vshll.u32 %v2835, 16
        %v2999 = vrot.slane %v2997, 5
        %v3000 = vsel %vm1772, %v2995, %v2999
        %v3001 = vshrl.u32 %v2835, 16
        %v3003 = vrot.slane %v3001, 4
        %v3004 = vor.u32 %v3003, %v2999
        %v3005 = vrot.slane %v3004, 4
        %v3007 = vshll.u32 %v2836, 16
        %v3009 = vrot.slane %v3007, 5
        %v3010 = vsel %vm1772, %v3005, %v3009
        %v3012 = vshrl.u32 %v2837, 16
        %v3014 = vrot.slane %v3012, 4
        %v3015 = vshll.u32 %v2837, 16
        %v3017 = vrot.slane %v3015, 5
        %v3018 = vor.u32 %v3014, %v3017
        %v3019 = vrot.slane %v3018, 4
        %v3021 = vshll.u32 %v2838, 16
        %v3023 = vrot.slane %v3021, 5
        %v3024 = vsel %vm1772, %v3019, %v3023
        %v3025 = vshrl.u32 %v2838, 16
        %v3027 = vrot.slane %v3025, 4
        %v3028 = vor.u32 %v3027, %v3023
        %v3029 = vrot.slane %v3028, 4
        %v3031 = vshll.u32 %v2839, 16
        %v3033 = vrot.slane %v3031, 5
        %v3034 = vsel %vm1772, %v3029, %v3033
        %v3036 = vshrl.u32 %v2840, 16
        %v3038 = vrot.slane %v3036, 4
        %v3039 = vshll.u32 %v2840, 16
        %v3041 = vrot.slane %v3039, 5
        %v3042 = vor.u32 %v3038, %v3041
        %v3043 = vrot.slane %v3042, 4
        %v3045 = vshll.u32 %v2841, 16
        %v3047 = vrot.slane %v3045, 5
        %v3048 = vsel %vm1772, %v3043, %v3047
        %v3049 = vshrl.u32 %v2841, 16
        %v3051 = vrot.slane %v3049, 4
        %v3052 = vor.u32 %v3051, %v3047
        %v3053 = vrot.slane %v3052, 4
        %v3055 = vshll.u32 %v2842, 16
        %v3057 = vrot.slane %v3055, 5
        %v3058 = vsel %vm1772, %v3053, %v3057
        %v3060 = vshrl.u32 %v2843, 16
        %v3062 = vrot.slane %v3060, 4
        %v3063 = vshll.u32 %v2843, 16
        %v3065 = vrot.slane %v3063, 5
        %v3066 = vor.u32 %v3062, %v3065
        %v3067 = vrot.slane %v3066, 4
        %v3069 = vshll.u32 %v2844, 16
        %v3071 = vrot.slane %v3069, 5
        %v3072 = vsel %vm1772, %v3067, %v3071
        %v3073 = vshrl.u32 %v2844, 16
        %v3075 = vrot.slane %v3073, 4
        %v3076 = vor.u32 %v3075, %v3071
        %v3077 = vrot.slane %v3076, 4
        %v3079 = vshll.u32 %v2845, 16
        %v3081 = vrot.slane %v3079, 5
        %v3082 = vsel %vm1772, %v3077, %v3081
        %v3084 = vshrl.u32 %v2846, 16
        %v3086 = vrot.slane %v3084, 4
        %v3087 = vshll.u32 %v2846, 16
        %v3089 = vrot.slane %v3087, 5
        %v3090 = vor.u32 %v3086, %v3089
        %v3091 = vrot.slane %v3090, 4
        %v3093 = vshll.u32 %v2847, 16
        %v3095 = vrot.slane %v3093, 5
        %v3096 = vsel %vm1772, %v3091, %v3095
        %v3097 = vshrl.u32 %v2847, 16
        %v3099 = vrot.slane %v3097, 4
        %v3100 = vor.u32 %v3099, %v3095
        %v3101 = vrot.slane %v3100, 4
        %v3103 = vshll.u32 %v2848, 16
        %v3105 = vrot.slane %v3103, 5
        %v3106 = vsel %vm1772, %v3101, %v3105
        %v3108 = vshrl.u32 %v2849, 16
        %v3110 = vrot.slane %v3108, 4
        %v3111 = vshll.u32 %v2849, 16
        %v3113 = vrot.slane %v3111, 5
        %v3114 = vor.u32 %v3110, %v3113
        %v3115 = vrot.slane %v3114, 4
        %v3117 = vshll.u32 %v2850, 16
        %v3119 = vrot.slane %v3117, 5
        %v3120 = vsel %vm1772, %v3115, %v3119
        %v3121 = vshrl.u32 %v2850, 16
        %v3123 = vrot.slane %v3121, 4
        %v3124 = vor.u32 %v3123, %v3119
        %v3125 = vrot.slane %v3124, 4
        %v3127 = vshll.u32 %v2851, 16
        %v3129 = vrot.slane %v3127, 5
        %v3130 = vsel %vm1772, %v3125, %v3129
        %v3132 = vshrl.u32 %v2852, 16
        %v3134 = vrot.slane %v3132, 4
        %v3135 = vshll.u32 %v2852, 16
        %v3137 = vrot.slane %v3135, 5
        %v3138 = vor.u32 %v3134, %v3137
        %v3139 = vrot.slane %v3138, 4
        %v3141 = vshll.u32 %v2853, 16
        %v3143 = vrot.slane %v3141, 5
        %v3144 = vsel %vm1772, %v3139, %v3143
        %v3145 = vshrl.u32 %v2853, 16
        %v3147 = vrot.slane %v3145, 4
        %v3148 = vor.u32 %v3147, %v3143
        %v3149 = vrot.slane %v3148, 4
        %v3151 = vshll.u32 %v2854, 16
        %v3153 = vrot.slane %v3151, 5
        %v3154 = vsel %vm1772, %v3149, %v3153
        %v3156 = vshrl.u32 %v2855, 16
        %v3158 = vrot.slane %v3156, 4
        %v3159 = vshll.u32 %v2855, 16
        %v3161 = vrot.slane %v3159, 5
        %v3162 = vor.u32 %v3158, %v3161
        %v3163 = vrot.slane %v3162, 4
        %v3165 = vshll.u32 %v2856, 16
        %v3167 = vrot.slane %v3165, 5
        %v3168 = vsel %vm1772, %v3163, %v3167
        %v3169 = vshrl.u32 %v2856, 16
        %v3171 = vrot.slane %v3169, 4
        %v3172 = vor.u32 %v3171, %v3167
        %v3173 = vrot.slane %v3172, 4
        %v3175 = vshll.u32 %v2857, 16
        %v3177 = vrot.slane %v3175, 5
        %v3178 = vsel %vm1772, %v3173, %v3177
        %v3180 = vshrl.u32 %v2858, 16
        %v3182 = vrot.slane %v3180, 4
        %v3183 = vshll.u32 %v2858, 16
        %v3185 = vrot.slane %v3183, 5
        %v3186 = vor.u32 %v3182, %v3185
        %v3187 = vrot.slane %v3186, 4
        %v3189 = vshll.u32 %v2859, 16
        %v3191 = vrot.slane %v3189, 5
        %v3192 = vsel %vm1772, %v3187, %v3191
        %v3193 = vshrl.u32 %v2859, 16
        %v3195 = vrot.slane %v3193, 4
        %v3196 = vor.u32 %v3195, %v3191
        %v3197 = vrot.slane %v3196, 4
        %v3199 = vshll.u32 %v2860, 16
        %v3201 = vrot.slane %v3199, 5
        %v3202 = vsel %vm1772, %v3197, %v3201
        %v3204 = vshrl.u32 %v2861, 16
        %v3206 = vrot.slane %v3204, 4
        %v3207 = vshll.u32 %v2861, 16
        %v3209 = vrot.slane %v3207, 5
        %v3210 = vor.u32 %v3206, %v3209
        %v3211 = vrot.slane %v3210, 4
        %v3213 = vshll.u32 %v2862, 16
        %v3215 = vrot.slane %v3213, 5
        %v3216 = vsel %vm1772, %v3211, %v3215
        %v3217 = vshrl.u32 %v2862, 16
        %v3219 = vrot.slane %v3217, 4
        %v3220 = vor.u32 %v3219, %v3215
        %v3221 = vrot.slane %v3220, 4
        %v3223 = vshll.u32 %v2863, 16
        %v3225 = vrot.slane %v3223, 5
        %v3226 = vsel %vm1772, %v3221, %v3225
        %v3228 = vshrl.u32 %v2864, 16
        %v3230 = vrot.slane %v3228, 4
        %v3231 = vshll.u32 %v2864, 16
        %v3233 = vrot.slane %v3231, 5
        %v3234 = vor.u32 %v3230, %v3233
        %v3235 = vrot.slane %v3234, 4
        %v3237 = vshll.u32 %v2865, 16
        %v3239 = vrot.slane %v3237, 5
        %v3240 = vsel %vm1772, %v3235, %v3239
        %v3241 = vshrl.u32 %v2865, 16
        %v3243 = vrot.slane %v3241, 4
        %v3244 = vor.u32 %v3243, %v3239
        %v3245 = vrot.slane %v3244, 4
        %v3247 = vshll.u32 %v2866, 16
        %v3249 = vrot.slane %v3247, 5
        %v3250 = vsel %vm1772, %v3245, %v3249
        %3283 = vst.msk [vmem:[#allocation3 + $0x4] sm:$0xf] %vm1003, %v2880
        %3284 = vst.msk [vmem:[#allocation3 + $0x10] sm:$0xf] %vm1003, %v2890
        %3285 = vst.msk [vmem:[#allocation3 + $0x1c] sm:$0xf] %vm1003, %v2904
        %3286 = vst.msk [vmem:[#allocation3 + $0x28] sm:$0xf] %vm1003, %v2914
        %3287 = vst.msk [vmem:[#allocation3 + $0x34] sm:$0xf] %vm1003, %v2928
        %3288 = vst.msk [vmem:[#allocation3 + $0x40] sm:$0xf] %vm1003, %v2938
        %3289 = vst.msk [vmem:[#allocation3 + $0x4c] sm:$0xf] %vm1003, %v2952
        %3290 = vst.msk [vmem:[#allocation3 + $0x58] sm:$0xf] %vm1003, %v2962
        %3291 = vst.msk [vmem:[#allocation3 + $0x64] sm:$0xf] %vm1003, %v2976
        %3292 = vst.msk [vmem:[#allocation3 + $0x70] sm:$0xf] %vm1003, %v2986
        %3293 = vst.msk [vmem:[#allocation3 + $0x7c] sm:$0xf] %vm1003, %v3000
        %3294 = vst.msk [vmem:[#allocation3 + $0x88] sm:$0xf] %vm1003, %v3010
        %3295 = vst.msk [vmem:[#allocation3 + $0x94] sm:$0xf] %vm1003, %v3024
        %3296 = vst.msk [vmem:[#allocation3 + $0xa0] sm:$0xf] %vm1003, %v3034
        %3297 = vst.msk [vmem:[#allocation3 + $0xac] sm:$0xf] %vm1003, %v3048
        %3298 = vst.msk [vmem:[#allocation3 + $0xb8] sm:$0xf] %vm1003, %v3058
        %3299 = vst.msk [vmem:[#allocation3 + $0xc4] sm:$0xf] %vm1003, %v3072
        %3300 = vst.msk [vmem:[#allocation3 + $0xd0] sm:$0xf] %vm1003, %v3082
        %3301 = vst.msk [vmem:[#allocation3 + $0xdc] sm:$0xf] %vm1003, %v3096
        %3302 = vst.msk [vmem:[#allocation3 + $0xe8] sm:$0xf] %vm1003, %v3106
        %3303 = vst.msk [vmem:[#allocation3 + $0xf4] sm:$0xf] %vm1003, %v3120
        %3304 = vst.msk [vmem:[#allocation3 + $0x100] sm:$0xf] %vm1003, %v3130
        %3305 = vst.msk [vmem:[#allocation3 + $0x10c] sm:$0xf] %vm1003, %v3144
        %3306 = vst.msk [vmem:[#allocation3 + $0x118] sm:$0xf] %vm1003, %v3154
        %3307 = vst.msk [vmem:[#allocation3 + $0x124] sm:$0xf] %vm1003, %v3168
        %3308 = vst.msk [vmem:[#allocation3 + $0x130] sm:$0xf] %vm1003, %v3178
        %3309 = vst.msk [vmem:[#allocation3 + $0x13c] sm:$0xf] %vm1003, %v3192
        %3310 = vst.msk [vmem:[#allocation3 + $0x148] sm:$0xf] %vm1003, %v3202
        %3311 = vst.msk [vmem:[#allocation3 + $0x154] sm:$0xf] %vm1003, %v3216
        %3312 = vst.msk [vmem:[#allocation3 + $0x160] sm:$0xf] %vm1003, %v3226
        %3313 = vst.msk [vmem:[#allocation3 + $0x16c] sm:$0xf] %vm1003, %v3240
        %3314 = vst.msk [vmem:[#allocation3 + $0x178] sm:$0xf] %vm1003, %v3250
        %v3315 = vld [vmem:[%s1543] sm:$0xe]
        %v3316 = vld [vmem:[%s1543 + $0x4] sm:$0xf]
        %v3317 = vld [vmem:[%s1543 + $0x8] sm:$0x1]
        %v3318 = vld [vmem:[%s1543 + $0xc] sm:$0xe]
        %v3319 = vld [vmem:[%s1543 + $0x10] sm:$0xf]
        %v3320 = vld [vmem:[%s1543 + $0x14] sm:$0x1]
        %v3321 = vld [vmem:[%s1543 + $0x18] sm:$0xe]
        %v3322 = vld [vmem:[%s1543 + $0x1c] sm:$0xf]
        %v3323 = vld [vmem:[%s1543 + $0x20] sm:$0x1]
        %v3324 = vld [vmem:[%s1543 + $0x24] sm:$0xe]
        %v3325 = vld [vmem:[%s1543 + $0x28] sm:$0xf]
        %v3326 = vld [vmem:[%s1543 + $0x2c] sm:$0x1]
        %v3327 = vld [vmem:[%s1543 + $0x30] sm:$0xe]
        %v3328 = vld [vmem:[%s1543 + $0x34] sm:$0xf]
        %v3329 = vld [vmem:[%s1543 + $0x38] sm:$0x1]
        %v3330 = vld [vmem:[%s1543 + $0x3c] sm:$0xe]
        %v3331 = vld [vmem:[%s1543 + $0x40] sm:$0xf]
        %v3332 = vld [vmem:[%s1543 + $0x44] sm:$0x1]
        %v3333 = vld [vmem:[%s1543 + $0x48] sm:$0xe]
        %v3334 = vld [vmem:[%s1543 + $0x4c] sm:$0xf]
        %v3335 = vld [vmem:[%s1543 + $0x50] sm:$0x1]
        %v3336 = vld [vmem:[%s1543 + $0x54] sm:$0xe]
        %v3337 = vld [vmem:[%s1543 + $0x58] sm:$0xf]
        %v3338 = vld [vmem:[%s1543 + $0x5c] sm:$0x1]
        %v3339 = vld [vmem:[%s1543 + $0x60] sm:$0xe]
        %v3340 = vld [vmem:[%s1543 + $0x64] sm:$0xf]
        %v3341 = vld [vmem:[%s1543 + $0x68] sm:$0x1]
        %v3342 = vld [vmem:[%s1543 + $0x6c] sm:$0xe]
        %v3343 = vld [vmem:[%s1543 + $0x70] sm:$0xf]
        %v3344 = vld [vmem:[%s1543 + $0x74] sm:$0x1]
        %v3345 = vld [vmem:[%s1543 + $0x78] sm:$0xe]
        %v3346 = vld [vmem:[%s1543 + $0x7c] sm:$0xf]
        %v3347 = vld [vmem:[%s1543 + $0x80] sm:$0x1]
        %v3348 = vld [vmem:[%s1543 + $0x84] sm:$0xe]
        %v3349 = vld [vmem:[%s1543 + $0x88] sm:$0xf]
        %v3350 = vld [vmem:[%s1543 + $0x8c] sm:$0x1]
        %v3351 = vld [vmem:[%s1543 + $0x90] sm:$0xe]
        %v3352 = vld [vmem:[%s1543 + $0x94] sm:$0xf]
        %v3353 = vld [vmem:[%s1543 + $0x98] sm:$0x1]
        %v3354 = vld [vmem:[%s1543 + $0x9c] sm:$0xe]
        %v3355 = vld [vmem:[%s1543 + $0xa0] sm:$0xf]
        %v3356 = vld [vmem:[%s1543 + $0xa4] sm:$0x1]
        %v3357 = vld [vmem:[%s1543 + $0xa8] sm:$0xe]
        %v3358 = vld [vmem:[%s1543 + $0xac] sm:$0xf]
        %v3359 = vld [vmem:[%s1543 + $0xb0] sm:$0x1]
        %v3360 = vld [vmem:[%s1543 + $0xb4] sm:$0xe]
        %v3361 = vld [vmem:[%s1543 + $0xb8] sm:$0xf]
        %v3362 = vld [vmem:[%s1543 + $0xbc] sm:$0x1]
        %v3411 = vrot.slane %v3315, 5
        %v3412 = vrot.slane %v3411, 4
        %v3413 = vrot.slane %v3316, 5
        %v3414 = vsel %vm2384, %v3412, %v3413
        %v3415 = vrot.slane %v3413, 4
        %v3416 = vrot.slane %v3317, 5
        %v3417 = vsel %vm2384, %v3415, %v3416
        %v3418 = vrot.slane %v3318, 5
        %v3419 = vrot.slane %v3418, 4
        %v3420 = vrot.slane %v3319, 5
        %v3421 = vsel %vm2384, %v3419, %v3420
        %v3422 = vrot.slane %v3420, 4
        %v3423 = vrot.slane %v3320, 5
        %v3424 = vsel %vm2384, %v3422, %v3423
        %v3425 = vrot.slane %v3321, 5
        %v3426 = vrot.slane %v3425, 4
        %v3427 = vrot.slane %v3322, 5
        %v3428 = vsel %vm2384, %v3426, %v3427
        %v3429 = vrot.slane %v3427, 4
        %v3430 = vrot.slane %v3323, 5
        %v3431 = vsel %vm2384, %v3429, %v3430
        %v3432 = vrot.slane %v3324, 5
        %v3433 = vrot.slane %v3432, 4
        %v3434 = vrot.slane %v3325, 5
        %v3435 = vsel %vm2384, %v3433, %v3434
        %v3436 = vrot.slane %v3434, 4
        %v3437 = vrot.slane %v3326, 5
        %v3438 = vsel %vm2384, %v3436, %v3437
        %v3439 = vrot.slane %v3327, 5
        %v3440 = vrot.slane %v3439, 4
        %v3441 = vrot.slane %v3328, 5
        %v3442 = vsel %vm2384, %v3440, %v3441
        %v3443 = vrot.slane %v3441, 4
        %v3444 = vrot.slane %v3329, 5
        %v3445 = vsel %vm2384, %v3443, %v3444
        %v3446 = vrot.slane %v3330, 5
        %v3447 = vrot.slane %v3446, 4
        %v3448 = vrot.slane %v3331, 5
        %v3449 = vsel %vm2384, %v3447, %v3448
        %v3450 = vrot.slane %v3448, 4
        %v3451 = vrot.slane %v3332, 5
        %v3452 = vsel %vm2384, %v3450, %v3451
        %v3453 = vrot.slane %v3333, 5
        %v3454 = vrot.slane %v3453, 4
        %v3455 = vrot.slane %v3334, 5
        %v3456 = vsel %vm2384, %v3454, %v3455
        %v3457 = vrot.slane %v3455, 4
        %v3458 = vrot.slane %v3335, 5
        %v3459 = vsel %vm2384, %v3457, %v3458
        %v3460 = vrot.slane %v3336, 5
        %v3461 = vrot.slane %v3460, 4
        %v3462 = vrot.slane %v3337, 5
        %v3463 = vsel %vm2384, %v3461, %v3462
        %v3464 = vrot.slane %v3462, 4
        %v3465 = vrot.slane %v3338, 5
        %v3466 = vsel %vm2384, %v3464, %v3465
        %v3467 = vrot.slane %v3339, 5
        %v3468 = vrot.slane %v3467, 4
        %v3469 = vrot.slane %v3340, 5
        %v3470 = vsel %vm2384, %v3468, %v3469
        %v3471 = vrot.slane %v3469, 4
        %v3472 = vrot.slane %v3341, 5
        %v3473 = vsel %vm2384, %v3471, %v3472
        %v3474 = vrot.slane %v3342, 5
        %v3475 = vrot.slane %v3474, 4
        %v3476 = vrot.slane %v3343, 5
        %v3477 = vsel %vm2384, %v3475, %v3476
        %v3478 = vrot.slane %v3476, 4
        %v3479 = vrot.slane %v3344, 5
        %v3480 = vsel %vm2384, %v3478, %v3479
        %v3481 = vrot.slane %v3345, 5
        %v3482 = vrot.slane %v3481, 4
        %v3483 = vrot.slane %v3346, 5
        %v3484 = vsel %vm2384, %v3482, %v3483
        %v3485 = vrot.slane %v3483, 4
        %v3486 = vrot.slane %v3347, 5
        %v3487 = vsel %vm2384, %v3485, %v3486
        %v3488 = vrot.slane %v3348, 5
        %v3489 = vrot.slane %v3488, 4
        %v3490 = vrot.slane %v3349, 5
        %v3491 = vsel %vm2384, %v3489, %v3490
        %v3492 = vrot.slane %v3490, 4
        %v3493 = vrot.slane %v3350, 5
        %v3494 = vsel %vm2384, %v3492, %v3493
        %v3495 = vrot.slane %v3351, 5
        %v3496 = vrot.slane %v3495, 4
        %v3497 = vrot.slane %v3352, 5
        %v3498 = vsel %vm2384, %v3496, %v3497
        %v3499 = vrot.slane %v3497, 4
        %v3500 = vrot.slane %v3353, 5
        %v3501 = vsel %vm2384, %v3499, %v3500
        %v3502 = vrot.slane %v3354, 5
        %v3503 = vrot.slane %v3502, 4
        %v3504 = vrot.slane %v3355, 5
        %v3505 = vsel %vm2384, %v3503, %v3504
        %v3506 = vrot.slane %v3504, 4
        %v3507 = vrot.slane %v3356, 5
        %v3508 = vsel %vm2384, %v3506, %v3507
        %v3509 = vrot.slane %v3357, 5
        %v3510 = vrot.slane %v3509, 4
        %v3511 = vrot.slane %v3358, 5
        %v3512 = vsel %vm2384, %v3510, %v3511
        %v3513 = vrot.slane %v3511, 4
        %v3514 = vrot.slane %v3359, 5
        %v3515 = vsel %vm2384, %v3513, %v3514
        %v3516 = vrot.slane %v3360, 5
        %v3517 = vrot.slane %v3516, 4
        %v3518 = vrot.slane %v3361, 5
        %v3519 = vsel %vm2384, %v3517, %v3518
        %v3520 = vrot.slane %v3518, 4
        %v3521 = vrot.slane %v3362, 5
        %v3522 = vsel %vm2384, %v3520, %v3521
        %3523 = vrot.lane.b32.xlu0 %v3414, 32
        %v3524 = vpop.permute.xlu0 %3523
        %3525 = vrot.lane.b32.xlu0 %v3417, 32
        %v3526 = vpop.permute.xlu0 %3525
        %3527 = vrot.lane.b32.xlu0 %v3421, 32
        %v3528 = vpop.permute.xlu0 %3527
        %3529 = vrot.lane.b32.xlu0 %v3424, 32
        %v3530 = vpop.permute.xlu0 %3529
        %3531 = vrot.lane.b32.xlu0 %v3428, 32
        %v3532 = vpop.permute.xlu0 %3531
        %3533 = vrot.lane.b32.xlu0 %v3431, 32
        %v3534 = vpop.permute.xlu0 %3533
        %3535 = vrot.lane.b32.xlu0 %v3435, 32
        %v3536 = vpop.permute.xlu0 %3535
        %3537 = vrot.lane.b32.xlu0 %v3438, 32
        %v3538 = vpop.permute.xlu0 %3537
        %3539 = vrot.lane.b32.xlu0 %v3442, 32
        %v3540 = vpop.permute.xlu0 %3539
        %3541 = vrot.lane.b32.xlu0 %v3445, 32
        %v3542 = vpop.permute.xlu0 %3541
        %3543 = vrot.lane.b32.xlu0 %v3449, 32
        %v3544 = vpop.permute.xlu0 %3543
        %3545 = vrot.lane.b32.xlu0 %v3452, 32
        %v3546 = vpop.permute.xlu0 %3545
        %3547 = vrot.lane.b32.xlu0 %v3456, 32
        %v3548 = vpop.permute.xlu0 %3547
        %3549 = vrot.lane.b32.xlu0 %v3459, 32
        %v3550 = vpop.permute.xlu0 %3549
        %3551 = vrot.lane.b32.xlu0 %v3463, 32
        %v3552 = vpop.permute.xlu0 %3551
        %3553 = vrot.lane.b32.xlu0 %v3466, 32
        %v3554 = vpop.permute.xlu0 %3553
        %3555 = vrot.lane.b32.xlu0 %v3470, 32
        %v3556 = vpop.permute.xlu0 %3555
        %3557 = vrot.lane.b32.xlu0 %v3473, 32
        %v3558 = vpop.permute.xlu0 %3557
        %3559 = vrot.lane.b32.xlu0 %v3477, 32
        %v3560 = vpop.permute.xlu0 %3559
        %3561 = vrot.lane.b32.xlu0 %v3480, 32
        %v3562 = vpop.permute.xlu0 %3561
        %3563 = vrot.lane.b32.xlu0 %v3484, 32
        %v3564 = vpop.permute.xlu0 %3563
        %3565 = vrot.lane.b32.xlu0 %v3487, 32
        %v3566 = vpop.permute.xlu0 %3565
        %3567 = vrot.lane.b32.xlu0 %v3491, 32
        %v3568 = vpop.permute.xlu0 %3567
        %3569 = vrot.lane.b32.xlu0 %v3494, 32
        %v3570 = vpop.permute.xlu0 %3569
        %3571 = vrot.lane.b32.xlu0 %v3498, 32
        %v3572 = vpop.permute.xlu0 %3571
        %3573 = vrot.lane.b32.xlu0 %v3501, 32
        %v3574 = vpop.permute.xlu0 %3573
        %3575 = vrot.lane.b32.xlu0 %v3505, 32
        %v3576 = vpop.permute.xlu0 %3575
        %3577 = vrot.lane.b32.xlu0 %v3508, 32
        %v3578 = vpop.permute.xlu0 %3577
        %3579 = vrot.lane.b32.xlu0 %v3512, 32
        %v3580 = vpop.permute.xlu0 %3579
        %3581 = vrot.lane.b32.xlu0 %v3515, 32
        %v3582 = vpop.permute.xlu0 %3581
        %3583 = vrot.lane.b32.xlu0 %v3519, 32
        %v3584 = vpop.permute.xlu0 %3583
        %3585 = vrot.lane.b32.xlu0 %v3522, 32
        %v3586 = vpop.permute.xlu0 %3585
        %3619 = vst.msk [vmem:[#allocation3 + $0x4] sm:$0xf] %vm2253, %v3524
        %3620 = vst.msk [vmem:[#allocation3 + $0x10] sm:$0xf] %vm2253, %v3526
        %3621 = vst.msk [vmem:[#allocation3 + $0x1c] sm:$0xf] %vm2253, %v3528
        %3622 = vst.msk [vmem:[#allocation3 + $0x28] sm:$0xf] %vm2253, %v3530
        %3623 = vst.msk [vmem:[#allocation3 + $0x34] sm:$0xf] %vm2253, %v3532
        %3624 = vst.msk [vmem:[#allocation3 + $0x40] sm:$0xf] %vm2253, %v3534
        %3625 = vst.msk [vmem:[#allocation3 + $0x4c] sm:$0xf] %vm2253, %v3536
        %3626 = vst.msk [vmem:[#allocation3 + $0x58] sm:$0xf] %vm2253, %v3538
        %3627 = vst.msk [vmem:[#allocation3 + $0x64] sm:$0xf] %vm2253, %v3540
        %3628 = vst.msk [vmem:[#allocation3 + $0x70] sm:$0xf] %vm2253, %v3542
        %3629 = vst.msk [vmem:[#allocation3 + $0x7c] sm:$0xf] %vm2253, %v3544
        %3630 = vst.msk [vmem:[#allocation3 + $0x88] sm:$0xf] %vm2253, %v3546
        %3631 = vst.msk [vmem:[#allocation3 + $0x94] sm:$0xf] %vm2253, %v3548
        %3632 = vst.msk [vmem:[#allocation3 + $0xa0] sm:$0xf] %vm2253, %v3550
        %3633 = vst.msk [vmem:[#allocation3 + $0xac] sm:$0xf] %vm2253, %v3552
        %3634 = vst.msk [vmem:[#allocation3 + $0xb8] sm:$0xf] %vm2253, %v3554
        %3635 = vst.msk [vmem:[#allocation3 + $0xc4] sm:$0xf] %vm2253, %v3556
        %3636 = vst.msk [vmem:[#allocation3 + $0xd0] sm:$0xf] %vm2253, %v3558
        %3637 = vst.msk [vmem:[#allocation3 + $0xdc] sm:$0xf] %vm2253, %v3560
        %3638 = vst.msk [vmem:[#allocation3 + $0xe8] sm:$0xf] %vm2253, %v3562
        %3639 = vst.msk [vmem:[#allocation3 + $0xf4] sm:$0xf] %vm2253, %v3564
        %3640 = vst.msk [vmem:[#allocation3 + $0x100] sm:$0xf] %vm2253, %v3566
        %3641 = vst.msk [vmem:[#allocation3 + $0x10c] sm:$0xf] %vm2253, %v3568
        %3642 = vst.msk [vmem:[#allocation3 + $0x118] sm:$0xf] %vm2253, %v3570
        %3643 = vst.msk [vmem:[#allocation3 + $0x124] sm:$0xf] %vm2253, %v3572
        %3644 = vst.msk [vmem:[#allocation3 + $0x130] sm:$0xf] %vm2253, %v3574
        %3645 = vst.msk [vmem:[#allocation3 + $0x13c] sm:$0xf] %vm2253, %v3576
        %3646 = vst.msk [vmem:[#allocation3 + $0x148] sm:$0xf] %vm2253, %v3578
        %3647 = vst.msk [vmem:[#allocation3 + $0x154] sm:$0xf] %vm2253, %v3580
        %3648 = vst.msk [vmem:[#allocation3 + $0x160] sm:$0xf] %vm2253, %v3582
        %3649 = vst.msk [vmem:[#allocation3 + $0x16c] sm:$0xf] %vm2253, %v3584
        %3650 = vst.msk [vmem:[#allocation3 + $0x178] sm:$0xf] %vm2253, %v3586
        %s3651 = scalar_lea.vmem [#allocation2], 24
        %v3652 = vld [vmem:[%s3651] sm:$0xf]
        %v3653 = vld [vmem:[%s3651 + $0x4] sm:$0xf]
        %v3654 = vld [vmem:[%s3651 + $0xc] sm:$0xf]
        %v3655 = vld [vmem:[%s3651 + $0x10] sm:$0xf]
        %v3656 = vld [vmem:[%s3651 + $0x18] sm:$0xf]
        %v3657 = vld [vmem:[%s3651 + $0x1c] sm:$0xf]
        %v3658 = vld [vmem:[%s3651 + $0x24] sm:$0xf]
        %v3659 = vld [vmem:[%s3651 + $0x28] sm:$0xf]
        %v3660 = vld [vmem:[%s3651 + $0x30] sm:$0xf]
        %v3661 = vld [vmem:[%s3651 + $0x34] sm:$0xf]
        %v3662 = vld [vmem:[%s3651 + $0x3c] sm:$0xf]
        %v3663 = vld [vmem:[%s3651 + $0x40] sm:$0xf]
        %v3664 = vld [vmem:[%s3651 + $0x48] sm:$0xf]
        %v3665 = vld [vmem:[%s3651 + $0x4c] sm:$0xf]
        %v3666 = vld [vmem:[%s3651 + $0x54] sm:$0xf]
        %v3667 = vld [vmem:[%s3651 + $0x58] sm:$0xf]
        %v3668 = vld [vmem:[%s3651 + $0x60] sm:$0xf]
        %v3669 = vld [vmem:[%s3651 + $0x64] sm:$0xf]
        %v3670 = vld [vmem:[%s3651 + $0x6c] sm:$0xf]
        %v3671 = vld [vmem:[%s3651 + $0x70] sm:$0xf]
        %v3672 = vld [vmem:[%s3651 + $0x78] sm:$0xf]
        %v3673 = vld [vmem:[%s3651 + $0x7c] sm:$0xf]
        %v3674 = vld [vmem:[%s3651 + $0x84] sm:$0xf]
        %v3675 = vld [vmem:[%s3651 + $0x88] sm:$0xf]
        %v3676 = vld [vmem:[%s3651 + $0x90] sm:$0xf]
        %v3677 = vld [vmem:[%s3651 + $0x94] sm:$0xf]
        %v3678 = vld [vmem:[%s3651 + $0x9c] sm:$0xf]
        %v3679 = vld [vmem:[%s3651 + $0xa0] sm:$0xf]
        %v3680 = vld [vmem:[%s3651 + $0xa8] sm:$0xf]
        %v3681 = vld [vmem:[%s3651 + $0xac] sm:$0xf]
        %v3682 = vld [vmem:[%s3651 + $0xb4] sm:$0xf]
        %v3683 = vld [vmem:[%s3651 + $0xb8] sm:$0xf]
        %3716 = vrot.lane.b32.xlu0 %v3652, 64
        %v3717 = vpop.permute.xlu0 %3716
        %3718 = vrot.lane.b32.xlu0 %v3653, 64
        %v3719 = vpop.permute.xlu0 %3718
        %3720 = vrot.lane.b32.xlu0 %v3654, 64
        %v3721 = vpop.permute.xlu0 %3720
        %3722 = vrot.lane.b32.xlu0 %v3655, 64
        %v3723 = vpop.permute.xlu0 %3722
        %3724 = vrot.lane.b32.xlu0 %v3656, 64
        %v3725 = vpop.permute.xlu0 %3724
        %3726 = vrot.lane.b32.xlu0 %v3657, 64
        %v3727 = vpop.permute.xlu0 %3726
        %3728 = vrot.lane.b32.xlu0 %v3658, 64
        %v3729 = vpop.permute.xlu0 %3728
        %3730 = vrot.lane.b32.xlu0 %v3659, 64
        %v3731 = vpop.permute.xlu0 %3730
        %3732 = vrot.lane.b32.xlu0 %v3660, 64
        %v3733 = vpop.permute.xlu0 %3732
        %3734 = vrot.lane.b32.xlu0 %v3661, 64
        %v3735 = vpop.permute.xlu0 %3734
        %3736 = vrot.lane.b32.xlu0 %v3662, 64
        %v3737 = vpop.permute.xlu0 %3736
        %3738 = vrot.lane.b32.xlu0 %v3663, 64
        %v3739 = vpop.permute.xlu0 %3738
        %3740 = vrot.lane.b32.xlu0 %v3664, 64
        %v3741 = vpop.permute.xlu0 %3740
        %3742 = vrot.lane.b32.xlu0 %v3665, 64
        %v3743 = vpop.permute.xlu0 %3742
        %3744 = vrot.lane.b32.xlu0 %v3666, 64
        %v3745 = vpop.permute.xlu0 %3744
        %3746 = vrot.lane.b32.xlu0 %v3667, 64
        %v3747 = vpop.permute.xlu0 %3746
        %3748 = vrot.lane.b32.xlu0 %v3668, 64
        %v3749 = vpop.permute.xlu0 %3748
        %3750 = vrot.lane.b32.xlu0 %v3669, 64
        %v3751 = vpop.permute.xlu0 %3750
        %3752 = vrot.lane.b32.xlu0 %v3670, 64
        %v3753 = vpop.permute.xlu0 %3752
        %3754 = vrot.lane.b32.xlu0 %v3671, 64
        %v3755 = vpop.permute.xlu0 %3754
        %3756 = vrot.lane.b32.xlu0 %v3672, 64
        %v3757 = vpop.permute.xlu0 %3756
        %3758 = vrot.lane.b32.xlu0 %v3673, 64
        %v3759 = vpop.permute.xlu0 %3758
        %3760 = vrot.lane.b32.xlu0 %v3674, 64
        %v3761 = vpop.permute.xlu0 %3760
        %3762 = vrot.lane.b32.xlu0 %v3675, 64
        %v3763 = vpop.permute.xlu0 %3762
        %3764 = vrot.lane.b32.xlu0 %v3676, 64
        %v3765 = vpop.permute.xlu0 %3764
        %3766 = vrot.lane.b32.xlu0 %v3677, 64
        %v3767 = vpop.permute.xlu0 %3766
        %3768 = vrot.lane.b32.xlu0 %v3678, 64
        %v3769 = vpop.permute.xlu0 %3768
        %3770 = vrot.lane.b32.xlu0 %v3679, 64
        %v3771 = vpop.permute.xlu0 %3770
        %3772 = vrot.lane.b32.xlu0 %v3680, 64
        %v3773 = vpop.permute.xlu0 %3772
        %3774 = vrot.lane.b32.xlu0 %v3681, 64
        %v3775 = vpop.permute.xlu0 %3774
        %3776 = vrot.lane.b32.xlu0 %v3682, 64
        %v3777 = vpop.permute.xlu0 %3776
        %3778 = vrot.lane.b32.xlu0 %v3683, 64
        %v3779 = vpop.permute.xlu0 %3778
        %3812 = vst.msk [vmem:[#allocation3 + $0x4] sm:$0xf] %vm2593, %v3717
        %3813 = vst.msk [vmem:[#allocation3 + $0x10] sm:$0xf] %vm2593, %v3719
        %3814 = vst.msk [vmem:[#allocation3 + $0x1c] sm:$0xf] %vm2593, %v3721
        %3815 = vst.msk [vmem:[#allocation3 + $0x28] sm:$0xf] %vm2593, %v3723
        %3816 = vst.msk [vmem:[#allocation3 + $0x34] sm:$0xf] %vm2593, %v3725
        %3817 = vst.msk [vmem:[#allocation3 + $0x40] sm:$0xf] %vm2593, %v3727
        %3818 = vst.msk [vmem:[#allocation3 + $0x4c] sm:$0xf] %vm2593, %v3729
        %3819 = vst.msk [vmem:[#allocation3 + $0x58] sm:$0xf] %vm2593, %v3731
        %3820 = vst.msk [vmem:[#allocation3 + $0x64] sm:$0xf] %vm2593, %v3733
        %3821 = vst.msk [vmem:[#allocation3 + $0x70] sm:$0xf] %vm2593, %v3735
        %3822 = vst.msk [vmem:[#allocation3 + $0x7c] sm:$0xf] %vm2593, %v3737
        %3823 = vst.msk [vmem:[#allocation3 + $0x88] sm:$0xf] %vm2593, %v3739
        %3824 = vst.msk [vmem:[#allocation3 + $0x94] sm:$0xf] %vm2593, %v3741
        %3825 = vst.msk [vmem:[#allocation3 + $0xa0] sm:$0xf] %vm2593, %v3743
        %3826 = vst.msk [vmem:[#allocation3 + $0xac] sm:$0xf] %vm2593, %v3745
        %3827 = vst.msk [vmem:[#allocation3 + $0xb8] sm:$0xf] %vm2593, %v3747
        %3828 = vst.msk [vmem:[#allocation3 + $0xc4] sm:$0xf] %vm2593, %v3749
        %3829 = vst.msk [vmem:[#allocation3 + $0xd0] sm:$0xf] %vm2593, %v3751
        %3830 = vst.msk [vmem:[#allocation3 + $0xdc] sm:$0xf] %vm2593, %v3753
        %3831 = vst.msk [vmem:[#allocation3 + $0xe8] sm:$0xf] %vm2593, %v3755
        %3832 = vst.msk [vmem:[#allocation3 + $0xf4] sm:$0xf] %vm2593, %v3757
        %3833 = vst.msk [vmem:[#allocation3 + $0x100] sm:$0xf] %vm2593, %v3759
        %3834 = vst.msk [vmem:[#allocation3 + $0x10c] sm:$0xf] %vm2593, %v3761
        %3835 = vst.msk [vmem:[#allocation3 + $0x118] sm:$0xf] %vm2593, %v3763
        %3836 = vst.msk [vmem:[#allocation3 + $0x124] sm:$0xf] %vm2593, %v3765
        %3837 = vst.msk [vmem:[#allocation3 + $0x130] sm:$0xf] %vm2593, %v3767
        %3838 = vst.msk [vmem:[#allocation3 + $0x13c] sm:$0xf] %vm2593, %v3769
        %3839 = vst.msk [vmem:[#allocation3 + $0x148] sm:$0xf] %vm2593, %v3771
        %3840 = vst.msk [vmem:[#allocation3 + $0x154] sm:$0xf] %vm2593, %v3773
        %3841 = vst.msk [vmem:[#allocation3 + $0x160] sm:$0xf] %vm2593, %v3775
        %3842 = vst.msk [vmem:[#allocation3 + $0x16c] sm:$0xf] %vm2593, %v3777
        %3843 = vst.msk [vmem:[#allocation3 + $0x178] sm:$0xf] %vm2593, %v3779
        %v3844 = vld [vmem:[%s3651] sm:$0xf]
        %v3845 = vld [vmem:[%s3651 + $0x4] sm:$0xf]
        %v3846 = vld [vmem:[%s3651 + $0x8] sm:$0x1]
        %v3847 = vld [vmem:[%s3651 + $0xc] sm:$0xf]
        %v3848 = vld [vmem:[%s3651 + $0x10] sm:$0xf]
        %v3849 = vld [vmem:[%s3651 + $0x14] sm:$0x1]
        %v3850 = vld [vmem:[%s3651 + $0x18] sm:$0xf]
        %v3851 = vld [vmem:[%s3651 + $0x1c] sm:$0xf]
        %v3852 = vld [vmem:[%s3651 + $0x20] sm:$0x1]
        %v3853 = vld [vmem:[%s3651 + $0x24] sm:$0xf]
        %v3854 = vld [vmem:[%s3651 + $0x28] sm:$0xf]
        %v3855 = vld [vmem:[%s3651 + $0x2c] sm:$0x1]
        %v3856 = vld [vmem:[%s3651 + $0x30] sm:$0xf]
        %v3857 = vld [vmem:[%s3651 + $0x34] sm:$0xf]
        %v3858 = vld [vmem:[%s3651 + $0x38] sm:$0x1]
        %v3859 = vld [vmem:[%s3651 + $0x3c] sm:$0xf]
        %v3860 = vld [vmem:[%s3651 + $0x40] sm:$0xf]
        %v3861 = vld [vmem:[%s3651 + $0x44] sm:$0x1]
        %v3862 = vld [vmem:[%s3651 + $0x48] sm:$0xf]
        %v3863 = vld [vmem:[%s3651 + $0x4c] sm:$0xf]
        %v3864 = vld [vmem:[%s3651 + $0x50] sm:$0x1]
        %v3865 = vld [vmem:[%s3651 + $0x54] sm:$0xf]
        %v3866 = vld [vmem:[%s3651 + $0x58] sm:$0xf]
        %v3867 = vld [vmem:[%s3651 + $0x5c] sm:$0x1]
        %v3868 = vld [vmem:[%s3651 + $0x60] sm:$0xf]
        %v3869 = vld [vmem:[%s3651 + $0x64] sm:$0xf]
        %v3870 = vld [vmem:[%s3651 + $0x68] sm:$0x1]
        %v3871 = vld [vmem:[%s3651 + $0x6c] sm:$0xf]
        %v3872 = vld [vmem:[%s3651 + $0x70] sm:$0xf]
        %v3873 = vld [vmem:[%s3651 + $0x74] sm:$0x1]
        %v3874 = vld [vmem:[%s3651 + $0x78] sm:$0xf]
        %v3875 = vld [vmem:[%s3651 + $0x7c] sm:$0xf]
        %v3876 = vld [vmem:[%s3651 + $0x80] sm:$0x1]
        %v3877 = vld [vmem:[%s3651 + $0x84] sm:$0xf]
        %v3878 = vld [vmem:[%s3651 + $0x88] sm:$0xf]
        %v3879 = vld [vmem:[%s3651 + $0x8c] sm:$0x1]
        %v3880 = vld [vmem:[%s3651 + $0x90] sm:$0xf]
        %v3881 = vld [vmem:[%s3651 + $0x94] sm:$0xf]
        %v3882 = vld [vmem:[%s3651 + $0x98] sm:$0x1]
        %v3883 = vld [vmem:[%s3651 + $0x9c] sm:$0xf]
        %v3884 = vld [vmem:[%s3651 + $0xa0] sm:$0xf]
        %v3885 = vld [vmem:[%s3651 + $0xa4] sm:$0x1]
        %v3886 = vld [vmem:[%s3651 + $0xa8] sm:$0xf]
        %v3887 = vld [vmem:[%s3651 + $0xac] sm:$0xf]
        %v3888 = vld [vmem:[%s3651 + $0xb0] sm:$0x1]
        %v3889 = vld [vmem:[%s3651 + $0xb4] sm:$0xf]
        %v3890 = vld [vmem:[%s3651 + $0xb8] sm:$0xf]
        %v3891 = vld [vmem:[%s3651 + $0xbc] sm:$0x1]
        %v3893 = vshrl.u32 %v3844, 16
        %v3895 = vrot.slane %v3893, 4
        %v3896 = vshll.u32 %v3844, 16
        %v3898 = vrot.slane %v3896, 5
        %v3899 = vor.u32 %v3895, %v3898
        %v3900 = vrot.slane %v3899, 4
        %v3902 = vshll.u32 %v3845, 16
        %v3904 = vrot.slane %v3902, 5
        %v3905 = vsel %vm1772, %v3900, %v3904
        %v3906 = vshrl.u32 %v3845, 16
        %v3908 = vrot.slane %v3906, 4
        %v3909 = vor.u32 %v3908, %v3904
        %v3910 = vrot.slane %v3909, 4
        %v3912 = vshll.u32 %v3846, 16
        %v3914 = vrot.slane %v3912, 5
        %v3915 = vsel %vm1772, %v3910, %v3914
        %v3917 = vshrl.u32 %v3847, 16
        %v3919 = vrot.slane %v3917, 4
        %v3920 = vshll.u32 %v3847, 16
        %v3922 = vrot.slane %v3920, 5
        %v3923 = vor.u32 %v3919, %v3922
        %v3924 = vrot.slane %v3923, 4
        %v3926 = vshll.u32 %v3848, 16
        %v3928 = vrot.slane %v3926, 5
        %v3929 = vsel %vm1772, %v3924, %v3928
        %v3930 = vshrl.u32 %v3848, 16
        %v3932 = vrot.slane %v3930, 4
        %v3933 = vor.u32 %v3932, %v3928
        %v3934 = vrot.slane %v3933, 4
        %v3936 = vshll.u32 %v3849, 16
        %v3938 = vrot.slane %v3936, 5
        %v3939 = vsel %vm1772, %v3934, %v3938
        %v3941 = vshrl.u32 %v3850, 16
        %v3943 = vrot.slane %v3941, 4
        %v3944 = vshll.u32 %v3850, 16
        %v3946 = vrot.slane %v3944, 5
        %v3947 = vor.u32 %v3943, %v3946
        %v3948 = vrot.slane %v3947, 4
        %v3950 = vshll.u32 %v3851, 16
        %v3952 = vrot.slane %v3950, 5
        %v3953 = vsel %vm1772, %v3948, %v3952
        %v3954 = vshrl.u32 %v3851, 16
        %v3956 = vrot.slane %v3954, 4
        %v3957 = vor.u32 %v3956, %v3952
        %v3958 = vrot.slane %v3957, 4
        %v3960 = vshll.u32 %v3852, 16
        %v3962 = vrot.slane %v3960, 5
        %v3963 = vsel %vm1772, %v3958, %v3962
        %v3965 = vshrl.u32 %v3853, 16
        %v3967 = vrot.slane %v3965, 4
        %v3968 = vshll.u32 %v3853, 16
        %v3970 = vrot.slane %v3968, 5
        %v3971 = vor.u32 %v3967, %v3970
        %v3972 = vrot.slane %v3971, 4
        %v3974 = vshll.u32 %v3854, 16
        %v3976 = vrot.slane %v3974, 5
        %v3977 = vsel %vm1772, %v3972, %v3976
        %v3978 = vshrl.u32 %v3854, 16
        %v3980 = vrot.slane %v3978, 4
        %v3981 = vor.u32 %v3980, %v3976
        %v3982 = vrot.slane %v3981, 4
        %v3984 = vshll.u32 %v3855, 16
        %v3986 = vrot.slane %v3984, 5
        %v3987 = vsel %vm1772, %v3982, %v3986
        %v3989 = vshrl.u32 %v3856, 16
        %v3991 = vrot.slane %v3989, 4
        %v3992 = vshll.u32 %v3856, 16
        %v3994 = vrot.slane %v3992, 5
        %v3995 = vor.u32 %v3991, %v3994
        %v3996 = vrot.slane %v3995, 4
        %v3998 = vshll.u32 %v3857, 16
        %v4000 = vrot.slane %v3998, 5
        %v4001 = vsel %vm1772, %v3996, %v4000
        %v4002 = vshrl.u32 %v3857, 16
        %v4004 = vrot.slane %v4002, 4
        %v4005 = vor.u32 %v4004, %v4000
        %v4006 = vrot.slane %v4005, 4
        %v4008 = vshll.u32 %v3858, 16
        %v4010 = vrot.slane %v4008, 5
        %v4011 = vsel %vm1772, %v4006, %v4010
        %v4013 = vshrl.u32 %v3859, 16
        %v4015 = vrot.slane %v4013, 4
        %v4016 = vshll.u32 %v3859, 16
        %v4018 = vrot.slane %v4016, 5
        %v4019 = vor.u32 %v4015, %v4018
        %v4020 = vrot.slane %v4019, 4
        %v4022 = vshll.u32 %v3860, 16
        %v4024 = vrot.slane %v4022, 5
        %v4025 = vsel %vm1772, %v4020, %v4024
        %v4026 = vshrl.u32 %v3860, 16
        %v4028 = vrot.slane %v4026, 4
        %v4029 = vor.u32 %v4028, %v4024
        %v4030 = vrot.slane %v4029, 4
        %v4032 = vshll.u32 %v3861, 16
        %v4034 = vrot.slane %v4032, 5
        %v4035 = vsel %vm1772, %v4030, %v4034
        %v4037 = vshrl.u32 %v3862, 16
        %v4039 = vrot.slane %v4037, 4
        %v4040 = vshll.u32 %v3862, 16
        %v4042 = vrot.slane %v4040, 5
        %v4043 = vor.u32 %v4039, %v4042
        %v4044 = vrot.slane %v4043, 4
        %v4046 = vshll.u32 %v3863, 16
        %v4048 = vrot.slane %v4046, 5
        %v4049 = vsel %vm1772, %v4044, %v4048
        %v4050 = vshrl.u32 %v3863, 16
        %v4052 = vrot.slane %v4050, 4
        %v4053 = vor.u32 %v4052, %v4048
        %v4054 = vrot.slane %v4053, 4
        %v4056 = vshll.u32 %v3864, 16
        %v4058 = vrot.slane %v4056, 5
        %v4059 = vsel %vm1772, %v4054, %v4058
        %v4061 = vshrl.u32 %v3865, 16
        %v4063 = vrot.slane %v4061, 4
        %v4064 = vshll.u32 %v3865, 16
        %v4066 = vrot.slane %v4064, 5
        %v4067 = vor.u32 %v4063, %v4066
        %v4068 = vrot.slane %v4067, 4
        %v4070 = vshll.u32 %v3866, 16
        %v4072 = vrot.slane %v4070, 5
        %v4073 = vsel %vm1772, %v4068, %v4072
        %v4074 = vshrl.u32 %v3866, 16
        %v4076 = vrot.slane %v4074, 4
        %v4077 = vor.u32 %v4076, %v4072
        %v4078 = vrot.slane %v4077, 4
        %v4080 = vshll.u32 %v3867, 16
        %v4082 = vrot.slane %v4080, 5
        %v4083 = vsel %vm1772, %v4078, %v4082
        %v4085 = vshrl.u32 %v3868, 16
        %v4087 = vrot.slane %v4085, 4
        %v4088 = vshll.u32 %v3868, 16
        %v4090 = vrot.slane %v4088, 5
        %v4091 = vor.u32 %v4087, %v4090
        %v4092 = vrot.slane %v4091, 4
        %v4094 = vshll.u32 %v3869, 16
        %v4096 = vrot.slane %v4094, 5
        %v4097 = vsel %vm1772, %v4092, %v4096
        %v4098 = vshrl.u32 %v3869, 16
        %v4100 = vrot.slane %v4098, 4
        %v4101 = vor.u32 %v4100, %v4096
        %v4102 = vrot.slane %v4101, 4
        %v4104 = vshll.u32 %v3870, 16
        %v4106 = vrot.slane %v4104, 5
        %v4107 = vsel %vm1772, %v4102, %v4106
        %v4109 = vshrl.u32 %v3871, 16
        %v4111 = vrot.slane %v4109, 4
        %v4112 = vshll.u32 %v3871, 16
        %v4114 = vrot.slane %v4112, 5
        %v4115 = vor.u32 %v4111, %v4114
        %v4116 = vrot.slane %v4115, 4
        %v4118 = vshll.u32 %v3872, 16
        %v4120 = vrot.slane %v4118, 5
        %v4121 = vsel %vm1772, %v4116, %v4120
        %v4122 = vshrl.u32 %v3872, 16
        %v4124 = vrot.slane %v4122, 4
        %v4125 = vor.u32 %v4124, %v4120
        %v4126 = vrot.slane %v4125, 4
        %v4128 = vshll.u32 %v3873, 16
        %v4130 = vrot.slane %v4128, 5
        %v4131 = vsel %vm1772, %v4126, %v4130
        %v4133 = vshrl.u32 %v3874, 16
        %v4135 = vrot.slane %v4133, 4
        %v4136 = vshll.u32 %v3874, 16
        %v4138 = vrot.slane %v4136, 5
        %v4139 = vor.u32 %v4135, %v4138
        %v4140 = vrot.slane %v4139, 4
        %v4142 = vshll.u32 %v3875, 16
        %v4144 = vrot.slane %v4142, 5
        %v4145 = vsel %vm1772, %v4140, %v4144
        %v4146 = vshrl.u32 %v3875, 16
        %v4148 = vrot.slane %v4146, 4
        %v4149 = vor.u32 %v4148, %v4144
        %v4150 = vrot.slane %v4149, 4
        %v4152 = vshll.u32 %v3876, 16
        %v4154 = vrot.slane %v4152, 5
        %v4155 = vsel %vm1772, %v4150, %v4154
        %v4157 = vshrl.u32 %v3877, 16
        %v4159 = vrot.slane %v4157, 4
        %v4160 = vshll.u32 %v3877, 16
        %v4162 = vrot.slane %v4160, 5
        %v4163 = vor.u32 %v4159, %v4162
        %v4164 = vrot.slane %v4163, 4
        %v4166 = vshll.u32 %v3878, 16
        %v4168 = vrot.slane %v4166, 5
        %v4169 = vsel %vm1772, %v4164, %v4168
        %v4170 = vshrl.u32 %v3878, 16
        %v4172 = vrot.slane %v4170, 4
        %v4173 = vor.u32 %v4172, %v4168
        %v4174 = vrot.slane %v4173, 4
        %v4176 = vshll.u32 %v3879, 16
        %v4178 = vrot.slane %v4176, 5
        %v4179 = vsel %vm1772, %v4174, %v4178
        %v4181 = vshrl.u32 %v3880, 16
        %v4183 = vrot.slane %v4181, 4
        %v4184 = vshll.u32 %v3880, 16
        %v4186 = vrot.slane %v4184, 5
        %v4187 = vor.u32 %v4183, %v4186
        %v4188 = vrot.slane %v4187, 4
        %v4190 = vshll.u32 %v3881, 16
        %v4192 = vrot.slane %v4190, 5
        %v4193 = vsel %vm1772, %v4188, %v4192
        %v4194 = vshrl.u32 %v3881, 16
        %v4196 = vrot.slane %v4194, 4
        %v4197 = vor.u32 %v4196, %v4192
        %v4198 = vrot.slane %v4197, 4
        %v4200 = vshll.u32 %v3882, 16
        %v4202 = vrot.slane %v4200, 5
        %v4203 = vsel %vm1772, %v4198, %v4202
        %v4205 = vshrl.u32 %v3883, 16
        %v4207 = vrot.slane %v4205, 4
        %v4208 = vshll.u32 %v3883, 16
        %v4210 = vrot.slane %v4208, 5
        %v4211 = vor.u32 %v4207, %v4210
        %v4212 = vrot.slane %v4211, 4
        %v4214 = vshll.u32 %v3884, 16
        %v4216 = vrot.slane %v4214, 5
        %v4217 = vsel %vm1772, %v4212, %v4216
        %v4218 = vshrl.u32 %v3884, 16
        %v4220 = vrot.slane %v4218, 4
        %v4221 = vor.u32 %v4220, %v4216
        %v4222 = vrot.slane %v4221, 4
        %v4224 = vshll.u32 %v3885, 16
        %v4226 = vrot.slane %v4224, 5
        %v4227 = vsel %vm1772, %v4222, %v4226
        %v4229 = vshrl.u32 %v3886, 16
        %v4231 = vrot.slane %v4229, 4
        %v4232 = vshll.u32 %v3886, 16
        %v4234 = vrot.slane %v4232, 5
        %v4235 = vor.u32 %v4231, %v4234
        %v4236 = vrot.slane %v4235, 4
        %v4238 = vshll.u32 %v3887, 16
        %v4240 = vrot.slane %v4238, 5
        %v4241 = vsel %vm1772, %v4236, %v4240
        %v4242 = vshrl.u32 %v3887, 16
        %v4244 = vrot.slane %v4242, 4
        %v4245 = vor.u32 %v4244, %v4240
        %v4246 = vrot.slane %v4245, 4
        %v4248 = vshll.u32 %v3888, 16
        %v4250 = vrot.slane %v4248, 5
        %v4251 = vsel %vm1772, %v4246, %v4250
        %v4253 = vshrl.u32 %v3889, 16
        %v4255 = vrot.slane %v4253, 4
        %v4256 = vshll.u32 %v3889, 16
        %v4258 = vrot.slane %v4256, 5
        %v4259 = vor.u32 %v4255, %v4258
        %v4260 = vrot.slane %v4259, 4
        %v4262 = vshll.u32 %v3890, 16
        %v4264 = vrot.slane %v4262, 5
        %v4265 = vsel %vm1772, %v4260, %v4264
        %v4266 = vshrl.u32 %v3890, 16
        %v4268 = vrot.slane %v4266, 4
        %v4269 = vor.u32 %v4268, %v4264
        %v4270 = vrot.slane %v4269, 4
        %v4272 = vshll.u32 %v3891, 16
        %v4274 = vrot.slane %v4272, 5
        %v4275 = vsel %vm1772, %v4270, %v4274
        %4276 = vrot.lane.b32.xlu0 %v3905, 96
        %v4277 = vpop.permute.xlu0 %4276
        %4278 = vrot.lane.b32.xlu0 %v3915, 96
        %v4279 = vpop.permute.xlu0 %4278
        %4280 = vrot.lane.b32.xlu0 %v3929, 96
        %v4281 = vpop.permute.xlu0 %4280
        %4282 = vrot.lane.b32.xlu0 %v3939, 96
        %v4283 = vpop.permute.xlu0 %4282
        %4284 = vrot.lane.b32.xlu0 %v3953, 96
        %v4285 = vpop.permute.xlu0 %4284
        %4286 = vrot.lane.b32.xlu0 %v3963, 96
        %v4287 = vpop.permute.xlu0 %4286
        %4288 = vrot.lane.b32.xlu0 %v3977, 96
        %v4289 = vpop.permute.xlu0 %4288
        %4290 = vrot.lane.b32.xlu0 %v3987, 96
        %v4291 = vpop.permute.xlu0 %4290
        %4292 = vrot.lane.b32.xlu0 %v4001, 96
        %v4293 = vpop.permute.xlu0 %4292
        %4294 = vrot.lane.b32.xlu0 %v4011, 96
        %v4295 = vpop.permute.xlu0 %4294
        %4296 = vrot.lane.b32.xlu0 %v4025, 96
        %v4297 = vpop.permute.xlu0 %4296
        %4298 = vrot.lane.b32.xlu0 %v4035, 96
        %v4299 = vpop.permute.xlu0 %4298
        %4300 = vrot.lane.b32.xlu0 %v4049, 96
        %v4301 = vpop.permute.xlu0 %4300
        %4302 = vrot.lane.b32.xlu0 %v4059, 96
        %v4303 = vpop.permute.xlu0 %4302
        %4304 = vrot.lane.b32.xlu0 %v4073, 96
        %v4305 = vpop.permute.xlu0 %4304
        %4306 = vrot.lane.b32.xlu0 %v4083, 96
        %v4307 = vpop.permute.xlu0 %4306
        %4308 = vrot.lane.b32.xlu0 %v4097, 96
        %v4309 = vpop.permute.xlu0 %4308
        %4310 = vrot.lane.b32.xlu0 %v4107, 96
        %v4311 = vpop.permute.xlu0 %4310
        %4312 = vrot.lane.b32.xlu0 %v4121, 96
        %v4313 = vpop.permute.xlu0 %4312
        %4314 = vrot.lane.b32.xlu0 %v4131, 96
        %v4315 = vpop.permute.xlu0 %4314
        %4316 = vrot.lane.b32.xlu0 %v4145, 96
        %v4317 = vpop.permute.xlu0 %4316
        %4318 = vrot.lane.b32.xlu0 %v4155, 96
        %v4319 = vpop.permute.xlu0 %4318
        %4320 = vrot.lane.b32.xlu0 %v4169, 96
        %v4321 = vpop.permute.xlu0 %4320
        %4322 = vrot.lane.b32.xlu0 %v4179, 96
        %v4323 = vpop.permute.xlu0 %4322
        %4324 = vrot.lane.b32.xlu0 %v4193, 96
        %v4325 = vpop.permute.xlu0 %4324
        %4326 = vrot.lane.b32.xlu0 %v4203, 96
        %v4327 = vpop.permute.xlu0 %4326
        %4328 = vrot.lane.b32.xlu0 %v4217, 96
        %v4329 = vpop.permute.xlu0 %4328
        %4330 = vrot.lane.b32.xlu0 %v4227, 96
        %v4331 = vpop.permute.xlu0 %4330
        %4332 = vrot.lane.b32.xlu0 %v4241, 96
        %v4333 = vpop.permute.xlu0 %4332
        %4334 = vrot.lane.b32.xlu0 %v4251, 96
        %v4335 = vpop.permute.xlu0 %4334
        %4336 = vrot.lane.b32.xlu0 %v4265, 96
        %v4337 = vpop.permute.xlu0 %4336
        %4338 = vrot.lane.b32.xlu0 %v4275, 96
        %v4339 = vpop.permute.xlu0 %4338
        %4372 = vst.msk [vmem:[#allocation3 + $0x4] sm:$0xf] %vm2786, %v4277
        %4373 = vst.msk [vmem:[#allocation3 + $0x10] sm:$0xf] %vm2786, %v4279
        %4374 = vst.msk [vmem:[#allocation3 + $0x1c] sm:$0xf] %vm2786, %v4281
        %4375 = vst.msk [vmem:[#allocation3 + $0x28] sm:$0xf] %vm2786, %v4283
        %4376 = vst.msk [vmem:[#allocation3 + $0x34] sm:$0xf] %vm2786, %v4285
        %4377 = vst.msk [vmem:[#allocation3 + $0x40] sm:$0xf] %vm2786, %v4287
        %4378 = vst.msk [vmem:[#allocation3 + $0x4c] sm:$0xf] %vm2786, %v4289
        %4379 = vst.msk [vmem:[#allocation3 + $0x58] sm:$0xf] %vm2786, %v4291
        %4380 = vst.msk [vmem:[#allocation3 + $0x64] sm:$0xf] %vm2786, %v4293
        %4381 = vst.msk [vmem:[#allocation3 + $0x70] sm:$0xf] %vm2786, %v4295
        %4382 = vst.msk [vmem:[#allocation3 + $0x7c] sm:$0xf] %vm2786, %v4297
        %4383 = vst.msk [vmem:[#allocation3 + $0x88] sm:$0xf] %vm2786, %v4299
        %4384 = vst.msk [vmem:[#allocation3 + $0x94] sm:$0xf] %vm2786, %v4301
        %4385 = vst.msk [vmem:[#allocation3 + $0xa0] sm:$0xf] %vm2786, %v4303
        %4386 = vst.msk [vmem:[#allocation3 + $0xac] sm:$0xf] %vm2786, %v4305
        %4387 = vst.msk [vmem:[#allocation3 + $0xb8] sm:$0xf] %vm2786, %v4307
        %4388 = vst.msk [vmem:[#allocation3 + $0xc4] sm:$0xf] %vm2786, %v4309
        %4389 = vst.msk [vmem:[#allocation3 + $0xd0] sm:$0xf] %vm2786, %v4311
        %4390 = vst.msk [vmem:[#allocation3 + $0xdc] sm:$0xf] %vm2786, %v4313
        %4391 = vst.msk [vmem:[#allocation3 + $0xe8] sm:$0xf] %vm2786, %v4315
        %4392 = vst.msk [vmem:[#allocation3 + $0xf4] sm:$0xf] %vm2786, %v4317
        %4393 = vst.msk [vmem:[#allocation3 + $0x100] sm:$0xf] %vm2786, %v4319
        %4394 = vst.msk [vmem:[#allocation3 + $0x10c] sm:$0xf] %vm2786, %v4321
        %4395 = vst.msk [vmem:[#allocation3 + $0x118] sm:$0xf] %vm2786, %v4323
        %4396 = vst.msk [vmem:[#allocation3 + $0x124] sm:$0xf] %vm2786, %v4325
        %4397 = vst.msk [vmem:[#allocation3 + $0x130] sm:$0xf] %vm2786, %v4327
        %4398 = vst.msk [vmem:[#allocation3 + $0x13c] sm:$0xf] %vm2786, %v4329
        %4399 = vst.msk [vmem:[#allocation3 + $0x148] sm:$0xf] %vm2786, %v4331
        %4400 = vst.msk [vmem:[#allocation3 + $0x154] sm:$0xf] %vm2786, %v4333
        %4401 = vst.msk [vmem:[#allocation3 + $0x160] sm:$0xf] %vm2786, %v4335
        %4402 = vst.msk [vmem:[#allocation3 + $0x16c] sm:$0xf] %vm2786, %v4337
        %4403 = vst.msk [vmem:[#allocation3 + $0x178] sm:$0xf] %vm2786, %v4339
        %v4404 = vld [vmem:[%s3651] sm:$0xe]
        %v4405 = vld [vmem:[%s3651 + $0x4] sm:$0xf]
        %v4406 = vld [vmem:[%s3651 + $0x8] sm:$0x1]
        %v4407 = vld [vmem:[%s3651 + $0xc] sm:$0xe]
        %v4408 = vld [vmem:[%s3651 + $0x10] sm:$0xf]
        %v4409 = vld [vmem:[%s3651 + $0x14] sm:$0x1]
        %v4410 = vld [vmem:[%s3651 + $0x18] sm:$0xe]
        %v4411 = vld [vmem:[%s3651 + $0x1c] sm:$0xf]
        %v4412 = vld [vmem:[%s3651 + $0x20] sm:$0x1]
        %v4413 = vld [vmem:[%s3651 + $0x24] sm:$0xe]
        %v4414 = vld [vmem:[%s3651 + $0x28] sm:$0xf]
        %v4415 = vld [vmem:[%s3651 + $0x2c] sm:$0x1]
        %v4416 = vld [vmem:[%s3651 + $0x30] sm:$0xe]
        %v4417 = vld [vmem:[%s3651 + $0x34] sm:$0xf]
        %v4418 = vld [vmem:[%s3651 + $0x38] sm:$0x1]
        %v4419 = vld [vmem:[%s3651 + $0x3c] sm:$0xe]
        %v4420 = vld [vmem:[%s3651 + $0x40] sm:$0xf]
        %v4421 = vld [vmem:[%s3651 + $0x44] sm:$0x1]
        %v4422 = vld [vmem:[%s3651 + $0x48] sm:$0xe]
        %v4423 = vld [vmem:[%s3651 + $0x4c] sm:$0xf]
        %v4424 = vld [vmem:[%s3651 + $0x50] sm:$0x1]
        %v4425 = vld [vmem:[%s3651 + $0x54] sm:$0xe]
        %v4426 = vld [vmem:[%s3651 + $0x58] sm:$0xf]
        %v4427 = vld [vmem:[%s3651 + $0x5c] sm:$0x1]
        %v4428 = vld [vmem:[%s3651 + $0x60] sm:$0xe]
        %v4429 = vld [vmem:[%s3651 + $0x64] sm:$0xf]
        %v4430 = vld [vmem:[%s3651 + $0x68] sm:$0x1]
        %v4431 = vld [vmem:[%s3651 + $0x6c] sm:$0xe]
        %v4432 = vld [vmem:[%s3651 + $0x70] sm:$0xf]
        %v4433 = vld [vmem:[%s3651 + $0x74] sm:$0x1]
        %v4434 = vld [vmem:[%s3651 + $0x78] sm:$0xe]
        %v4435 = vld [vmem:[%s3651 + $0x7c] sm:$0xf]
        %v4436 = vld [vmem:[%s3651 + $0x80] sm:$0x1]
        %v4437 = vld [vmem:[%s3651 + $0x84] sm:$0xe]
        %v4438 = vld [vmem:[%s3651 + $0x88] sm:$0xf]
        %v4439 = vld [vmem:[%s3651 + $0x8c] sm:$0x1]
        %v4440 = vld [vmem:[%s3651 + $0x90] sm:$0xe]
        %v4441 = vld [vmem:[%s3651 + $0x94] sm:$0xf]
        %v4442 = vld [vmem:[%s3651 + $0x98] sm:$0x1]
        %v4443 = vld [vmem:[%s3651 + $0x9c] sm:$0xe]
        %v4444 = vld [vmem:[%s3651 + $0xa0] sm:$0xf]
        %v4445 = vld [vmem:[%s3651 + $0xa4] sm:$0x1]
        %v4446 = vld [vmem:[%s3651 + $0xa8] sm:$0xe]
        %v4447 = vld [vmem:[%s3651 + $0xac] sm:$0xf]
        %v4448 = vld [vmem:[%s3651 + $0xb0] sm:$0x1]
        %v4449 = vld [vmem:[%s3651 + $0xb4] sm:$0xe]
        %v4450 = vld [vmem:[%s3651 + $0xb8] sm:$0xf]
        %v4451 = vld [vmem:[%s3651 + $0xbc] sm:$0x1]
        %v4500 = vrot.slane %v4404, 5
        %v4501 = vrot.slane %v4500, 4
        %v4502 = vrot.slane %v4405, 5
        %v4503 = vsel %vm2384, %v4501, %v4502
        %v4504 = vrot.slane %v4502, 4
        %v4505 = vrot.slane %v4406, 5
        %v4506 = vsel %vm2384, %v4504, %v4505
        %v4507 = vrot.slane %v4407, 5
        %v4508 = vrot.slane %v4507, 4
        %v4509 = vrot.slane %v4408, 5
        %v4510 = vsel %vm2384, %v4508, %v4509
        %v4511 = vrot.slane %v4509, 4
        %v4512 = vrot.slane %v4409, 5
        %v4513 = vsel %vm2384, %v4511, %v4512
        %v4514 = vrot.slane %v4410, 5
        %v4515 = vrot.slane %v4514, 4
        %v4516 = vrot.slane %v4411, 5
        %v4517 = vsel %vm2384, %v4515, %v4516
        %v4518 = vrot.slane %v4516, 4
        %v4519 = vrot.slane %v4412, 5
        %v4520 = vsel %vm2384, %v4518, %v4519
        %v4521 = vrot.slane %v4413, 5
        %v4522 = vrot.slane %v4521, 4
        %v4523 = vrot.slane %v4414, 5
        %v4524 = vsel %vm2384, %v4522, %v4523
        %v4525 = vrot.slane %v4523, 4
        %v4526 = vrot.slane %v4415, 5
        %v4527 = vsel %vm2384, %v4525, %v4526
        %v4528 = vrot.slane %v4416, 5
        %v4529 = vrot.slane %v4528, 4
        %v4530 = vrot.slane %v4417, 5
        %v4531 = vsel %vm2384, %v4529, %v4530
        %v4532 = vrot.slane %v4530, 4
        %v4533 = vrot.slane %v4418, 5
        %v4534 = vsel %vm2384, %v4532, %v4533
        %v4535 = vrot.slane %v4419, 5
        %v4536 = vrot.slane %v4535, 4
        %v4537 = vrot.slane %v4420, 5
        %v4538 = vsel %vm2384, %v4536, %v4537
        %v4539 = vrot.slane %v4537, 4
        %v4540 = vrot.slane %v4421, 5
        %v4541 = vsel %vm2384, %v4539, %v4540
        %v4542 = vrot.slane %v4422, 5
        %v4543 = vrot.slane %v4542, 4
        %v4544 = vrot.slane %v4423, 5
        %v4545 = vsel %vm2384, %v4543, %v4544
        %v4546 = vrot.slane %v4544, 4
        %v4547 = vrot.slane %v4424, 5
        %v4548 = vsel %vm2384, %v4546, %v4547
        %v4549 = vrot.slane %v4425, 5
        %v4550 = vrot.slane %v4549, 4
        %v4551 = vrot.slane %v4426, 5
        %v4552 = vsel %vm2384, %v4550, %v4551
        %v4553 = vrot.slane %v4551, 4
        %v4554 = vrot.slane %v4427, 5
        %v4555 = vsel %vm2384, %v4553, %v4554
        %v4556 = vrot.slane %v4428, 5
        %v4557 = vrot.slane %v4556, 4
        %v4558 = vrot.slane %v4429, 5
        %v4559 = vsel %vm2384, %v4557, %v4558
        %v4560 = vrot.slane %v4558, 4
        %v4561 = vrot.slane %v4430, 5
        %v4562 = vsel %vm2384, %v4560, %v4561
        %v4563 = vrot.slane %v4431, 5
        %v4564 = vrot.slane %v4563, 4
        %v4565 = vrot.slane %v4432, 5
        %v4566 = vsel %vm2384, %v4564, %v4565
        %v4567 = vrot.slane %v4565, 4
        %v4568 = vrot.slane %v4433, 5
        %v4569 = vsel %vm2384, %v4567, %v4568
        %v4570 = vrot.slane %v4434, 5
        %v4571 = vrot.slane %v4570, 4
        %v4572 = vrot.slane %v4435, 5
        %v4573 = vsel %vm2384, %v4571, %v4572
        %v4574 = vrot.slane %v4572, 4
        %v4575 = vrot.slane %v4436, 5
        %v4576 = vsel %vm2384, %v4574, %v4575
        %v4577 = vrot.slane %v4437, 5
        %v4578 = vrot.slane %v4577, 4
        %v4579 = vrot.slane %v4438, 5
        %v4580 = vsel %vm2384, %v4578, %v4579
        %v4581 = vrot.slane %v4579, 4
        %v4582 = vrot.slane %v4439, 5
        %v4583 = vsel %vm2384, %v4581, %v4582
        %v4584 = vrot.slane %v4440, 5
        %v4585 = vrot.slane %v4584, 4
        %v4586 = vrot.slane %v4441, 5
        %v4587 = vsel %vm2384, %v4585, %v4586
        %v4588 = vrot.slane %v4586, 4
        %v4589 = vrot.slane %v4442, 5
        %v4590 = vsel %vm2384, %v4588, %v4589
        %v4591 = vrot.slane %v4443, 5
        %v4592 = vrot.slane %v4591, 4
        %v4593 = vrot.slane %v4444, 5
        %v4594 = vsel %vm2384, %v4592, %v4593
        %v4595 = vrot.slane %v4593, 4
        %v4596 = vrot.slane %v4445, 5
        %v4597 = vsel %vm2384, %v4595, %v4596
        %v4598 = vrot.slane %v4446, 5
        %v4599 = vrot.slane %v4598, 4
        %v4600 = vrot.slane %v4447, 5
        %v4601 = vsel %vm2384, %v4599, %v4600
        %v4602 = vrot.slane %v4600, 4
        %v4603 = vrot.slane %v4448, 5
        %v4604 = vsel %vm2384, %v4602, %v4603
        %v4605 = vrot.slane %v4449, 5
        %v4606 = vrot.slane %v4605, 4
        %v4607 = vrot.slane %v4450, 5
        %v4608 = vsel %vm2384, %v4606, %v4607
        %v4609 = vrot.slane %v4607, 4
        %v4610 = vrot.slane %v4451, 5
        %v4611 = vsel %vm2384, %v4609, %v4610
        %4644 = vst.msk [vmem:[#allocation3 + $0x8] sm:$0xf] %vm1003, %v4503
        %4645 = vst.msk [vmem:[#allocation3 + $0x14] sm:$0xf] %vm1003, %v4506
        %4646 = vst.msk [vmem:[#allocation3 + $0x20] sm:$0xf] %vm1003, %v4510
        %4647 = vst.msk [vmem:[#allocation3 + $0x2c] sm:$0xf] %vm1003, %v4513
        %4648 = vst.msk [vmem:[#allocation3 + $0x38] sm:$0xf] %vm1003, %v4517
        %4649 = vst.msk [vmem:[#allocation3 + $0x44] sm:$0xf] %vm1003, %v4520
        %4650 = vst.msk [vmem:[#allocation3 + $0x50] sm:$0xf] %vm1003, %v4524
        %4651 = vst.msk [vmem:[#allocation3 + $0x5c] sm:$0xf] %vm1003, %v4527
        %4652 = vst.msk [vmem:[#allocation3 + $0x68] sm:$0xf] %vm1003, %v4531
        %4653 = vst.msk [vmem:[#allocation3 + $0x74] sm:$0xf] %vm1003, %v4534
        %4654 = vst.msk [vmem:[#allocation3 + $0x80] sm:$0xf] %vm1003, %v4538
        %4655 = vst.msk [vmem:[#allocation3 + $0x8c] sm:$0xf] %vm1003, %v4541
        %4656 = vst.msk [vmem:[#allocation3 + $0x98] sm:$0xf] %vm1003, %v4545
        %4657 = vst.msk [vmem:[#allocation3 + $0xa4] sm:$0xf] %vm1003, %v4548
        %4658 = vst.msk [vmem:[#allocation3 + $0xb0] sm:$0xf] %vm1003, %v4552
        %4659 = vst.msk [vmem:[#allocation3 + $0xbc] sm:$0xf] %vm1003, %v4555
        %4660 = vst.msk [vmem:[#allocation3 + $0xc8] sm:$0xf] %vm1003, %v4559
        %4661 = vst.msk [vmem:[#allocation3 + $0xd4] sm:$0xf] %vm1003, %v4562
        %4662 = vst.msk [vmem:[#allocation3 + $0xe0] sm:$0xf] %vm1003, %v4566
        %4663 = vst.msk [vmem:[#allocation3 + $0xec] sm:$0xf] %vm1003, %v4569
        %4664 = vst.msk [vmem:[#allocation3 + $0xf8] sm:$0xf] %vm1003, %v4573
        %4665 = vst.msk [vmem:[#allocation3 + $0x104] sm:$0xf] %vm1003, %v4576
        %4666 = vst.msk [vmem:[#allocation3 + $0x110] sm:$0xf] %vm1003, %v4580
        %4667 = vst.msk [vmem:[#allocation3 + $0x11c] sm:$0xf] %vm1003, %v4583
        %4668 = vst.msk [vmem:[#allocation3 + $0x128] sm:$0xf] %vm1003, %v4587
        %4669 = vst.msk [vmem:[#allocation3 + $0x134] sm:$0xf] %vm1003, %v4590
        %4670 = vst.msk [vmem:[#allocation3 + $0x140] sm:$0xf] %vm1003, %v4594
        %4671 = vst.msk [vmem:[#allocation3 + $0x14c] sm:$0xf] %vm1003, %v4597
        %4672 = vst.msk [vmem:[#allocation3 + $0x158] sm:$0xf] %vm1003, %v4601
        %4673 = vst.msk [vmem:[#allocation3 + $0x164] sm:$0xf] %vm1003, %v4604
        %4674 = vst.msk [vmem:[#allocation3 + $0x170] sm:$0xf] %vm1003, %v4608
        %4675 = vst.msk [vmem:[#allocation3 + $0x17c] sm:$0xf] %vm1003, %v4611
        %v4676 = vld [vmem:[#allocation3] sm:$0xff]
        %v4677 = vld [vmem:[#allocation3 + $0x8] sm:$0xf]
        %v4678 = vld [vmem:[#allocation3 + $0xc] sm:$0xff]
        %v4679 = vld [vmem:[#allocation3 + $0x14] sm:$0xf]
        %v4680 = vld [vmem:[#allocation3 + $0x18] sm:$0xff]
        %v4681 = vld [vmem:[#allocation3 + $0x20] sm:$0xf]
        %v4682 = vld [vmem:[#allocation3 + $0x24] sm:$0xff]
        %v4683 = vld [vmem:[#allocation3 + $0x2c] sm:$0xf]
        %v4684 = vld [vmem:[#allocation3 + $0x30] sm:$0xff]
        %v4685 = vld [vmem:[#allocation3 + $0x38] sm:$0xf]
        %v4686 = vld [vmem:[#allocation3 + $0x3c] sm:$0xff]
        %v4687 = vld [vmem:[#allocation3 + $0x44] sm:$0xf]
        %v4688 = vld [vmem:[#allocation3 + $0x48] sm:$0xff]
        %v4689 = vld [vmem:[#allocation3 + $0x50] sm:$0xf]
        %v4690 = vld [vmem:[#allocation3 + $0x54] sm:$0xff]
        %v4691 = vld [vmem:[#allocation3 + $0x5c] sm:$0xf]
        %v4692 = vld [vmem:[#allocation3 + $0x60] sm:$0xff]
        %v4693 = vld [vmem:[#allocation3 + $0x68] sm:$0xf]
        %v4694 = vld [vmem:[#allocation3 + $0x6c] sm:$0xff]
        %v4695 = vld [vmem:[#allocation3 + $0x74] sm:$0xf]
        %v4696 = vld [vmem:[#allocation3 + $0x78] sm:$0xff]
        %v4697 = vld [vmem:[#allocation3 + $0x80] sm:$0xf]
        %v4698 = vld [vmem:[#allocation3 + $0x84] sm:$0xff]
        %v4699 = vld [vmem:[#allocation3 + $0x8c] sm:$0xf]
        %v4700 = vld [vmem:[#allocation3 + $0x90] sm:$0xff]
        %v4701 = vld [vmem:[#allocation3 + $0x98] sm:$0xf]
        %v4702 = vld [vmem:[#allocation3 + $0x9c] sm:$0xff]
        %v4703 = vld [vmem:[#allocation3 + $0xa4] sm:$0xf]
        %v4704 = vld [vmem:[#allocation3 + $0xa8] sm:$0xff]
        %v4705 = vld [vmem:[#allocation3 + $0xb0] sm:$0xf]
        %v4706 = vld [vmem:[#allocation3 + $0xb4] sm:$0xff]
        %v4707 = vld [vmem:[#allocation3 + $0xbc] sm:$0xf]
        %v4708 = vld [vmem:[#allocation3 + $0xc0] sm:$0xff]
        %v4709 = vld [vmem:[#allocation3 + $0xc8] sm:$0xf]
        %v4710 = vld [vmem:[#allocation3 + $0xcc] sm:$0xff]
        %v4711 = vld [vmem:[#allocation3 + $0xd4] sm:$0xf]
        %v4712 = vld [vmem:[#allocation3 + $0xd8] sm:$0xff]
        %v4713 = vld [vmem:[#allocation3 + $0xe0] sm:$0xf]
        %v4714 = vld [vmem:[#allocation3 + $0xe4] sm:$0xff]
        %v4715 = vld [vmem:[#allocation3 + $0xec] sm:$0xf]
        %v4716 = vld [vmem:[#allocation3 + $0xf0] sm:$0xff]
        %v4717 = vld [vmem:[#allocation3 + $0xf8] sm:$0xf]
        %v4718 = vld [vmem:[#allocation3 + $0xfc] sm:$0xff]
        %v4719 = vld [vmem:[#allocation3 + $0x104] sm:$0xf]
        %v4720 = vld [vmem:[#allocation3 + $0x108] sm:$0xff]
        %v4721 = vld [vmem:[#allocation3 + $0x110] sm:$0xf]
        %v4722 = vld [vmem:[#allocation3 + $0x114] sm:$0xff]
        %v4723 = vld [vmem:[#allocation3 + $0x11c] sm:$0xf]
        %v4724 = vld [vmem:[#allocation3 + $0x120] sm:$0xff]
        %v4725 = vld [vmem:[#allocation3 + $0x128] sm:$0xf]
        %v4726 = vld [vmem:[#allocation3 + $0x12c] sm:$0xff]
        %v4727 = vld [vmem:[#allocation3 + $0x134] sm:$0xf]
        %v4728 = vld [vmem:[#allocation3 + $0x138] sm:$0xff]
        %v4729 = vld [vmem:[#allocation3 + $0x140] sm:$0xf]
        %v4730 = vld [vmem:[#allocation3 + $0x144] sm:$0xff]
        %v4731 = vld [vmem:[#allocation3 + $0x14c] sm:$0xf]
        %v4732 = vld [vmem:[#allocation3 + $0x150] sm:$0xff]
        %v4733 = vld [vmem:[#allocation3 + $0x158] sm:$0xf]
        %v4734 = vld [vmem:[#allocation3 + $0x15c] sm:$0xff]
        %v4735 = vld [vmem:[#allocation3 + $0x164] sm:$0xf]
        %v4736 = vld [vmem:[#allocation3 + $0x168] sm:$0xff]
        %v4737 = vld [vmem:[#allocation3 + $0x170] sm:$0xf]
        %v4738 = vld [vmem:[#allocation3 + $0x174] sm:$0xff]
        %v4739 = vld [vmem:[#allocation3 + $0x17c] sm:$0xf]
        %v4740 = vld [vmem:[%s4] sm:$0xf]
        %v4741 = vld [vmem:[%s4 + $0x4] sm:$0xf]
        %v4742 = vld [vmem:[%s4 + $0x8] sm:$0xf]
        %v4743 = vld [vmem:[%s4 + $0xc] sm:$0xf]
        %v4744 = vld [vmem:[%s4 + $0x10] sm:$0xf]
        %v4745 = vld [vmem:[%s4 + $0x14] sm:$0xf]
        %v4746 = vld [vmem:[%s4 + $0x18] sm:$0xf]
        %v4747 = vld [vmem:[%s4 + $0x1c] sm:$0xf]
        %v4748 = vld [vmem:[%s4 + $0x20] sm:$0xf]
        %v4749 = vld [vmem:[%s4 + $0x24] sm:$0xf]
        %v4750 = vld [vmem:[%s4 + $0x28] sm:$0xf]
        %v4751 = vld [vmem:[%s4 + $0x2c] sm:$0xf]
        %v4752 = vld [vmem:[%s4 + $0x30] sm:$0xf]
        %v4753 = vld [vmem:[%s4 + $0x34] sm:$0xf]
        %v4754 = vld [vmem:[%s4 + $0x38] sm:$0xf]
        %v4755 = vld [vmem:[%s4 + $0x3c] sm:$0xf]
        %v4756 = vld [vmem:[%s4 + $0x40] sm:$0xf]
        %v4757 = vld [vmem:[%s4 + $0x44] sm:$0xf]
        %v4758 = vld [vmem:[%s4 + $0x48] sm:$0xf]
        %v4759 = vld [vmem:[%s4 + $0x4c] sm:$0xf]
        %v4760 = vld [vmem:[%s4 + $0x50] sm:$0xf]
        %v4761 = vld [vmem:[%s4 + $0x54] sm:$0xf]
        %v4762 = vld [vmem:[%s4 + $0x58] sm:$0xf]
        %v4763 = vld [vmem:[%s4 + $0x5c] sm:$0xf]
        %v4764 = vld [vmem:[%s4 + $0x60] sm:$0xf]
        %v4765 = vld [vmem:[%s4 + $0x64] sm:$0xf]
        %v4766 = vld [vmem:[%s4 + $0x68] sm:$0xf]
        %v4767 = vld [vmem:[%s4 + $0x6c] sm:$0xf]
        %v4768 = vld [vmem:[%s4 + $0x70] sm:$0xf]
        %v4769 = vld [vmem:[%s4 + $0x74] sm:$0xf]
        %v4770 = vld [vmem:[%s4 + $0x78] sm:$0xf]
        %v4771 = vld [vmem:[%s4 + $0x7c] sm:$0xf]
        %v4772 = vld [vmem:[%s4 + $0x80] sm:$0xf]
        %v4773 = vld [vmem:[%s4 + $0x84] sm:$0xf]
        %v4774 = vld [vmem:[%s4 + $0x88] sm:$0xf]
        %v4775 = vld [vmem:[%s4 + $0x8c] sm:$0xf]
        %v4840 = vunpack.c.l.b16 %v4676
        %v4841 = vunpack.c.h.b16 %v4676
        %v4842 = vunpack.c.l.b16 %v4677
        %v4843 = vunpack.c.l.b16 %v4678
        %v4844 = vunpack.c.h.b16 %v4678
        %v4845 = vunpack.c.l.b16 %v4679
        %v4846 = vunpack.c.l.b16 %v4680
        %v4847 = vunpack.c.h.b16 %v4680
        %v4848 = vunpack.c.l.b16 %v4681
        %v4849 = vunpack.c.l.b16 %v4682
        %v4850 = vunpack.c.h.b16 %v4682
        %v4851 = vunpack.c.l.b16 %v4683
        %v4852 = vunpack.c.l.b16 %v4684
        %v4853 = vunpack.c.h.b16 %v4684
        %v4854 = vunpack.c.l.b16 %v4685
        %v4855 = vunpack.c.l.b16 %v4686
        %v4856 = vunpack.c.h.b16 %v4686
        %v4857 = vunpack.c.l.b16 %v4687
        %v4858 = vunpack.c.l.b16 %v4688
        %v4859 = vunpack.c.h.b16 %v4688
        %v4860 = vunpack.c.l.b16 %v4689
        %v4861 = vunpack.c.l.b16 %v4690
        %v4862 = vunpack.c.h.b16 %v4690
        %v4863 = vunpack.c.l.b16 %v4691
        %v4864 = vunpack.c.l.b16 %v4692
        %v4865 = vunpack.c.h.b16 %v4692
        %v4866 = vunpack.c.l.b16 %v4693
        %v4867 = vunpack.c.l.b16 %v4694
        %v4868 = vunpack.c.h.b16 %v4694
        %v4869 = vunpack.c.l.b16 %v4695
        %v4870 = vunpack.c.l.b16 %v4696
        %v4871 = vunpack.c.h.b16 %v4696
        %v4872 = vunpack.c.l.b16 %v4697
        %v4873 = vunpack.c.l.b16 %v4698
        %v4874 = vunpack.c.h.b16 %v4698
        %v4875 = vunpack.c.l.b16 %v4699
        %v4876 = vunpack.c.l.b16 %v4700
        %v4877 = vunpack.c.h.b16 %v4700
        %v4878 = vunpack.c.l.b16 %v4701
        %v4879 = vunpack.c.l.b16 %v4702
        %v4880 = vunpack.c.h.b16 %v4702
        %v4881 = vunpack.c.l.b16 %v4703
        %v4882 = vunpack.c.l.b16 %v4704
        %v4883 = vunpack.c.h.b16 %v4704
        %v4884 = vunpack.c.l.b16 %v4705
        %v4885 = vunpack.c.l.b16 %v4706
        %v4886 = vunpack.c.h.b16 %v4706
        %v4887 = vunpack.c.l.b16 %v4707
        %v4888 = vunpack.c.l.b16 %v4708
        %v4889 = vunpack.c.h.b16 %v4708
        %v4890 = vunpack.c.l.b16 %v4709
        %v4891 = vunpack.c.l.b16 %v4710
        %v4892 = vunpack.c.h.b16 %v4710
        %v4893 = vunpack.c.l.b16 %v4711
        %v4894 = vunpack.c.l.b16 %v4712
        %v4895 = vunpack.c.h.b16 %v4712
        %v4896 = vunpack.c.l.b16 %v4713
        %v4897 = vunpack.c.l.b16 %v4714
        %v4898 = vunpack.c.h.b16 %v4714
        %v4899 = vunpack.c.l.b16 %v4715
        %v4900 = vunpack.c.l.b16 %v4716
        %v4901 = vunpack.c.h.b16 %v4716
        %v4902 = vunpack.c.l.b16 %v4717
        %v4903 = vunpack.c.l.b16 %v4718
        %v4904 = vunpack.c.h.b16 %v4718
        %v4905 = vunpack.c.l.b16 %v4719
        %v4906 = vunpack.c.l.b16 %v4720
        %v4907 = vunpack.c.h.b16 %v4720
        %v4908 = vunpack.c.l.b16 %v4721
        %v4909 = vunpack.c.l.b16 %v4722
        %v4910 = vunpack.c.h.b16 %v4722
        %v4911 = vunpack.c.l.b16 %v4723
        %v4912 = vunpack.c.l.b16 %v4724
        %v4913 = vunpack.c.h.b16 %v4724
        %v4914 = vunpack.c.l.b16 %v4725
        %v4915 = vunpack.c.l.b16 %v4726
        %v4916 = vunpack.c.h.b16 %v4726
        %v4917 = vunpack.c.l.b16 %v4727
        %v4918 = vunpack.c.l.b16 %v4728
        %v4919 = vunpack.c.h.b16 %v4728
        %v4920 = vunpack.c.l.b16 %v4729
        %v4921 = vunpack.c.l.b16 %v4730
        %v4922 = vunpack.c.h.b16 %v4730
        %v4923 = vunpack.c.l.b16 %v4731
        %v4924 = vunpack.c.l.b16 %v4732
        %v4925 = vunpack.c.h.b16 %v4732
        %v4926 = vunpack.c.l.b16 %v4733
        %v4927 = vunpack.c.l.b16 %v4734
        %v4928 = vunpack.c.h.b16 %v4734
        %v4929 = vunpack.c.l.b16 %v4735
        %v4930 = vunpack.c.l.b16 %v4736
        %v4931 = vunpack.c.h.b16 %v4736
        %v4932 = vunpack.c.l.b16 %v4737
        %v4933 = vunpack.c.l.b16 %v4738
        %v4934 = vunpack.c.h.b16 %v4738
        %v4935 = vunpack.c.l.b16 %v4739
        %v4936 = vpack.c.b16 %v4843, %v4840
        %v4937 = vpack.c.b16 %v4844, %v4841
        %v4938 = vpack.c.b16 %v4845, %v4842
        %v4939 = vpack.c.b16 %v4849, %v4846
        %v4940 = vpack.c.b16 %v4850, %v4847
        %v4941 = vpack.c.b16 %v4851, %v4848
        %v4942 = vpack.c.b16 %v4855, %v4852
        %v4943 = vpack.c.b16 %v4856, %v4853
        %v4944 = vpack.c.b16 %v4857, %v4854
        %v4945 = vpack.c.b16 %v4861, %v4858
        %v4946 = vpack.c.b16 %v4862, %v4859
        %v4947 = vpack.c.b16 %v4863, %v4860
        %v4948 = vpack.c.b16 %v4867, %v4864
        %v4949 = vpack.c.b16 %v4868, %v4865
        %v4950 = vpack.c.b16 %v4869, %v4866
        %v4951 = vpack.c.b16 %v4873, %v4870
        %v4952 = vpack.c.b16 %v4874, %v4871
        %v4953 = vpack.c.b16 %v4875, %v4872
        %v4954 = vpack.c.b16 %v4879, %v4876
        %v4955 = vpack.c.b16 %v4880, %v4877
        %v4956 = vpack.c.b16 %v4881, %v4878
        %v4957 = vpack.c.b16 %v4885, %v4882
        %v4958 = vpack.c.b16 %v4886, %v4883
        %v4959 = vpack.c.b16 %v4887, %v4884
        %v4960 = vpack.c.b16 %v4891, %v4888
        %v4961 = vpack.c.b16 %v4892, %v4889
        %v4962 = vpack.c.b16 %v4893, %v4890
        %v4963 = vpack.c.b16 %v4897, %v4894
        %v4964 = vpack.c.b16 %v4898, %v4895
        %v4965 = vpack.c.b16 %v4899, %v4896
        %v4966 = vpack.c.b16 %v4903, %v4900
        %v4967 = vpack.c.b16 %v4904, %v4901
        %v4968 = vpack.c.b16 %v4905, %v4902
        %v4969 = vpack.c.b16 %v4909, %v4906
        %v4970 = vpack.c.b16 %v4910, %v4907
        %v4971 = vpack.c.b16 %v4911, %v4908
        %v4972 = vpack.c.b16 %v4915, %v4912
        %v4973 = vpack.c.b16 %v4916, %v4913
        %v4974 = vpack.c.b16 %v4917, %v4914
        %v4975 = vpack.c.b16 %v4921, %v4918
        %v4976 = vpack.c.b16 %v4922, %v4919
        %v4977 = vpack.c.b16 %v4923, %v4920
        %v4978 = vpack.c.b16 %v4927, %v4924
        %v4979 = vpack.c.b16 %v4928, %v4925
        %v4980 = vpack.c.b16 %v4929, %v4926
        %v4981 = vpack.c.b16 %v4933, %v4930
        %v4982 = vpack.c.b16 %v4934, %v4931
        %v4983 = vpack.c.b16 %v4935, %v4932
        %v5052 = vunpack.c.l.b16 %v4740
        %v5053 = vunpack.c.l.b16 %v4741
        %v5054 = vunpack.c.l.b16 %v4742
        %v5055 = vunpack.c.l.b16 %v4743
        %v5056 = vunpack.c.l.b16 %v4744
        %v5057 = vunpack.c.l.b16 %v4745
        %v5058 = vunpack.c.l.b16 %v4746
        %v5059 = vunpack.c.l.b16 %v4747
        %v5060 = vunpack.c.l.b16 %v4748
        %v5061 = vunpack.c.l.b16 %v4749
        %v5062 = vunpack.c.l.b16 %v4750
        %v5063 = vunpack.c.l.b16 %v4751
        %v5064 = vunpack.c.l.b16 %v4752
        %v5065 = vunpack.c.l.b16 %v4753
        %v5066 = vunpack.c.l.b16 %v4754
        %v5067 = vunpack.c.l.b16 %v4755
        %v5068 = vunpack.c.l.b16 %v4756
        %v5069 = vunpack.c.l.b16 %v4757
        %v5070 = vunpack.c.l.b16 %v4758
        %v5071 = vunpack.c.l.b16 %v4759
        %v5072 = vunpack.c.l.b16 %v4760
        %v5073 = vunpack.c.l.b16 %v4761
        %v5074 = vunpack.c.l.b16 %v4762
        %v5075 = vunpack.c.l.b16 %v4763
        %v5076 = vunpack.c.l.b16 %v4764
        %v5077 = vunpack.c.l.b16 %v4765
        %v5078 = vunpack.c.l.b16 %v4766
        %v5079 = vunpack.c.l.b16 %v4767
        %v5080 = vunpack.c.l.b16 %v4768
        %v5081 = vunpack.c.l.b16 %v4769
        %v5082 = vunpack.c.l.b16 %v4770
        %v5083 = vunpack.c.l.b16 %v4771
        %v5084 = vunpack.c.l.b16 %v4772
        %v5085 = vunpack.c.l.b16 %v4773
        %v5086 = vunpack.c.l.b16 %v4774
        %v5087 = vunpack.c.l.b16 %v4775
        %v5088 = vpack.c.b16 %v5053, %v5052
        %v5089 = vpack.c.b16 %v5055, %v5054
        %v5090 = vpack.c.b16 %v5057, %v5056
        %v5091 = vpack.c.b16 %v5059, %v5058
        %v5092 = vpack.c.b16 %v5061, %v5060
        %v5093 = vpack.c.b16 %v5063, %v5062
        %v5094 = vpack.c.b16 %v5065, %v5064
        %v5095 = vpack.c.b16 %v5067, %v5066
        %v5096 = vpack.c.b16 %v5069, %v5068
        %v5097 = vpack.c.b16 %v5071, %v5070
        %v5098 = vpack.c.b16 %v5073, %v5072
        %v5099 = vpack.c.b16 %v5075, %v5074
        %v5100 = vpack.c.b16 %v5077, %v5076
        %v5101 = vpack.c.b16 %v5079, %v5078
        %v5102 = vpack.c.b16 %v5081, %v5080
        %v5103 = vpack.c.b16 %v5083, %v5082
        %v5104 = vpack.c.b16 %v5085, %v5084
        %v5105 = vpack.c.b16 %v5087, %v5086
        %vm5124 = vcmask 261120
        %v5126 = vsel %vm5124, %v4938, 0
        %v5129 = vsel %vm5124, %v4941, 0
        %v5132 = vsel %vm5124, %v4944, 0
        %v5135 = vsel %vm5124, %v4947, 0
        %v5138 = vsel %vm5124, %v4950, 0
        %v5141 = vsel %vm5124, %v4953, 0
        %v5144 = vsel %vm5124, %v4956, 0
        %v5147 = vsel %vm5124, %v4959, 0
        %v5150 = vsel %vm5124, %v4962, 0
        %v5153 = vsel %vm5124, %v4965, 0
        %v5156 = vsel %vm5124, %v4968, 0
        %v5159 = vsel %vm5124, %v4971, 0
        %v5162 = vsel %vm5124, %v4974, 0
        %v5165 = vsel %vm5124, %v4977, 0
        %v5168 = vsel %vm5124, %v4980, 0
        %v5171 = vsel %vm5124, %v4983, 0
        %5173 = vmatprep.subr.bf16.mxu0 0
        %5174 = vmatpush1.bf16.msra.mxu0 %v5095
        %5175 = vmatprep.subr.bf16.mxu0 0
        %5176 = vmatpush1.bf16.msra.mxu0 %v5094
        %5177 = vmatprep.subr.bf16.mxu0 0
        %5178 = vmatpush1.bf16.msra.mxu0 %v5093
        %5179 = vmatprep.subr.bf16.mxu0 0
        %5180 = vmatpush1.bf16.msra.mxu0 %v5092
        %5181 = vmatprep.subr.bf16.mxu0 0
        %5182 = vmatpush1.bf16.msra.mxu0 %v5091
        %5183 = vmatprep.subr.bf16.mxu0 0
        %5184 = vmatpush1.bf16.msra.mxu0 %v5090
        %5185 = vmatprep.subr.bf16.mxu0 0
        %5186 = vmatpush1.bf16.msra.mxu0 %v5089
        %5187 = vmatprep.subr.bf16.mxu0 0
        %5188 = vmatpush1.bf16.msra.mxu0 %v5088
        %5189 = vmatprep.subr.bf16.mxu0 0
        %5190 = vmatpush2.bf16.msra.mxu0 %v5103
        %5191 = vmatprep.subr.bf16.mxu0 0
        %5192 = vmatpush2.bf16.msra.mxu0 %v5102
        %5193 = vmatprep.subr.bf16.mxu0 0
        %5194 = vmatpush2.bf16.msra.mxu0 %v5101
        %5195 = vmatprep.subr.bf16.mxu0 0
        %5196 = vmatpush2.bf16.msra.mxu0 %v5100
        %5197 = vmatprep.subr.bf16.mxu0 0
        %5198 = vmatpush2.bf16.msra.mxu0 %v5099
        %5199 = vmatprep.subr.bf16.mxu0 0
        %5200 = vmatpush2.bf16.msra.mxu0 %v5098
        %5201 = vmatprep.subr.bf16.mxu0 0
        %5202 = vmatpush2.bf16.msra.mxu0 %v5097
        %5203 = vmatprep.subr.bf16.mxu0 0
        %5204 = vmatpush2.bf16.msra.mxu0 %v5096
        %5205 = vmatprep.mubr.bf16.mxu0 %v4937
        %5206 = vmatmul.mubr.bf16.gmra.mxu0 %v4936
        %v5207 = vpop.f32.mrf.mxu0
        %v5208 = vadd.f32 0.0, %v5207
        %v5209 = vpop.f32.mrf.mxu0
        %v5210 = vpop.f32.mrf.mxu0
        %v5211 = vadd.f32 0.0, %v5210
        %v5212 = vpop.f32.mrf.mxu0
        %5213 = vmatprep.mubr.bf16.mxu0 %v4940
        %5214 = vmatmul.mubr.bf16.gmra.mxu0 %v4939
        %v5215 = vpop.f32.mrf.mxu0
        %v5216 = vadd.f32 0.0, %v5215
        %v5217 = vpop.f32.mrf.mxu0
        %v5218 = vpop.f32.mrf.mxu0
        %v5219 = vadd.f32 0.0, %v5218
        %v5220 = vpop.f32.mrf.mxu0
        %5221 = vmatprep.mubr.bf16.mxu0 %v4943
        %5222 = vmatmul.mubr.bf16.gmra.mxu0 %v4942
        %v5223 = vpop.f32.mrf.mxu0
        %v5224 = vadd.f32 0.0, %v5223
        %v5225 = vpop.f32.mrf.mxu0
        %v5226 = vpop.f32.mrf.mxu0
        %v5227 = vadd.f32 0.0, %v5226
        %v5228 = vpop.f32.mrf.mxu0
        %5229 = vmatprep.mubr.bf16.mxu0 %v4946
        %5230 = vmatmul.mubr.bf16.gmra.mxu0 %v4945
        %v5231 = vpop.f32.mrf.mxu0
        %v5232 = vadd.f32 0.0, %v5231
        %v5233 = vpop.f32.mrf.mxu0
        %v5234 = vpop.f32.mrf.mxu0
        %v5235 = vadd.f32 0.0, %v5234
        %v5236 = vpop.f32.mrf.mxu0
        %5237 = vmatprep.mubr.bf16.mxu0 %v4949
        %5238 = vmatmul.mubr.bf16.gmra.mxu0 %v4948
        %v5239 = vpop.f32.mrf.mxu0
        %v5240 = vadd.f32 0.0, %v5239
        %v5241 = vpop.f32.mrf.mxu0
        %v5242 = vpop.f32.mrf.mxu0
        %v5243 = vadd.f32 0.0, %v5242
        %v5244 = vpop.f32.mrf.mxu0
        %5245 = vmatprep.mubr.bf16.mxu0 %v4952
        %5246 = vmatmul.mubr.bf16.gmra.mxu0 %v4951
        %v5247 = vpop.f32.mrf.mxu0
        %v5248 = vadd.f32 0.0, %v5247
        %v5249 = vpop.f32.mrf.mxu0
        %v5250 = vpop.f32.mrf.mxu0
        %v5251 = vadd.f32 0.0, %v5250
        %v5252 = vpop.f32.mrf.mxu0
        %5253 = vmatprep.mubr.bf16.mxu0 %v4955
        %5254 = vmatmul.mubr.bf16.gmra.mxu0 %v4954
        %v5255 = vpop.f32.mrf.mxu0
        %v5256 = vadd.f32 0.0, %v5255
        %v5257 = vpop.f32.mrf.mxu0
        %v5258 = vpop.f32.mrf.mxu0
        %v5259 = vadd.f32 0.0, %v5258
        %v5260 = vpop.f32.mrf.mxu0
        %5261 = vmatprep.mubr.bf16.mxu0 %v4958
        %5262 = vmatmul.mubr.bf16.gmra.mxu0 %v4957
        %v5263 = vpop.f32.mrf.mxu0
        %v5264 = vadd.f32 0.0, %v5263
        %v5265 = vpop.f32.mrf.mxu0
        %v5266 = vpop.f32.mrf.mxu0
        %v5267 = vadd.f32 0.0, %v5266
        %v5268 = vpop.f32.mrf.mxu0
        %5269 = vmatprep.mubr.bf16.mxu0 %v4961
        %5270 = vmatmul.mubr.bf16.gmra.mxu0 %v4960
        %v5271 = vpop.f32.mrf.mxu0
        %v5272 = vadd.f32 0.0, %v5271
        %v5273 = vpop.f32.mrf.mxu0
        %v5274 = vpop.f32.mrf.mxu0
        %v5275 = vadd.f32 0.0, %v5274
        %v5276 = vpop.f32.mrf.mxu0
        %5277 = vmatprep.mubr.bf16.mxu0 %v4964
        %5278 = vmatmul.mubr.bf16.gmra.mxu0 %v4963
        %v5279 = vpop.f32.mrf.mxu0
        %v5280 = vadd.f32 0.0, %v5279
        %v5281 = vpop.f32.mrf.mxu0
        %v5282 = vpop.f32.mrf.mxu0
        %v5283 = vadd.f32 0.0, %v5282
        %v5284 = vpop.f32.mrf.mxu0
        %5285 = vmatprep.mubr.bf16.mxu0 %v4967
        %5286 = vmatmul.mubr.bf16.gmra.mxu0 %v4966
        %v5287 = vpop.f32.mrf.mxu0
        %v5288 = vadd.f32 0.0, %v5287
        %v5289 = vpop.f32.mrf.mxu0
        %v5290 = vpop.f32.mrf.mxu0
        %v5291 = vadd.f32 0.0, %v5290
        %v5292 = vpop.f32.mrf.mxu0
        %5293 = vmatprep.mubr.bf16.mxu0 %v4970
        %5294 = vmatmul.mubr.bf16.gmra.mxu0 %v4969
        %v5295 = vpop.f32.mrf.mxu0
        %v5296 = vadd.f32 0.0, %v5295
        %v5297 = vpop.f32.mrf.mxu0
        %v5298 = vpop.f32.mrf.mxu0
        %v5299 = vadd.f32 0.0, %v5298
        %v5300 = vpop.f32.mrf.mxu0
        %5301 = vmatprep.mubr.bf16.mxu0 %v4973
        %5302 = vmatmul.mubr.bf16.gmra.mxu0 %v4972
        %v5303 = vpop.f32.mrf.mxu0
        %v5304 = vadd.f32 0.0, %v5303
        %v5305 = vpop.f32.mrf.mxu0
        %v5306 = vpop.f32.mrf.mxu0
        %v5307 = vadd.f32 0.0, %v5306
        %v5308 = vpop.f32.mrf.mxu0
        %5309 = vmatprep.mubr.bf16.mxu0 %v4976
        %5310 = vmatmul.mubr.bf16.gmra.mxu0 %v4975
        %v5311 = vpop.f32.mrf.mxu0
        %v5312 = vadd.f32 0.0, %v5311
        %v5313 = vpop.f32.mrf.mxu0
        %v5314 = vpop.f32.mrf.mxu0
        %v5315 = vadd.f32 0.0, %v5314
        %v5316 = vpop.f32.mrf.mxu0
        %5317 = vmatprep.mubr.bf16.mxu0 %v4979
        %5318 = vmatmul.mubr.bf16.gmra.mxu0 %v4978
        %v5319 = vpop.f32.mrf.mxu0
        %v5320 = vadd.f32 0.0, %v5319
        %v5321 = vpop.f32.mrf.mxu0
        %v5322 = vpop.f32.mrf.mxu0
        %v5323 = vadd.f32 0.0, %v5322
        %v5324 = vpop.f32.mrf.mxu0
        %5325 = vmatprep.mubr.bf16.mxu0 %v4982
        %5326 = vmatmul.mubr.bf16.gmra.mxu0 %v4981
        %v5327 = vpop.f32.mrf.mxu0
        %v5328 = vadd.f32 0.0, %v5327
        %v5329 = vpop.f32.mrf.mxu0
        %v5330 = vpop.f32.mrf.mxu0
        %v5331 = vadd.f32 0.0, %v5330
        %v5332 = vpop.f32.mrf.mxu0
        %5333 = vdwg.mxu0
        %5334 = vmatprep.subr.bf16.mxu0 0
        %5335 = vmatpush1.bf16.msra.mxu0 0
        %5336 = vmatprep.subr.bf16.mxu0 0
        %5337 = vmatpush1.bf16.msra.mxu0 0
        %5338 = vmatprep.subr.bf16.mxu0 0
        %5339 = vmatpush1.bf16.msra.mxu0 0
        %5340 = vmatprep.subr.bf16.mxu0 0
        %5341 = vmatpush1.bf16.msra.mxu0 0
        %5342 = vmatprep.subr.bf16.mxu0 0
        %5343 = vmatpush1.bf16.msra.mxu0 0
        %5344 = vmatprep.subr.bf16.mxu0 0
        %5345 = vmatpush1.bf16.msra.mxu0 0
        %5346 = vmatprep.subr.bf16.mxu0 0
        %5347 = vmatpush1.bf16.msra.mxu0 %v5105
        %5348 = vmatprep.subr.bf16.mxu0 0
        %5349 = vmatpush1.bf16.msra.mxu0 %v5104
        %5350 = vmatprep.subr.bf16.mxu0 0
        %5351 = vmatpush2.bf16.msra.mxu0 0
        %5352 = vmatprep.subr.bf16.mxu0 0
        %5353 = vmatpush2.bf16.msra.mxu0 0
        %5354 = vmatprep.subr.bf16.mxu0 0
        %5355 = vmatpush2.bf16.msra.mxu0 0
        %5356 = vmatprep.subr.bf16.mxu0 0
        %5357 = vmatpush2.bf16.msra.mxu0 0
        %5358 = vmatprep.subr.bf16.mxu0 0
        %5359 = vmatpush2.bf16.msra.mxu0 0
        %5360 = vmatprep.subr.bf16.mxu0 0
        %5361 = vmatpush2.bf16.msra.mxu0 0
        %5362 = vmatprep.subr.bf16.mxu0 0
        %5363 = vmatpush2.bf16.msra.mxu0 0
        %5364 = vmatprep.subr.bf16.mxu0 0
        %5365 = vmatpush2.bf16.msra.mxu0 0
        %5366 = vmatprep.mubr.bf16.mxu0 0
        %5367 = vmatmul.mubr.bf16.gmra.mxu0 %v5126
        %v5368 = vpop.f32.mrf.mxu0
        %v5369 = vadd.f32 %v5208, %v5368
        %v5370 = vpop.f32.mrf.mxu0
        %v5371 = vpop.f32.mrf.mxu0
        %v5372 = vadd.f32 %v5211, %v5371
        %v5373 = vpop.f32.mrf.mxu0
        %5374 = vmatprep.mubr.bf16.mxu0 0
        %5375 = vmatmul.mubr.bf16.gmra.mxu0 %v5129
        %v5376 = vpop.f32.mrf.mxu0
        %v5377 = vadd.f32 %v5216, %v5376
        %v5378 = vpop.f32.mrf.mxu0
        %v5379 = vpop.f32.mrf.mxu0
        %v5380 = vadd.f32 %v5219, %v5379
        %v5381 = vpop.f32.mrf.mxu0
        %5382 = vmatprep.mubr.bf16.mxu0 0
        %5383 = vmatmul.mubr.bf16.gmra.mxu0 %v5132
        %v5384 = vpop.f32.mrf.mxu0
        %v5385 = vadd.f32 %v5224, %v5384
        %v5386 = vpop.f32.mrf.mxu0
        %v5387 = vpop.f32.mrf.mxu0
        %v5388 = vadd.f32 %v5227, %v5387
        %v5389 = vpop.f32.mrf.mxu0
        %5390 = vmatprep.mubr.bf16.mxu0 0
        %5391 = vmatmul.mubr.bf16.gmra.mxu0 %v5135
        %v5392 = vpop.f32.mrf.mxu0
        %v5393 = vadd.f32 %v5232, %v5392
        %v5394 = vpop.f32.mrf.mxu0
        %v5395 = vpop.f32.mrf.mxu0
        %v5396 = vadd.f32 %v5235, %v5395
        %v5397 = vpop.f32.mrf.mxu0
        %5398 = vmatprep.mubr.bf16.mxu0 0
        %5399 = vmatmul.mubr.bf16.gmra.mxu0 %v5138
        %v5400 = vpop.f32.mrf.mxu0
        %v5401 = vadd.f32 %v5240, %v5400
        %v5402 = vpop.f32.mrf.mxu0
        %v5403 = vpop.f32.mrf.mxu0
        %v5404 = vadd.f32 %v5243, %v5403
        %v5405 = vpop.f32.mrf.mxu0
        %5406 = vmatprep.mubr.bf16.mxu0 0
        %5407 = vmatmul.mubr.bf16.gmra.mxu0 %v5141
        %v5408 = vpop.f32.mrf.mxu0
        %v5409 = vadd.f32 %v5248, %v5408
        %v5410 = vpop.f32.mrf.mxu0
        %v5411 = vpop.f32.mrf.mxu0
        %v5412 = vadd.f32 %v5251, %v5411
        %v5413 = vpop.f32.mrf.mxu0
        %5414 = vmatprep.mubr.bf16.mxu0 0
        %5415 = vmatmul.mubr.bf16.gmra.mxu0 %v5144
        %v5416 = vpop.f32.mrf.mxu0
        %v5417 = vadd.f32 %v5256, %v5416
        %v5418 = vpop.f32.mrf.mxu0
        %v5419 = vpop.f32.mrf.mxu0
        %v5420 = vadd.f32 %v5259, %v5419
        %v5421 = vpop.f32.mrf.mxu0
        %5422 = vmatprep.mubr.bf16.mxu0 0
        %5423 = vmatmul.mubr.bf16.gmra.mxu0 %v5147
        %v5424 = vpop.f32.mrf.mxu0
        %v5425 = vadd.f32 %v5264, %v5424
        %v5426 = vpop.f32.mrf.mxu0
        %v5427 = vpop.f32.mrf.mxu0
        %v5428 = vadd.f32 %v5267, %v5427
        %v5429 = vpop.f32.mrf.mxu0
        %5430 = vmatprep.mubr.bf16.mxu0 0
        %5431 = vmatmul.mubr.bf16.gmra.mxu0 %v5150
        %v5432 = vpop.f32.mrf.mxu0
        %v5433 = vadd.f32 %v5272, %v5432
        %v5434 = vpop.f32.mrf.mxu0
        %v5435 = vpop.f32.mrf.mxu0
        %v5436 = vadd.f32 %v5275, %v5435
        %v5437 = vpop.f32.mrf.mxu0
        %5438 = vmatprep.mubr.bf16.mxu0 0
        %5439 = vmatmul.mubr.bf16.gmra.mxu0 %v5153
        %v5440 = vpop.f32.mrf.mxu0
        %v5441 = vadd.f32 %v5280, %v5440
        %v5442 = vpop.f32.mrf.mxu0
        %v5443 = vpop.f32.mrf.mxu0
        %v5444 = vadd.f32 %v5283, %v5443
        %v5445 = vpop.f32.mrf.mxu0
        %5446 = vmatprep.mubr.bf16.mxu0 0
        %5447 = vmatmul.mubr.bf16.gmra.mxu0 %v5156
        %v5448 = vpop.f32.mrf.mxu0
        %v5449 = vadd.f32 %v5288, %v5448
        %v5450 = vpop.f32.mrf.mxu0
        %v5451 = vpop.f32.mrf.mxu0
        %v5452 = vadd.f32 %v5291, %v5451
        %v5453 = vpop.f32.mrf.mxu0
        %5454 = vmatprep.mubr.bf16.mxu0 0
        %5455 = vmatmul.mubr.bf16.gmra.mxu0 %v5159
        %v5456 = vpop.f32.mrf.mxu0
        %v5457 = vadd.f32 %v5296, %v5456
        %v5458 = vpop.f32.mrf.mxu0
        %v5459 = vpop.f32.mrf.mxu0
        %v5460 = vadd.f32 %v5299, %v5459
        %v5461 = vpop.f32.mrf.mxu0
        %5462 = vmatprep.mubr.bf16.mxu0 0
        %5463 = vmatmul.mubr.bf16.gmra.mxu0 %v5162
        %v5464 = vpop.f32.mrf.mxu0
        %v5465 = vadd.f32 %v5304, %v5464
        %v5466 = vpop.f32.mrf.mxu0
        %v5467 = vpop.f32.mrf.mxu0
        %v5468 = vadd.f32 %v5307, %v5467
        %v5469 = vpop.f32.mrf.mxu0
        %5470 = vmatprep.mubr.bf16.mxu0 0
        %5471 = vmatmul.mubr.bf16.gmra.mxu0 %v5165
        %v5472 = vpop.f32.mrf.mxu0
        %v5473 = vadd.f32 %v5312, %v5472
        %v5474 = vpop.f32.mrf.mxu0
        %v5475 = vpop.f32.mrf.mxu0
        %v5476 = vadd.f32 %v5315, %v5475
        %v5477 = vpop.f32.mrf.mxu0
        %5478 = vmatprep.mubr.bf16.mxu0 0
        %5479 = vmatmul.mubr.bf16.gmra.mxu0 %v5168
        %v5480 = vpop.f32.mrf.mxu0
        %v5481 = vadd.f32 %v5320, %v5480
        %v5482 = vpop.f32.mrf.mxu0
        %v5483 = vpop.f32.mrf.mxu0
        %v5484 = vadd.f32 %v5323, %v5483
        %v5485 = vpop.f32.mrf.mxu0
        %5486 = vmatprep.mubr.bf16.mxu0 0
        %5487 = vmatmul.mubr.bf16.gmra.mxu0 %v5171
        %v5488 = vpop.f32.mrf.mxu0
        %v5489 = vadd.f32 %v5328, %v5488
        %v5490 = vpop.f32.mrf.mxu0
        %v5491 = vpop.f32.mrf.mxu0
        %v5492 = vadd.f32 %v5331, %v5491
        %v5493 = vpop.f32.mrf.mxu0
        %5494 = vdwg.mxu0
        %v5495 = vld [vmem:[%s5] sm:$0x1]
        %v5497 = vlaneseq
        %v5498 = vshrl.u32 %v5497, 7
        %v5499 = vsub.s32 0, %v5498
        %v5500 = vrot.slane %v5495, %v5499
        %v5502 = vmul.f32 %v5369, %v5500
        %v5503 = vmul.f32 %v5372, %v5500
        %v5504 = vmul.f32 %v5377, %v5500
        %v5505 = vmul.f32 %v5380, %v5500
        %v5506 = vmul.f32 %v5385, %v5500
        %v5507 = vmul.f32 %v5388, %v5500
        %v5508 = vmul.f32 %v5393, %v5500
        %v5509 = vmul.f32 %v5396, %v5500
        %v5510 = vmul.f32 %v5401, %v5500
        %v5511 = vmul.f32 %v5404, %v5500
        %v5512 = vmul.f32 %v5409, %v5500
        %v5513 = vmul.f32 %v5412, %v5500
        %v5514 = vmul.f32 %v5417, %v5500
        %v5515 = vmul.f32 %v5420, %v5500
        %v5516 = vmul.f32 %v5425, %v5500
        %v5517 = vmul.f32 %v5428, %v5500
        %v5518 = vmul.f32 %v5433, %v5500
        %v5519 = vmul.f32 %v5436, %v5500
        %v5520 = vmul.f32 %v5441, %v5500
        %v5521 = vmul.f32 %v5444, %v5500
        %v5522 = vmul.f32 %v5449, %v5500
        %v5523 = vmul.f32 %v5452, %v5500
        %v5524 = vmul.f32 %v5457, %v5500
        %v5525 = vmul.f32 %v5460, %v5500
        %v5526 = vmul.f32 %v5465, %v5500
        %v5527 = vmul.f32 %v5468, %v5500
        %v5528 = vmul.f32 %v5473, %v5500
        %v5529 = vmul.f32 %v5476, %v5500
        %v5530 = vmul.f32 %v5481, %v5500
        %v5531 = vmul.f32 %v5484, %v5500
        %v5532 = vmul.f32 %v5489, %v5500
        %v5533 = vmul.f32 %v5492, %v5500
        %v5534 = vld [vmem:[%s6] sm:$0x1]
        %v5536 = vlaneseq
        %v5537 = vshrl.u32 %v5536, 7
        %v5538 = vsub.s32 0, %v5537
        %v5539 = vrot.slane %v5534, %v5538
        %v5541 = vadd.f32 %v5502, %v5539
        %v5542 = vadd.f32 %v5503, %v5539
        %v5543 = vadd.f32 %v5504, %v5539
        %v5544 = vadd.f32 %v5505, %v5539
        %v5545 = vadd.f32 %v5506, %v5539
        %v5546 = vadd.f32 %v5507, %v5539
        %v5547 = vadd.f32 %v5508, %v5539
        %v5548 = vadd.f32 %v5509, %v5539
        %v5549 = vadd.f32 %v5510, %v5539
        %v5550 = vadd.f32 %v5511, %v5539
        %v5551 = vadd.f32 %v5512, %v5539
        %v5552 = vadd.f32 %v5513, %v5539
        %v5553 = vadd.f32 %v5514, %v5539
        %v5554 = vadd.f32 %v5515, %v5539
        %v5555 = vadd.f32 %v5516, %v5539
        %v5556 = vadd.f32 %v5517, %v5539
        %v5557 = vadd.f32 %v5518, %v5539
        %v5558 = vadd.f32 %v5519, %v5539
        %v5559 = vadd.f32 %v5520, %v5539
        %v5560 = vadd.f32 %v5521, %v5539
        %v5561 = vadd.f32 %v5522, %v5539
        %v5562 = vadd.f32 %v5523, %v5539
        %v5563 = vadd.f32 %v5524, %v5539
        %v5564 = vadd.f32 %v5525, %v5539
        %v5565 = vadd.f32 %v5526, %v5539
        %v5566 = vadd.f32 %v5527, %v5539
        %v5567 = vadd.f32 %v5528, %v5539
        %v5568 = vadd.f32 %v5529, %v5539
        %v5569 = vadd.f32 %v5530, %v5539
        %v5570 = vadd.f32 %v5531, %v5539
        %v5571 = vadd.f32 %v5532, %v5539
        %v5572 = vadd.f32 %v5533, %v5539
        %v5573 = vmax.f32 %v5541, 0.0
        %v5574 = vmax.f32 %v5542, 0.0
        %v5575 = vmax.f32 %v5543, 0.0
        %v5576 = vmax.f32 %v5544, 0.0
        %v5577 = vmax.f32 %v5545, 0.0
        %v5578 = vmax.f32 %v5546, 0.0
        %v5579 = vmax.f32 %v5547, 0.0
        %v5580 = vmax.f32 %v5548, 0.0
        %v5581 = vmax.f32 %v5549, 0.0
        %v5582 = vmax.f32 %v5550, 0.0
        %v5583 = vmax.f32 %v5551, 0.0
        %v5584 = vmax.f32 %v5552, 0.0
        %v5585 = vmax.f32 %v5553, 0.0
        %v5586 = vmax.f32 %v5554, 0.0
        %v5587 = vmax.f32 %v5555, 0.0
        %v5588 = vmax.f32 %v5556, 0.0
        %v5589 = vmax.f32 %v5557, 0.0
        %v5590 = vmax.f32 %v5558, 0.0
        %v5591 = vmax.f32 %v5559, 0.0
        %v5592 = vmax.f32 %v5560, 0.0
        %v5593 = vmax.f32 %v5561, 0.0
        %v5594 = vmax.f32 %v5562, 0.0
        %v5595 = vmax.f32 %v5563, 0.0
        %v5596 = vmax.f32 %v5564, 0.0
        %v5597 = vmax.f32 %v5565, 0.0
        %v5598 = vmax.f32 %v5566, 0.0
        %v5599 = vmax.f32 %v5567, 0.0
        %v5600 = vmax.f32 %v5568, 0.0
        %v5601 = vmax.f32 %v5569, 0.0
        %v5602 = vmax.f32 %v5570, 0.0
        %v5603 = vmax.f32 %v5571, 0.0
        %v5604 = vmax.f32 %v5572, 0.0
        %v5605 = vpack.c.bf16 %v5574, %v5573
        %v5606 = vpack.c.bf16 %v5576, %v5575
        %v5607 = vpack.c.bf16 %v5578, %v5577
        %v5608 = vpack.c.bf16 %v5580, %v5579
        %v5609 = vpack.c.bf16 %v5582, %v5581
        %v5610 = vpack.c.bf16 %v5584, %v5583
        %v5611 = vpack.c.bf16 %v5586, %v5585
        %v5612 = vpack.c.bf16 %v5588, %v5587
        %v5613 = vpack.c.bf16 %v5590, %v5589
        %v5614 = vpack.c.bf16 %v5592, %v5591
        %v5615 = vpack.c.bf16 %v5594, %v5593
        %v5616 = vpack.c.bf16 %v5596, %v5595
        %v5617 = vpack.c.bf16 %v5598, %v5597
        %v5618 = vpack.c.bf16 %v5600, %v5599
        %v5619 = vpack.c.bf16 %v5602, %v5601
        %v5620 = vpack.c.bf16 %v5604, %v5603
        %v5621 = vld [vmem:[%s7] sm:$0xf]
        %v5622 = vld [vmem:[%s7 + $0x4] sm:$0xf]
        %v5623 = vld [vmem:[%s7 + $0x8] sm:$0xf]
        %v5624 = vld [vmem:[%s7 + $0xc] sm:$0xf]
        %v5629 = vunpack.c.l.b16 %v5621
        %v5630 = vunpack.c.l.b16 %v5622
        %v5631 = vunpack.c.l.b16 %v5623
        %v5632 = vunpack.c.l.b16 %v5624
        %v5633 = vpack.c.b16 %v5630, %v5629
        %v5634 = vpack.c.b16 %v5632, %v5631
        %v5638 = vsel %vm5124, %v5605, 0
        %v5641 = vsel %vm5124, %v5606, 0
        %v5644 = vsel %vm5124, %v5607, 0
        %v5647 = vsel %vm5124, %v5608, 0
        %v5650 = vsel %vm5124, %v5609, 0
        %v5653 = vsel %vm5124, %v5610, 0
        %v5656 = vsel %vm5124, %v5611, 0
        %v5659 = vsel %vm5124, %v5612, 0
        %v5662 = vsel %vm5124, %v5613, 0
        %v5665 = vsel %vm5124, %v5614, 0
        %v5668 = vsel %vm5124, %v5615, 0
        %v5671 = vsel %vm5124, %v5616, 0
        %v5674 = vsel %vm5124, %v5617, 0
        %v5677 = vsel %vm5124, %v5618, 0
        %v5680 = vsel %vm5124, %v5619, 0
        %v5683 = vsel %vm5124, %v5620, 0
        %5685 = vmatprep.subr.bf16.mxu0 0
        %5686 = vmatpush1.bf16.msra.mxu0 0
        %5687 = vmatprep.subr.bf16.mxu0 0
        %5688 = vmatpush1.bf16.msra.mxu0 0
        %5689 = vmatprep.subr.bf16.mxu0 0
        %5690 = vmatpush1.bf16.msra.mxu0 0
        %5691 = vmatprep.subr.bf16.mxu0 0
        %5692 = vmatpush1.bf16.msra.mxu0 0
        %5693 = vmatprep.subr.bf16.mxu0 0
        %5694 = vmatpush1.bf16.msra.mxu0 0
        %5695 = vmatprep.subr.bf16.mxu0 0
        %5696 = vmatpush1.bf16.msra.mxu0 0
        %5697 = vmatprep.subr.bf16.mxu0 0
        %5698 = vmatpush1.bf16.msra.mxu0 %v5634
        %5699 = vmatprep.subr.bf16.mxu0 0
        %5700 = vmatpush1.bf16.msra.mxu0 %v5633
        %5701 = vmatprep.subr.bf16.mxu0 0
        %5702 = vmatpush2.bf16.msra.mxu0 0
        %5703 = vmatprep.subr.bf16.mxu0 0
        %5704 = vmatpush2.bf16.msra.mxu0 0
        %5705 = vmatprep.subr.bf16.mxu0 0
        %5706 = vmatpush2.bf16.msra.mxu0 0
        %5707 = vmatprep.subr.bf16.mxu0 0
        %5708 = vmatpush2.bf16.msra.mxu0 0
        %5709 = vmatprep.subr.bf16.mxu0 0
        %5710 = vmatpush2.bf16.msra.mxu0 0
        %5711 = vmatprep.subr.bf16.mxu0 0
        %5712 = vmatpush2.bf16.msra.mxu0 0
        %5713 = vmatprep.subr.bf16.mxu0 0
        %5714 = vmatpush2.bf16.msra.mxu0 0
        %5715 = vmatprep.subr.bf16.mxu0 0
        %5716 = vmatpush2.bf16.msra.mxu0 0
        %5717 = vmatprep.mubr.bf16.mxu0 0
        %5718 = vmatmul.mubr.bf16.gmra.mxu0 %v5638
        %v5719 = vpop.f32.mrf.mxu0
        %v5720 = vadd.f32 0.0, %v5719
        %v5721 = vpop.f32.mrf.mxu0
        %v5722 = vpop.f32.mrf.mxu0
        %v5723 = vadd.f32 0.0, %v5722
        %v5724 = vpop.f32.mrf.mxu0
        %5725 = vmatprep.mubr.bf16.mxu0 0
        %5726 = vmatmul.mubr.bf16.gmra.mxu0 %v5641
        %v5727 = vpop.f32.mrf.mxu0
        %v5728 = vadd.f32 0.0, %v5727
        %v5729 = vpop.f32.mrf.mxu0
        %v5730 = vpop.f32.mrf.mxu0
        %v5731 = vadd.f32 0.0, %v5730
        %v5732 = vpop.f32.mrf.mxu0
        %5733 = vmatprep.mubr.bf16.mxu0 0
        %5734 = vmatmul.mubr.bf16.gmra.mxu0 %v5644
        %v5735 = vpop.f32.mrf.mxu0
        %v5736 = vadd.f32 0.0, %v5735
        %v5737 = vpop.f32.mrf.mxu0
        %v5738 = vpop.f32.mrf.mxu0
        %v5739 = vadd.f32 0.0, %v5738
        %v5740 = vpop.f32.mrf.mxu0
        %5741 = vmatprep.mubr.bf16.mxu0 0
        %5742 = vmatmul.mubr.bf16.gmra.mxu0 %v5647
        %v5743 = vpop.f32.mrf.mxu0
        %v5744 = vadd.f32 0.0, %v5743
        %v5745 = vpop.f32.mrf.mxu0
        %v5746 = vpop.f32.mrf.mxu0
        %v5747 = vadd.f32 0.0, %v5746
        %v5748 = vpop.f32.mrf.mxu0
        %5749 = vmatprep.mubr.bf16.mxu0 0
        %5750 = vmatmul.mubr.bf16.gmra.mxu0 %v5650
        %v5751 = vpop.f32.mrf.mxu0
        %v5752 = vadd.f32 0.0, %v5751
        %v5753 = vpop.f32.mrf.mxu0
        %v5754 = vpop.f32.mrf.mxu0
        %v5755 = vadd.f32 0.0, %v5754
        %v5756 = vpop.f32.mrf.mxu0
        %5757 = vmatprep.mubr.bf16.mxu0 0
        %5758 = vmatmul.mubr.bf16.gmra.mxu0 %v5653
        %v5759 = vpop.f32.mrf.mxu0
        %v5760 = vadd.f32 0.0, %v5759
        %v5761 = vpop.f32.mrf.mxu0
        %v5762 = vpop.f32.mrf.mxu0
        %v5763 = vadd.f32 0.0, %v5762
        %v5764 = vpop.f32.mrf.mxu0
        %5765 = vmatprep.mubr.bf16.mxu0 0
        %5766 = vmatmul.mubr.bf16.gmra.mxu0 %v5656
        %v5767 = vpop.f32.mrf.mxu0
        %v5768 = vadd.f32 0.0, %v5767
        %v5769 = vpop.f32.mrf.mxu0
        %v5770 = vpop.f32.mrf.mxu0
        %v5771 = vadd.f32 0.0, %v5770
        %v5772 = vpop.f32.mrf.mxu0
        %5773 = vmatprep.mubr.bf16.mxu0 0
        %5774 = vmatmul.mubr.bf16.gmra.mxu0 %v5659
        %v5775 = vpop.f32.mrf.mxu0
        %v5776 = vadd.f32 0.0, %v5775
        %v5777 = vpop.f32.mrf.mxu0
        %v5778 = vpop.f32.mrf.mxu0
        %v5779 = vadd.f32 0.0, %v5778
        %v5780 = vpop.f32.mrf.mxu0
        %5781 = vmatprep.mubr.bf16.mxu0 0
        %5782 = vmatmul.mubr.bf16.gmra.mxu0 %v5662
        %v5783 = vpop.f32.mrf.mxu0
        %v5784 = vadd.f32 0.0, %v5783
        %v5785 = vpop.f32.mrf.mxu0
        %v5786 = vpop.f32.mrf.mxu0
        %v5787 = vadd.f32 0.0, %v5786
        %v5788 = vpop.f32.mrf.mxu0
        %5789 = vmatprep.mubr.bf16.mxu0 0
        %5790 = vmatmul.mubr.bf16.gmra.mxu0 %v5665
        %v5791 = vpop.f32.mrf.mxu0
        %v5792 = vadd.f32 0.0, %v5791
        %v5793 = vpop.f32.mrf.mxu0
        %v5794 = vpop.f32.mrf.mxu0
        %v5795 = vadd.f32 0.0, %v5794
        %v5796 = vpop.f32.mrf.mxu0
        %5797 = vmatprep.mubr.bf16.mxu0 0
        %5798 = vmatmul.mubr.bf16.gmra.mxu0 %v5668
        %v5799 = vpop.f32.mrf.mxu0
        %v5800 = vadd.f32 0.0, %v5799
        %v5801 = vpop.f32.mrf.mxu0
        %v5802 = vpop.f32.mrf.mxu0
        %v5803 = vadd.f32 0.0, %v5802
        %v5804 = vpop.f32.mrf.mxu0
        %5805 = vmatprep.mubr.bf16.mxu0 0
        %5806 = vmatmul.mubr.bf16.gmra.mxu0 %v5671
        %v5807 = vpop.f32.mrf.mxu0
        %v5808 = vadd.f32 0.0, %v5807
        %v5809 = vpop.f32.mrf.mxu0
        %v5810 = vpop.f32.mrf.mxu0
        %v5811 = vadd.f32 0.0, %v5810
        %v5812 = vpop.f32.mrf.mxu0
        %5813 = vmatprep.mubr.bf16.mxu0 0
        %5814 = vmatmul.mubr.bf16.gmra.mxu0 %v5674
        %v5815 = vpop.f32.mrf.mxu0
        %v5816 = vadd.f32 0.0, %v5815
        %v5817 = vpop.f32.mrf.mxu0
        %v5818 = vpop.f32.mrf.mxu0
        %v5819 = vadd.f32 0.0, %v5818
        %v5820 = vpop.f32.mrf.mxu0
        %5821 = vmatprep.mubr.bf16.mxu0 0
        %5822 = vmatmul.mubr.bf16.gmra.mxu0 %v5677
        %v5823 = vpop.f32.mrf.mxu0
        %v5824 = vadd.f32 0.0, %v5823
        %v5825 = vpop.f32.mrf.mxu0
        %v5826 = vpop.f32.mrf.mxu0
        %v5827 = vadd.f32 0.0, %v5826
        %v5828 = vpop.f32.mrf.mxu0
        %5829 = vmatprep.mubr.bf16.mxu0 0
        %5830 = vmatmul.mubr.bf16.gmra.mxu0 %v5680
        %v5831 = vpop.f32.mrf.mxu0
        %v5832 = vadd.f32 0.0, %v5831
        %v5833 = vpop.f32.mrf.mxu0
        %v5834 = vpop.f32.mrf.mxu0
        %v5835 = vadd.f32 0.0, %v5834
        %v5836 = vpop.f32.mrf.mxu0
        %5837 = vmatprep.mubr.bf16.mxu0 0
        %5838 = vmatmul.mubr.bf16.gmra.mxu0 %v5683
        %v5839 = vpop.f32.mrf.mxu0
        %v5840 = vadd.f32 0.0, %v5839
        %v5841 = vpop.f32.mrf.mxu0
        %v5842 = vpop.f32.mrf.mxu0
        %v5843 = vadd.f32 0.0, %v5842
        %v5844 = vpop.f32.mrf.mxu0
        %5845 = vdwg.mxu0
        %v5846 = vld [vmem:[%s8] sm:$0x1]
        %v5848 = vlaneseq
        %v5849 = vshrl.u32 %v5848, 7
        %v5850 = vsub.s32 0, %v5849
        %v5851 = vrot.slane %v5846, %v5850
        %v5853 = vmul.f32 %v5720, %v5851
        %v5854 = vmul.f32 %v5723, %v5851
        %v5855 = vmul.f32 %v5728, %v5851
        %v5856 = vmul.f32 %v5731, %v5851
        %v5857 = vmul.f32 %v5736, %v5851
        %v5858 = vmul.f32 %v5739, %v5851
        %v5859 = vmul.f32 %v5744, %v5851
        %v5860 = vmul.f32 %v5747, %v5851
        %v5861 = vmul.f32 %v5752, %v5851
        %v5862 = vmul.f32 %v5755, %v5851
        %v5863 = vmul.f32 %v5760, %v5851
        %v5864 = vmul.f32 %v5763, %v5851
        %v5865 = vmul.f32 %v5768, %v5851
        %v5866 = vmul.f32 %v5771, %v5851
        %v5867 = vmul.f32 %v5776, %v5851
        %v5868 = vmul.f32 %v5779, %v5851
        %v5869 = vmul.f32 %v5784, %v5851
        %v5870 = vmul.f32 %v5787, %v5851
        %v5871 = vmul.f32 %v5792, %v5851
        %v5872 = vmul.f32 %v5795, %v5851
        %v5873 = vmul.f32 %v5800, %v5851
        %v5874 = vmul.f32 %v5803, %v5851
        %v5875 = vmul.f32 %v5808, %v5851
        %v5876 = vmul.f32 %v5811, %v5851
        %v5877 = vmul.f32 %v5816, %v5851
        %v5878 = vmul.f32 %v5819, %v5851
        %v5879 = vmul.f32 %v5824, %v5851
        %v5880 = vmul.f32 %v5827, %v5851
        %v5881 = vmul.f32 %v5832, %v5851
        %v5882 = vmul.f32 %v5835, %v5851
        %v5883 = vmul.f32 %v5840, %v5851
        %v5884 = vmul.f32 %v5843, %v5851
        %v5885 = vld [vmem:[%s9] sm:$0x1]
        %v5887 = vlaneseq
        %v5888 = vshrl.u32 %v5887, 7
        %v5889 = vsub.s32 0, %v5888
        %v5890 = vrot.slane %v5885, %v5889
        %v5892 = vadd.f32 %v5853, %v5890
        %v5893 = vadd.f32 %v5854, %v5890
        %v5894 = vadd.f32 %v5855, %v5890
        %v5895 = vadd.f32 %v5856, %v5890
        %v5896 = vadd.f32 %v5857, %v5890
        %v5897 = vadd.f32 %v5858, %v5890
        %v5898 = vadd.f32 %v5859, %v5890
        %v5899 = vadd.f32 %v5860, %v5890
        %v5900 = vadd.f32 %v5861, %v5890
        %v5901 = vadd.f32 %v5862, %v5890
        %v5902 = vadd.f32 %v5863, %v5890
        %v5903 = vadd.f32 %v5864, %v5890
        %v5904 = vadd.f32 %v5865, %v5890
        %v5905 = vadd.f32 %v5866, %v5890
        %v5906 = vadd.f32 %v5867, %v5890
        %v5907 = vadd.f32 %v5868, %v5890
        %v5908 = vadd.f32 %v5869, %v5890
        %v5909 = vadd.f32 %v5870, %v5890
        %v5910 = vadd.f32 %v5871, %v5890
        %v5911 = vadd.f32 %v5872, %v5890
        %v5912 = vadd.f32 %v5873, %v5890
        %v5913 = vadd.f32 %v5874, %v5890
        %v5914 = vadd.f32 %v5875, %v5890
        %v5915 = vadd.f32 %v5876, %v5890
        %v5916 = vadd.f32 %v5877, %v5890
        %v5917 = vadd.f32 %v5878, %v5890
        %v5918 = vadd.f32 %v5879, %v5890
        %v5919 = vadd.f32 %v5880, %v5890
        %v5920 = vadd.f32 %v5881, %v5890
        %v5921 = vadd.f32 %v5882, %v5890
        %v5922 = vadd.f32 %v5883, %v5890
        %v5923 = vadd.f32 %v5884, %v5890
        %v5924 = vadd.f32 %v5892, %v861
        %v5925 = vadd.f32 %v5893, %v862
        %v5926 = vadd.f32 %v5894, %v863
        %v5927 = vadd.f32 %v5895, %v864
        %v5928 = vadd.f32 %v5896, %v865
        %v5929 = vadd.f32 %v5897, %v866
        %v5930 = vadd.f32 %v5898, %v867
        %v5931 = vadd.f32 %v5899, %v868
        %v5932 = vadd.f32 %v5900, %v869
        %v5933 = vadd.f32 %v5901, %v870
        %v5934 = vadd.f32 %v5902, %v871
        %v5935 = vadd.f32 %v5903, %v872
        %v5936 = vadd.f32 %v5904, %v873
        %v5937 = vadd.f32 %v5905, %v874
        %v5938 = vadd.f32 %v5906, %v875
        %v5939 = vadd.f32 %v5907, %v876
        %v5940 = vadd.f32 %v5908, %v877
        %v5941 = vadd.f32 %v5909, %v878
        %v5942 = vadd.f32 %v5910, %v879
        %v5943 = vadd.f32 %v5911, %v880
        %v5944 = vadd.f32 %v5912, %v881
        %v5945 = vadd.f32 %v5913, %v882
        %v5946 = vadd.f32 %v5914, %v883
        %v5947 = vadd.f32 %v5915, %v884
        %v5948 = vadd.f32 %v5916, %v885
        %v5949 = vadd.f32 %v5917, %v886
        %v5950 = vadd.f32 %v5918, %v887
        %v5951 = vadd.f32 %v5919, %v888
        %v5952 = vadd.f32 %v5920, %v889
        %v5953 = vadd.f32 %v5921, %v890
        %v5954 = vadd.f32 %v5922, %v891
        %v5955 = vadd.f32 %v5923, %v892
        %v5956 = vmax.f32 %v5924, 0.0
        %v5957 = vmax.f32 %v5925, 0.0
        %v5958 = vmax.f32 %v5926, 0.0
        %v5959 = vmax.f32 %v5927, 0.0
        %v5960 = vmax.f32 %v5928, 0.0
        %v5961 = vmax.f32 %v5929, 0.0
        %v5962 = vmax.f32 %v5930, 0.0
        %v5963 = vmax.f32 %v5931, 0.0
        %v5964 = vmax.f32 %v5932, 0.0
        %v5965 = vmax.f32 %v5933, 0.0
        %v5966 = vmax.f32 %v5934, 0.0
        %v5967 = vmax.f32 %v5935, 0.0
        %v5968 = vmax.f32 %v5936, 0.0
        %v5969 = vmax.f32 %v5937, 0.0
        %v5970 = vmax.f32 %v5938, 0.0
        %v5971 = vmax.f32 %v5939, 0.0
        %v5972 = vmax.f32 %v5940, 0.0
        %v5973 = vmax.f32 %v5941, 0.0
        %v5974 = vmax.f32 %v5942, 0.0
        %v5975 = vmax.f32 %v5943, 0.0
        %v5976 = vmax.f32 %v5944, 0.0
        %v5977 = vmax.f32 %v5945, 0.0
        %v5978 = vmax.f32 %v5946, 0.0
        %v5979 = vmax.f32 %v5947, 0.0
        %v5980 = vmax.f32 %v5948, 0.0
        %v5981 = vmax.f32 %v5949, 0.0
        %v5982 = vmax.f32 %v5950, 0.0
        %v5983 = vmax.f32 %v5951, 0.0
        %v5984 = vmax.f32 %v5952, 0.0
        %v5985 = vmax.f32 %v5953, 0.0
        %v5986 = vmax.f32 %v5954, 0.0
        %v5987 = vmax.f32 %v5955, 0.0
        %5988 = vst [vmem:[%s406] sm:$0xff] %v5956
        %5989 = vst [vmem:[%s406 + $0x8] sm:$0xff] %v5957
        %5990 = vst [vmem:[%s406 + $0x10] sm:$0xff] %v5958
        %5991 = vst [vmem:[%s406 + $0x18] sm:$0xff] %v5959
        %5992 = vst [vmem:[%s406 + $0x20] sm:$0xff] %v5960
        %5993 = vst [vmem:[%s406 + $0x28] sm:$0xff] %v5961
        %5994 = vst [vmem:[%s406 + $0x30] sm:$0xff] %v5962
        %5995 = vst [vmem:[%s406 + $0x38] sm:$0xff] %v5963
        %5996 = vst [vmem:[%s406 + $0x40] sm:$0xff] %v5964
        %5997 = vst [vmem:[%s406 + $0x48] sm:$0xff] %v5965
        %5998 = vst [vmem:[%s406 + $0x50] sm:$0xff] %v5966
        %5999 = vst [vmem:[%s406 + $0x58] sm:$0xff] %v5967
        %6000 = vst [vmem:[%s406 + $0x60] sm:$0xff] %v5968
        %6001 = vst [vmem:[%s406 + $0x68] sm:$0xff] %v5969
        %6002 = vst [vmem:[%s406 + $0x70] sm:$0xff] %v5970
        %6003 = vst [vmem:[%s406 + $0x78] sm:$0xff] %v5971
        %6004 = vst [vmem:[%s406 + $0x80] sm:$0xff] %v5972
        %6005 = vst [vmem:[%s406 + $0x88] sm:$0xff] %v5973
        %6006 = vst [vmem:[%s406 + $0x90] sm:$0xff] %v5974
        %6007 = vst [vmem:[%s406 + $0x98] sm:$0xff] %v5975
        %6008 = vst [vmem:[%s406 + $0xa0] sm:$0xff] %v5976
        %6009 = vst [vmem:[%s406 + $0xa8] sm:$0xff] %v5977
        %6010 = vst [vmem:[%s406 + $0xb0] sm:$0xff] %v5978
        %6011 = vst [vmem:[%s406 + $0xb8] sm:$0xff] %v5979
        %6012 = vst [vmem:[%s406 + $0xc0] sm:$0xff] %v5980
        %6013 = vst [vmem:[%s406 + $0xc8] sm:$0xff] %v5981
        %6014 = vst [vmem:[%s406 + $0xd0] sm:$0xff] %v5982
        %6015 = vst [vmem:[%s406 + $0xd8] sm:$0xff] %v5983
        %6016 = vst [vmem:[%s406 + $0xe0] sm:$0xff] %v5984
        %6017 = vst [vmem:[%s406 + $0xe8] sm:$0xff] %v5985
        %6018 = vst [vmem:[%s406 + $0xf0] sm:$0xff] %v5986
        %6019 = vst [vmem:[%s406 + $0xf8] sm:$0xff] %v5987
        %s6020 = sand.u32 %s291, 1
        %s6021 = scalar_lea.sflag [#allocation5], %s6020
        %s6022 = sand.u32 %s291, 1
        %s6023 = smul.addr %s6022, 256
        %s6024 = scalar_lea.vmem [#allocation4], %s6023
        // Predicated region
        $region69: #{bottleneck_forward.1} parent=67 // pred_check
          %p6025 = pneg %p301
        $region70: #{bottleneck_forward.1} parent=67 // pred_check_branch
          %6027 = sbr.rel (%p6025) target = $region72
        $region71: #{bottleneck_forward.1} parent=67 // pred_region
          %s6029 = ssub.s32 4096, 4096
          %6030 = vsyncadd %s6021, %s6029
          %s6031 = smul.addr %s26, 32
          %s6032 = smul.addr %s6031, 128
          %s6033 = scalar_lea.hbm %s12, %s6032
          %s6034 = sshll.u32 %s6024, 4
          %s6035 = int_to_ptr.vmem [resolvable:$true] %s6034
          %6040 = dma.vmem_to_hbm [thread:$0]  %s6035, 4096, %s6033, %s6021, 128, 128, 8
        $region72: #{bottleneck_forward.1} parent=67 // pred_fallthru
          _
      $region68: #{bottleneck_forward.1} parent=5 // pred_fallthru
        _
      %p6041 = scmp.le.s32.totalorder 2, %s21
      // Predicated region
      $region73: #{bottleneck_forward.1} parent=5 // pred_check
        %p6042 = pneg %p6041
      $region74: #{bottleneck_forward.1} parent=5 // pred_check_branch
        %6044 = sbr.rel (%p6042) target = $region76
      $region75: #{bottleneck_forward.1} parent=5 // pred_region
        %s6045 = ssub.s32 %s21, 2
        // Predicated region
        $region77: #{bottleneck_forward.1} parent=75 // pred_check
          %p6046 = pneg %p307
        $region78: #{bottleneck_forward.1} parent=75 // pred_check_branch
          %6048 = sbr.rel (%p6046) target = $region80
        $region79: #{bottleneck_forward.1} parent=75 // pred_region
          %s6049 = sand.u32 %s292, 1
          %s6050 = scalar_lea.sflag [#allocation5], %s6049
          %s6051 = sand.u32 %s292, 1
          %s6052 = smul.addr %s6051, 256
          %s6053 = scalar_lea.vmem [#allocation4], %s6052
          %6054 = dma.done %s6050, 4096
        $region80: #{bottleneck_forward.1} parent=75 // pred_fallthru
          _
      $region76: #{bottleneck_forward.1} parent=5 // pred_fallthru
        _
    $region6: #{bottleneck_forward.1} parent=1 // loop_footer
      %s25 = sadd.s32 1, %s21
    $region7: #{bottleneck_forward.1} parent=1 // loop_footer_branch
      %20 = sbr.rel target = $region3
    $region8: #{bottleneck_forward.1} parent=1 // loop_exit
      _
    %6055 = vsyncpa [#allocation5], 1
    %s6056 = scalar_lea.sflag [#allocation5], 1
    %6057 = vsyncpa %s6056, 1

</llo_original>
